<compile_context>
chip_gen: v7x
topology: tpu7x:2x2x1
jax: 0.10.0
libtpu: 0.0.40
codegen_flags: <defaults>
</compile_context>

<pallas_src>
import functools

import jax
import jax.numpy as jnp
from jax.experimental import pallas as pl
from jax.experimental.pallas import tpu as pltpu


# -----------------------------------------------------------------------------
# In-kernel helpers
# -----------------------------------------------------------------------------

def _gn(x, gamma, beta, eps):
    """GroupNorm(num_groups=1): slab-wide stats, per-channel affine (folded FMA).

    Sums are one axis=-1 pass per statistic plus a tiny (C,1) cross reduce.
    TODO(synk): the one-pass variance (ss/n - mean^2) can cancel catastrophically
                for very long T; use a shifted/Welford combine when scaling T up.
    """
    n = x.size
    s_col = jnp.sum(x, axis=-1, keepdims=True)          # (C, 1)
    ss_col = jnp.sum(x * x, axis=-1, keepdims=True)     # (C, 1)
    mean = jnp.sum(s_col) / n
    var = jnp.sum(ss_col) / n - mean * mean             # biased variance (PyTorch)
    inv = jax.lax.rsqrt(var + eps)
    scale = inv * gamma                                  # (C, 1)
    return x * scale + (beta - mean * scale)


# -----------------------------------------------------------------------------
# Fused TCN kernel: one grid step == one batch element's full forward pass
# -----------------------------------------------------------------------------

def tcn_kernel(alpha_ref,                                  # SMEM (2L+1,) PReLU alphas
               x_ref, ln_g_ref, ln_b_ref, bn_w_ref, bn_b_ref,
               w1_ref, b1_ref, g1_ref, be1_ref,
               wdw_ref, bd_ref, g2_ref, be2_ref,
               wr_ref, br_ref, ow_ref, ob_ref,
               o_ref, *, L, layer, kernel, groups, in_pg, out_pg, eps):
    f32 = jnp.float32
    bf16 = jnp.bfloat16
    x = x_ref[0].astype(f32)                               # (Cin, T)
    T = x.shape[-1]

    # conv zero-padding masks: one pair per distinct dilation, hoisted out of the loop
    t_idx = jax.lax.broadcasted_iota(jnp.int32, (groups, T), 1)
    masks = {}
    for i in range(layer):
        d = 2 ** i
        masks[d] = (t_idx >= d, t_idx < T - d)             # (back-shift valid, fwd-shift valid)

    # LN: GroupNorm(1, input_dim);  BN: 1x1 conv input_dim -> BN_dim (bf16 MXU)
    h = _gn(x, ln_g_ref[...], ln_b_ref[...], eps)
    out = jnp.dot(bn_w_ref[...], h.astype(bf16),
                  preferred_element_type=f32) + bn_b_ref[...]      # (BN, T) f32

    for j in range(L):                                     # static unroll over blocks
        d = 2 ** (j % layer)                               # dilation == padding == 2**i
        a1 = alpha_ref[2 * j]
        a2 = alpha_ref[2 * j + 1]
        lo_ok, hi_ok = masks[d]

        # ---- stage 1: 1x1 conv (bf16 MXU) -> PReLU -> GroupNorm(1, BN_dim) ----
        h1 = jnp.dot(w1_ref[j], out.astype(bf16),
                     preferred_element_type=f32) + b1_ref[j]
        h1 = jnp.where(h1 >= 0, h1, a1 * h1)
        h1 = _gn(h1, g1_ref[j], be1_ref[j], eps)

        # ---- stage 2: grouped dilated conv as per-tap VPU MACs ----
        # shifted (roll + mask) per-(tap, group-input) slabs, shared by all out_pg
        # output sub-channels of every group.
        shifted = []
        for kk in range(kernel):
            sh = kk * d - d                                # taps at -d, 0, +d (kernel == 3)
            for i in range(in_pg):
                xg = h1[i * groups:(i + 1) * groups]       # contiguous sublane slice
                if sh == 0:
                    shifted.append(xg)
                else:
                    rolled = pltpu.roll(xg, (-sh) % T, 1)  # XLU lane rotate
                    ok = lo_ok if sh < 0 else hi_ok
                    shifted.append(jnp.where(ok, rolled, 0.0))

        wd_j = wdw_ref[j]                                  # (groups, out_pg*kernel*in_pg): ONE load
        n_tap = kernel * in_pg
        parts = []
        for r in range(out_pg):                            # out_pg output sub-channels / group
            base = r * n_tap
            acc = wd_j[:, base:base + 1] * shifted[0]
            for c in range(1, n_tap):
                acc = acc + wd_j[:, base + c:base + c + 1] * shifted[c]
            parts.append(acc)

        # stack sub-channels along sublanes -> (H, T); bias + PReLU + GroupNorm(1, H_dim)
        h2 = jnp.concatenate(parts, axis=0) + bd_ref[j]
        h2 = jnp.where(h2 >= 0, h2, a2 * h2)
        h2 = _gn(h2, g2_ref[j], be2_ref[j], eps)

        # ---- residual 1x1 conv: ONE (BN, H) @ (H, T) bf16 MXU matmul + residual add ----
        out = out + br_ref[j] + jnp.dot(wr_ref[j], h2.astype(bf16),
                                        preferred_element_type=f32)

    # output head: PReLU -> 1x1 conv BN_dim -> output_dim (bf16 MXU)
    a_out = alpha_ref[2 * L]
    out = jnp.where(out >= 0, out, a_out * out)
    y = jnp.dot(ow_ref[...], out.astype(bf16),
                preferred_element_type=f32) + ob_ref[...]
    o_ref[0] = y.astype(o_ref.dtype)


# -----------------------------------------------------------------------------
# pallas_call wrapper
# -----------------------------------------------------------------------------

def _const_index_map(ndim):
    return lambda b: (0,) * ndim


def tcn_forward(x, p, *, layer, kernel, L, groups, in_pg, out_pg, eps=1e-8):
    # TODO(synk): the shift formula (taps at -d, 0, +d) assumes kernel == 3 so that
    #             padding == dilation, matching the PyTorch module's defaults.
    assert kernel == 3, "grouped-conv shift/padding formula assumes kernel == 3"
    B, Cin, T = x.shape
    out_dim = p["out_w"].shape[0]

    kfn = functools.partial(tcn_kernel, L=L, layer=layer, kernel=kernel,
                            groups=groups, in_pg=in_pg, out_pg=out_pg, eps=eps)

    names = ("ln_g", "ln_b", "bn_w", "bn_b", "w1", "b1", "g1", "be1",
             "wdw", "bd", "g2", "be2", "wr", "br", "out_w", "out_b")
    params = [p[n] for n in names]

    in_specs = [pl.BlockSpec(memory_space=pltpu.MemorySpace.SMEM),     # PReLU alphas
                pl.BlockSpec((1, Cin, T), lambda b: (b, 0, 0))]        # input slab
    # weight-like inputs: full-array blocks, constant index map (stay resident).
    # TODO(synk): pipeline_mode=pl.Buffered(1) / per-layer weight streaming for
    #             realistic BN/H/L on v7x's 64 MiB VMEM.
    in_specs += [pl.BlockSpec(a.shape, _const_index_map(a.ndim)) for a in params]

    return pl.pallas_call(
        kfn,
        grid=(B,),
        in_specs=in_specs,
        out_specs=pl.BlockSpec((1, out_dim, T), lambda b: (b, 0, 0)),
        out_shape=jax.ShapeDtypeStruct((B, out_dim, T), x.dtype),
        compiler_params=pltpu.CompilerParams(
            dimension_semantics=("parallel",)),                        # v7x: 2 TCs split batch
    )(p["alphas"], x, *params)


# -----------------------------------------------------------------------------
# Parameters: raw (PyTorch-layout) init + packing into kernel-friendly layouts
# -----------------------------------------------------------------------------

def init_tcn_params(key, input_dim, output_dim, BN, H, layer, R, kernel):
    L = R * layer
    groups = H // 2
    in_pg = BN // groups
    assert groups * in_pg == BN and groups * (H // groups) == H

    def nrm(k, shape, fan_in):
        return jax.random.normal(k, shape, jnp.float32) / jnp.sqrt(jnp.float32(fan_in))

    ki = iter(jax.random.split(key, 4 + 6 * L))
    a025 = jnp.asarray(0.25, jnp.float32)
    raw = {
        "ln_g": jnp.ones((input_dim,), jnp.float32),
        "ln_b": jnp.zeros((input_dim,), jnp.float32),
        "bn_w": nrm(next(ki), (BN, input_dim), input_dim),
        "bn_b": nrm(next(ki), (BN,), input_dim),
        "out_w": nrm(next(ki), (output_dim, BN), BN),
        "out_b": nrm(next(ki), (output_dim,), BN),
        "out_a": a025,
        "blocks": [],
    }
    for _ in range(L):
        raw["blocks"].append({
            "w1": nrm(next(ki), (BN, BN), BN),
            "b1": nrm(next(ki), (BN,), BN),
            "a1": a025,
            "g1": jnp.ones((BN,), jnp.float32),
            "be1": jnp.zeros((BN,), jnp.float32),
            "wd": nrm(next(ki), (H, in_pg, kernel), in_pg * kernel),  # grouped conv weight
            "bd": nrm(next(ki), (H,), in_pg * kernel),
            "a2": a025,
            "g2": jnp.ones((H,), jnp.float32),
            "be2": jnp.zeros((H,), jnp.float32),
            "wr": nrm(next(ki), (BN, H), H),
            "br": nrm(next(ki), (BN,), H),
        })
    return raw


def pack_tcn_params(raw, *, kernel, H, weight_dtype=jnp.bfloat16):
    blocks = raw["blocks"]
    L = len(blocks)
    BN = raw["bn_w"].shape[0]
    groups = H // 2
    out_pg = H // groups
    in_pg = BN // groups
    col = lambda v: v.reshape(-1, 1)

    # stage-1 output-channel permutation: kernel row i*groups+g <- original g*in_pg+i
    # (identity when in_pg == 1). Makes each group-input slab a contiguous sublane slice.
    perm_in = jnp.arange(BN).reshape(groups, in_pg).T.reshape(-1)
    # stacked H-channel permutation: kernel row r*groups+g <- original g*out_pg+r.
    perm_h = jnp.arange(H).reshape(groups, out_pg).T.reshape(-1)

    # grouped conv weight (H, in_pg, k) -> (groups, out_pg*kernel*in_pg):
    #   column (r*kernel + k)*in_pg + i, row g  <-  wd[g*out_pg + r, i, k]
    def arrange_wd(wd):
        w = wd.reshape(groups, out_pg, in_pg, kernel)      # [g, r, i, k]
        w = jnp.transpose(w, (0, 1, 3, 2))                 # [g, r, k, i]
        return w.reshape(groups, out_pg * kernel * in_pg)

    a_list = []
    for b in blocks:
        a_list += [b["a1"], b["a2"]]
    a_list.append(raw["out_a"])
    alphas = jnp.stack(a_list).astype(jnp.float32)         # (2L+1,) -> SMEM

    return dict(
        alphas=alphas,
        ln_g=col(raw["ln_g"]), ln_b=col(raw["ln_b"]),
        bn_w=raw["bn_w"].astype(weight_dtype), bn_b=col(raw["bn_b"]),
        w1=jnp.stack([b["w1"][perm_in, :] for b in blocks]).astype(weight_dtype),
        b1=jnp.stack([col(b["b1"][perm_in]) for b in blocks]),
        g1=jnp.stack([col(b["g1"][perm_in]) for b in blocks]),
        be1=jnp.stack([col(b["be1"][perm_in]) for b in blocks]),
        wdw=jnp.stack([arrange_wd(b["wd"]) for b in blocks]),            # f32 (VPU MACs)
        bd=jnp.stack([col(b["bd"][perm_h]) for b in blocks]),
        g2=jnp.stack([col(b["g2"][perm_h]) for b in blocks]),
        be2=jnp.stack([col(b["be2"][perm_h]) for b in blocks]),
        wr=jnp.stack([b["wr"][:, perm_h] for b in blocks]).astype(weight_dtype),
        br=jnp.stack([col(b["br"]) for b in blocks]),
        out_w=raw["out_w"].astype(weight_dtype), out_b=col(raw["out_b"]),
    )


# -----------------------------------------------------------------------------
# Pure-JAX reference (independent path) for end-to-end verification
# -----------------------------------------------------------------------------

def tcn_reference(x, raw, *, layer, kernel, eps=1e-8):
    hp = jax.lax.Precision.HIGHEST

    def gn(v, g, b):
        mean = jnp.mean(v, axis=(1, 2), keepdims=True)
        var = jnp.mean((v - mean) ** 2, axis=(1, 2), keepdims=True)
        return (v - mean) * jax.lax.rsqrt(var + eps) * g[None, :, None] + b[None, :, None]

    def prelu(v, a):
        return jnp.where(v >= 0, v, a * v)

    def conv1x1(v, w, b):
        return jnp.einsum("oc,bct->bot", w, v, precision=hp) + b[None, :, None]

    H = raw["blocks"][0]["wd"].shape[0]
    groups = H // 2
    h = gn(x, raw["ln_g"], raw["ln_b"])
    out = conv1x1(h, raw["bn_w"], raw["bn_b"])
    for j, blk in enumerate(raw["blocks"]):
        d = 2 ** (j % layer)
        h1 = gn(prelu(conv1x1(out, blk["w1"], blk["b1"]), blk["a1"]), blk["g1"], blk["be1"])
        h2 = jax.lax.conv_general_dilated(
            h1, blk["wd"], window_strides=(1,), padding=[(d, d)],
            rhs_dilation=(d,), dimension_numbers=("NCH", "OIH", "NCH"),
            feature_group_count=groups, precision=hp) + blk["bd"][None, :, None]
        h2 = gn(prelu(h2, blk["a2"]), blk["g2"], blk["be2"])
        out = out + conv1x1(h2, blk["wr"], blk["br"])
    out = prelu(out, raw["out_a"])
    return conv1x1(out, raw["out_w"], raw["out_b"])


# -----------------------------------------------------------------------------
# main
# -----------------------------------------------------------------------------

if __name__ == "__main__":
    # Small TCN config: TCN(input_dim=8, output_dim=8, BN_dim=16, H_dim=32,
    #                       layer=2, R=2, kernel=3, skip=False, causal=False)
    B, input_dim, output_dim = 2, 8, 8
    BN_dim, H_dim, layer, R, kernel = 16, 32, 2, 2, 3
    T = 256                   # lane-dense; fills the 256-wide MXU N on v6e/v7x

    L = R * layer
    groups = H_dim // 2
    in_pg = BN_dim // groups
    out_pg = H_dim // groups

    key = jax.random.PRNGKey(0)
    k_x, k_p = jax.random.split(key)
    x = jax.random.normal(k_x, (B, input_dim, T), jnp.float32)   # layout: (B, C, T)
    raw = init_tcn_params(k_p, input_dim, output_dim, BN_dim, H_dim, layer, R, kernel)
    packed = pack_tcn_params(raw, kernel=kernel, H=H_dim)

    fwd = jax.jit(functools.partial(tcn_forward, layer=layer, kernel=kernel, L=L,
                                    groups=groups, in_pg=in_pg, out_pg=out_pg))
    y = jax.block_until_ready(fwd(x, packed))
    assert y.shape == (B, output_dim, T), y.shape

    # Verify against an independent pure-JAX f32 reference (lax.conv_general_dilated
    # for the grouped dilated conv). The kernel runs its 1x1 convs in bf16 on the
    # MXU, so the tolerance is relative to the reference scale.
    y_ref = jax.block_until_ready(tcn_reference(x, raw, layer=layer, kernel=kernel))
    max_err = float(jnp.max(jnp.abs(y - y_ref)))
    scale = float(jnp.max(jnp.abs(y_ref)))
    assert max_err <= 3e-2 * max(scale, 1.0), (
        f"kernel/reference mismatch: max abs err = {max_err} (ref scale = {scale})")

    print("KERNEL_OK")
</pallas_src>

<mosaic_0001>
module attributes {stable_mosaic.version = 11 : i64} {
  func.func @tcn_kernel(%arg0: i32, %arg1: memref<9xf32, #tpu.memory_space<smem>>, %arg2: memref<1x8x256xf32, #tpu.memory_space<vmem>>, %arg3: memref<8x1xf32, #tpu.memory_space<vmem>>, %arg4: memref<8x1xf32, #tpu.memory_space<vmem>>, %arg5: memref<16x8xbf16, #tpu.memory_space<vmem>>, %arg6: memref<16x1xf32, #tpu.memory_space<vmem>>, %arg7: memref<4x16x16xbf16, #tpu.memory_space<vmem>>, %arg8: memref<4x16x1xf32, #tpu.memory_space<vmem>>, %arg9: memref<4x16x1xf32, #tpu.memory_space<vmem>>, %arg10: memref<4x16x1xf32, #tpu.memory_space<vmem>>, %arg11: memref<4x16x6xf32, #tpu.memory_space<vmem>>, %arg12: memref<4x32x1xf32, #tpu.memory_space<vmem>>, %arg13: memref<4x32x1xf32, #tpu.memory_space<vmem>>, %arg14: memref<4x32x1xf32, #tpu.memory_space<vmem>>, %arg15: memref<4x16x32xbf16, #tpu.memory_space<vmem>>, %arg16: memref<4x16x1xf32, #tpu.memory_space<vmem>>, %arg17: memref<8x16xbf16, #tpu.memory_space<vmem>>, %arg18: memref<8x1xf32, #tpu.memory_space<vmem>>, %arg19: memref<1x8x256xf32, #tpu.memory_space<vmem>>) attributes {dimension_semantics = [#tpu.dimension_semantics<parallel>], iteration_bounds = array<i64: 2>, scalar_prefetch = 0 : i64, scratch_operands = 0 : i64, tpu.core_type = #tpu.core_type<tc>, window_params = [{transform_indices = @transform_0, window_bounds = array<i64: 9>}, {transform_indices = @transform_1, window_bounds = array<i64: 1, 8, 256>}, {pipeline_mode = #tpu.pipeline_mode<synchronous>, transform_indices = @transform_2, window_bounds = array<i64: 8, 1>}, {pipeline_mode = #tpu.pipeline_mode<synchronous>, transform_indices = @transform_3, window_bounds = array<i64: 8, 1>}, {pipeline_mode = #tpu.pipeline_mode<synchronous>, transform_indices = @transform_4, window_bounds = array<i64: 16, 8>}, {pipeline_mode = #tpu.pipeline_mode<synchronous>, transform_indices = @transform_5, window_bounds = array<i64: 16, 1>}, {pipeline_mode = #tpu.pipeline_mode<synchronous>, transform_indices = @transform_6, window_bounds = array<i64: 4, 16, 16>}, {pipeline_mode = #tpu.pipeline_mode<synchronous>, transform_indices = @transform_7, window_bounds = array<i64: 4, 16, 1>}, {pipeline_mode = #tpu.pipeline_mode<synchronous>, transform_indices = @transform_8, window_bounds = array<i64: 4, 16, 1>}, {pipeline_mode = #tpu.pipeline_mode<synchronous>, transform_indices = @transform_9, window_bounds = array<i64: 4, 16, 1>}, {pipeline_mode = #tpu.pipeline_mode<synchronous>, transform_indices = @transform_10, window_bounds = array<i64: 4, 16, 6>}, {pipeline_mode = #tpu.pipeline_mode<synchronous>, transform_indices = @transform_11, window_bounds = array<i64: 4, 32, 1>}, {pipeline_mode = #tpu.pipeline_mode<synchronous>, transform_indices = @transform_12, window_bounds = array<i64: 4, 32, 1>}, {pipeline_mode = #tpu.pipeline_mode<synchronous>, transform_indices = @transform_13, window_bounds = array<i64: 4, 32, 1>}, {pipeline_mode = #tpu.pipeline_mode<synchronous>, transform_indices = @transform_14, window_bounds = array<i64: 4, 16, 32>}, {pipeline_mode = #tpu.pipeline_mode<synchronous>, transform_indices = @transform_15, window_bounds = array<i64: 4, 16, 1>}, {pipeline_mode = #tpu.pipeline_mode<synchronous>, transform_indices = @transform_16, window_bounds = array<i64: 8, 16>}, {pipeline_mode = #tpu.pipeline_mode<synchronous>, transform_indices = @transform_17, window_bounds = array<i64: 8, 1>}, {transform_indices = @transform_18, window_bounds = array<i64: 1, 8, 256>}]} {
    %c0 = arith.constant 0 : index
    %c0_0 = arith.constant 0 : index
    %c0_1 = arith.constant 0 : index
    %0 = vector.load %arg2[%c0, %c0_0, %c0_1] : memref<1x8x256xf32, #tpu.memory_space<vmem>>, vector<1x8x256xf32>
    %1 = vector.shape_cast %0 : vector<1x8x256xf32> to vector<8x256xf32>
    %2 = tpu.iota {dimensions = array<i32: 1>} : vector<16x256xi32>
    %c1_i32 = arith.constant 1 : i32
    %3 = vector.broadcast %c1_i32 : i32 to vector<16x256xi32>
    %4 = arith.cmpi sge, %2, %3 : vector<16x256xi32>
    %c255_i32 = arith.constant 255 : i32
    %5 = vector.broadcast %c255_i32 : i32 to vector<16x256xi32>
    %6 = arith.cmpi slt, %2, %5 : vector<16x256xi32>
    %c2_i32 = arith.constant 2 : i32
    %7 = vector.broadcast %c2_i32 : i32 to vector<16x256xi32>
    %8 = arith.cmpi sge, %2, %7 : vector<16x256xi32>
    %c254_i32 = arith.constant 254 : i32
    %9 = vector.broadcast %c254_i32 : i32 to vector<16x256xi32>
    %10 = arith.cmpi slt, %2, %9 : vector<16x256xi32>
    %c0_2 = arith.constant 0 : index
    %c0_3 = arith.constant 0 : index
    %11 = vector.load %arg3[%c0_2, %c0_3] : memref<8x1xf32, #tpu.memory_space<vmem>>, vector<8x1xf32>
    %c0_4 = arith.constant 0 : index
    %c0_5 = arith.constant 0 : index
    %12 = vector.load %arg4[%c0_4, %c0_5] : memref<8x1xf32, #tpu.memory_space<vmem>>, vector<8x1xf32>
    %cst = arith.constant dense<0.000000e+00> : vector<8xf32>
    %13 = vector.multi_reduction <add>, %1, %cst [1] : vector<8x256xf32> to vector<8xf32>
    %14 = vector.shape_cast %13 : vector<8xf32> to vector<8x1xf32>
    %15 = arith.mulf %1, %1 : vector<8x256xf32>
    %cst_6 = arith.constant dense<0.000000e+00> : vector<8xf32>
    %16 = vector.multi_reduction <add>, %15, %cst_6 [1] : vector<8x256xf32> to vector<8xf32>
    %17 = vector.shape_cast %16 : vector<8xf32> to vector<8x1xf32>
    %18 = vector.shape_cast %14 : vector<8x1xf32> to vector<1x8x1xf32>
    %cst_7 = arith.constant dense<0.000000e+00> : vector<1xf32>
    %19 = vector.multi_reduction <add>, %18, %cst_7 [1, 2] : vector<1x8x1xf32> to vector<1xf32>
    %20 = vector.shape_cast %19 : vector<1xf32> to vector<1x1x1xf32>
    %21 = vector.extract %20[0, 0, 0] : f32 from vector<1x1x1xf32>
    %cst_8 = arith.constant 2.048000e+03 : f32
    %22 = arith.divf %21, %cst_8 : f32
    %23 = vector.shape_cast %17 : vector<8x1xf32> to vector<1x8x1xf32>
    %cst_9 = arith.constant dense<0.000000e+00> : vector<1xf32>
    %24 = vector.multi_reduction <add>, %23, %cst_9 [1, 2] : vector<1x8x1xf32> to vector<1xf32>
    %25 = vector.shape_cast %24 : vector<1xf32> to vector<1x1x1xf32>
    %26 = vector.extract %25[0, 0, 0] : f32 from vector<1x1x1xf32>
    %cst_10 = arith.constant 2.048000e+03 : f32
    %27 = arith.divf %26, %cst_10 : f32
    %28 = arith.mulf %22, %22 : f32
    %29 = arith.subf %27, %28 : f32
    %cst_11 = arith.constant 9.99999993E-9 : f32
    %30 = arith.addf %29, %cst_11 : f32
    %31 = math.rsqrt %30 : f32
    %32 = vector.broadcast %31 : f32 to vector<8x1xf32>
    %33 = arith.mulf %32, %11 : vector<8x1xf32>
    %34 = vector.broadcast %33 : vector<8x1xf32> to vector<8x256xf32>
    %35 = arith.mulf %1, %34 : vector<8x256xf32>
    %36 = vector.broadcast %22 : f32 to vector<8x1xf32>
    %37 = arith.mulf %36, %33 : vector<8x1xf32>
    %38 = arith.subf %12, %37 : vector<8x1xf32>
    %39 = vector.broadcast %38 : vector<8x1xf32> to vector<8x256xf32>
    %40 = arith.addf %35, %39 : vector<8x256xf32>
    %c0_12 = arith.constant 0 : index
    %c0_13 = arith.constant 0 : index
    %41 = vector.load %arg5[%c0_12, %c0_13] : memref<16x8xbf16, #tpu.memory_space<vmem>>, vector<16x8xbf16>
    %42 = arith.truncf %40 : vector<8x256xf32> to vector<8x256xbf16>
    %cst_14 = arith.constant dense<0.000000e+00> : vector<16x256xf32>
    %43 = tpu.matmul %41, %42, %cst_14 {dimension_numbers = #tpu.dot_dimension_numbers<[1], [0], [0], [1], [0, 0, 1, 1], [], []>} : vector<16x8xbf16>, vector<8x256xbf16>, vector<16x256xf32> -> vector<16x256xf32>
    %c0_15 = arith.constant 0 : index
    %c0_16 = arith.constant 0 : index
    %44 = vector.load %arg6[%c0_15, %c0_16] : memref<16x1xf32, #tpu.memory_space<vmem>>, vector<16x1xf32>
    %45 = vector.broadcast %44 : vector<16x1xf32> to vector<16x256xf32>
    %46 = arith.addf %43, %45 : vector<16x256xf32>
    %c0_17 = arith.constant 0 : index
    %47 = memref.load %arg1[%c0_17] : memref<9xf32, #tpu.memory_space<smem>>
    %c1 = arith.constant 1 : index
    %48 = memref.load %arg1[%c1] : memref<9xf32, #tpu.memory_space<smem>>
    %c0_18 = arith.constant 0 : index
    %c0_19 = arith.constant 0 : index
    %c0_20 = arith.constant 0 : index
    %49 = vector.load %arg7[%c0_18, %c0_19, %c0_20] : memref<4x16x16xbf16, #tpu.memory_space<vmem>>, vector<1x16x16xbf16>
    %50 = vector.shape_cast %49 : vector<1x16x16xbf16> to vector<16x16xbf16>
    %51 = arith.truncf %46 : vector<16x256xf32> to vector<16x256xbf16>
    %cst_21 = arith.constant dense<0.000000e+00> : vector<16x256xf32>
    %52 = tpu.matmul %50, %51, %cst_21 {dimension_numbers = #tpu.dot_dimension_numbers<[1], [0], [0], [1], [0, 0, 1, 1], [], []>} : vector<16x16xbf16>, vector<16x256xbf16>, vector<16x256xf32> -> vector<16x256xf32>
    %c0_22 = arith.constant 0 : index
    %c0_23 = arith.constant 0 : index
    %c0_24 = arith.constant 0 : index
    %53 = vector.load %arg8[%c0_22, %c0_23, %c0_24] : memref<4x16x1xf32, #tpu.memory_space<vmem>>, vector<1x16x1xf32>
    %54 = vector.shape_cast %53 : vector<1x16x1xf32> to vector<16x1xf32>
    %55 = vector.broadcast %54 : vector<16x1xf32> to vector<16x256xf32>
    %56 = arith.addf %52, %55 : vector<16x256xf32>
    %cst_25 = arith.constant 0.000000e+00 : f32
    %57 = vector.broadcast %cst_25 : f32 to vector<16x256xf32>
    %58 = arith.cmpf oge, %56, %57 : vector<16x256xf32>
    %59 = vector.broadcast %47 : f32 to vector<16x256xf32>
    %60 = arith.mulf %59, %56 : vector<16x256xf32>
    %61 = arith.select %58, %56, %60 : vector<16x256xi1>, vector<16x256xf32>
    %c0_26 = arith.constant 0 : index
    %c0_27 = arith.constant 0 : index
    %c0_28 = arith.constant 0 : index
    %62 = vector.load %arg9[%c0_26, %c0_27, %c0_28] : memref<4x16x1xf32, #tpu.memory_space<vmem>>, vector<1x16x1xf32>
    %63 = vector.shape_cast %62 : vector<1x16x1xf32> to vector<16x1xf32>
    %c0_29 = arith.constant 0 : index
    %c0_30 = arith.constant 0 : index
    %c0_31 = arith.constant 0 : index
    %64 = vector.load %arg10[%c0_29, %c0_30, %c0_31] : memref<4x16x1xf32, #tpu.memory_space<vmem>>, vector<1x16x1xf32>
    %65 = vector.shape_cast %64 : vector<1x16x1xf32> to vector<16x1xf32>
    %cst_32 = arith.constant dense<0.000000e+00> : vector<16xf32>
    %66 = vector.multi_reduction <add>, %61, %cst_32 [1] : vector<16x256xf32> to vector<16xf32>
    %67 = vector.shape_cast %66 : vector<16xf32> to vector<16x1xf32>
    %68 = arith.mulf %61, %61 : vector<16x256xf32>
    %cst_33 = arith.constant dense<0.000000e+00> : vector<16xf32>
    %69 = vector.multi_reduction <add>, %68, %cst_33 [1] : vector<16x256xf32> to vector<16xf32>
    %70 = vector.shape_cast %69 : vector<16xf32> to vector<16x1xf32>
    %71 = vector.shape_cast %67 : vector<16x1xf32> to vector<1x16x1xf32>
    %cst_34 = arith.constant dense<0.000000e+00> : vector<1xf32>
    %72 = vector.multi_reduction <add>, %71, %cst_34 [1, 2] : vector<1x16x1xf32> to vector<1xf32>
    %73 = vector.shape_cast %72 : vector<1xf32> to vector<1x1x1xf32>
    %74 = vector.extract %73[0, 0, 0] : f32 from vector<1x1x1xf32>
    %cst_35 = arith.constant 4.096000e+03 : f32
    %75 = arith.divf %74, %cst_35 : f32
    %76 = vector.shape_cast %70 : vector<16x1xf32> to vector<1x16x1xf32>
    %cst_36 = arith.constant dense<0.000000e+00> : vector<1xf32>
    %77 = vector.multi_reduction <add>, %76, %cst_36 [1, 2] : vector<1x16x1xf32> to vector<1xf32>
    %78 = vector.shape_cast %77 : vector<1xf32> to vector<1x1x1xf32>
    %79 = vector.extract %78[0, 0, 0] : f32 from vector<1x1x1xf32>
    %cst_37 = arith.constant 4.096000e+03 : f32
    %80 = arith.divf %79, %cst_37 : f32
    %81 = arith.mulf %75, %75 : f32
    %82 = arith.subf %80, %81 : f32
    %cst_38 = arith.constant 9.99999993E-9 : f32
    %83 = arith.addf %82, %cst_38 : f32
    %84 = math.rsqrt %83 : f32
    %85 = vector.broadcast %84 : f32 to vector<16x1xf32>
    %86 = arith.mulf %85, %63 : vector<16x1xf32>
    %87 = vector.broadcast %86 : vector<16x1xf32> to vector<16x256xf32>
    %88 = arith.mulf %61, %87 : vector<16x256xf32>
    %89 = vector.broadcast %75 : f32 to vector<16x1xf32>
    %90 = arith.mulf %89, %86 : vector<16x1xf32>
    %91 = arith.subf %65, %90 : vector<16x1xf32>
    %92 = vector.broadcast %91 : vector<16x1xf32> to vector<16x256xf32>
    %93 = arith.addf %88, %92 : vector<16x256xf32>
    %c1_i32_39 = arith.constant 1 : i32
    %94 = tpu.dynamic_rotate %93 by %c1_i32_39 dim 1 : vector<16x256xf32>, i32 -> vector<16x256xf32>
    %cst_40 = arith.constant 0.000000e+00 : f32
    %95 = vector.broadcast %cst_40 : f32 to vector<16x256xf32>
    %96 = arith.select %4, %94, %95 : vector<16x256xi1>, vector<16x256xf32>
    %c255_i32_41 = arith.constant 255 : i32
    %97 = tpu.dynamic_rotate %93 by %c255_i32_41 dim 1 : vector<16x256xf32>, i32 -> vector<16x256xf32>
    %cst_42 = arith.constant 0.000000e+00 : f32
    %98 = vector.broadcast %cst_42 : f32 to vector<16x256xf32>
    %99 = arith.select %6, %97, %98 : vector<16x256xi1>, vector<16x256xf32>
    %c0_43 = arith.constant 0 : index
    %c0_44 = arith.constant 0 : index
    %c0_45 = arith.constant 0 : index
    %100 = vector.load %arg11[%c0_43, %c0_44, %c0_45] : memref<4x16x6xf32, #tpu.memory_space<vmem>>, vector<1x16x6xf32>
    %101 = vector.shape_cast %100 : vector<1x16x6xf32> to vector<16x6xf32>
    %102 = vector.extract_strided_slice %101 {offsets = [0, 0], sizes = [16, 1], strides = [1, 1]} : vector<16x6xf32> to vector<16x1xf32>
    %103 = vector.broadcast %102 : vector<16x1xf32> to vector<16x256xf32>
    %104 = arith.mulf %103, %96 : vector<16x256xf32>
    %105 = vector.extract_strided_slice %101 {offsets = [0, 1], sizes = [16, 1], strides = [1, 1]} : vector<16x6xf32> to vector<16x1xf32>
    %106 = vector.broadcast %105 : vector<16x1xf32> to vector<16x256xf32>
    %107 = arith.mulf %106, %93 : vector<16x256xf32>
    %108 = arith.addf %104, %107 : vector<16x256xf32>
    %109 = vector.extract_strided_slice %101 {offsets = [0, 2], sizes = [16, 1], strides = [1, 1]} : vector<16x6xf32> to vector<16x1xf32>
    %110 = vector.broadcast %109 : vector<16x1xf32> to vector<16x256xf32>
    %111 = arith.mulf %110, %99 : vector<16x256xf32>
    %112 = arith.addf %108, %111 : vector<16x256xf32>
    %113 = vector.extract_strided_slice %101 {offsets = [0, 3], sizes = [16, 1], strides = [1, 1]} : vector<16x6xf32> to vector<16x1xf32>
    %114 = vector.broadcast %113 : vector<16x1xf32> to vector<16x256xf32>
    %115 = arith.mulf %114, %96 : vector<16x256xf32>
    %116 = vector.extract_strided_slice %101 {offsets = [0, 4], sizes = [16, 1], strides = [1, 1]} : vector<16x6xf32> to vector<16x1xf32>
    %117 = vector.broadcast %116 : vector<16x1xf32> to vector<16x256xf32>
    %118 = arith.mulf %117, %93 : vector<16x256xf32>
    %119 = arith.addf %115, %118 : vector<16x256xf32>
    %120 = vector.extract_strided_slice %101 {offsets = [0, 5], sizes = [16, 1], strides = [1, 1]} : vector<16x6xf32> to vector<16x1xf32>
    %121 = vector.broadcast %120 : vector<16x1xf32> to vector<16x256xf32>
    %122 = arith.mulf %121, %99 : vector<16x256xf32>
    %123 = arith.addf %119, %122 : vector<16x256xf32>
    %124 = tpu.concatenate %112, %123 in 0 : vector<16x256xf32>, vector<16x256xf32> -> vector<32x256xf32>
    %c0_46 = arith.constant 0 : index
    %c0_47 = arith.constant 0 : index
    %c0_48 = arith.constant 0 : index
    %125 = vector.load %arg12[%c0_46, %c0_47, %c0_48] : memref<4x32x1xf32, #tpu.memory_space<vmem>>, vector<1x32x1xf32>
    %126 = vector.shape_cast %125 : vector<1x32x1xf32> to vector<32x1xf32>
    %127 = vector.broadcast %126 : vector<32x1xf32> to vector<32x256xf32>
    %128 = arith.addf %124, %127 : vector<32x256xf32>
    %cst_49 = arith.constant 0.000000e+00 : f32
    %129 = vector.broadcast %cst_49 : f32 to vector<32x256xf32>
    %130 = arith.cmpf oge, %128, %129 : vector<32x256xf32>
    %131 = vector.broadcast %48 : f32 to vector<32x256xf32>
    %132 = arith.mulf %131, %128 : vector<32x256xf32>
    %133 = arith.select %130, %128, %132 : vector<32x256xi1>, vector<32x256xf32>
    %c0_50 = arith.constant 0 : index
    %c0_51 = arith.constant 0 : index
    %c0_52 = arith.constant 0 : index
    %134 = vector.load %arg13[%c0_50, %c0_51, %c0_52] : memref<4x32x1xf32, #tpu.memory_space<vmem>>, vector<1x32x1xf32>
    %135 = vector.shape_cast %134 : vector<1x32x1xf32> to vector<32x1xf32>
    %c0_53 = arith.constant 0 : index
    %c0_54 = arith.constant 0 : index
    %c0_55 = arith.constant 0 : index
    %136 = vector.load %arg14[%c0_53, %c0_54, %c0_55] : memref<4x32x1xf32, #tpu.memory_space<vmem>>, vector<1x32x1xf32>
    %137 = vector.shape_cast %136 : vector<1x32x1xf32> to vector<32x1xf32>
    %cst_56 = arith.constant dense<0.000000e+00> : vector<32xf32>
    %138 = vector.multi_reduction <add>, %133, %cst_56 [1] : vector<32x256xf32> to vector<32xf32>
    %139 = vector.shape_cast %138 : vector<32xf32> to vector<32x1xf32>
    %140 = arith.mulf %133, %133 : vector<32x256xf32>
    %cst_57 = arith.constant dense<0.000000e+00> : vector<32xf32>
    %141 = vector.multi_reduction <add>, %140, %cst_57 [1] : vector<32x256xf32> to vector<32xf32>
    %142 = vector.shape_cast %141 : vector<32xf32> to vector<32x1xf32>
    %143 = vector.shape_cast %139 : vector<32x1xf32> to vector<1x32x1xf32>
    %cst_58 = arith.constant dense<0.000000e+00> : vector<1xf32>
    %144 = vector.multi_reduction <add>, %143, %cst_58 [1, 2] : vector<1x32x1xf32> to vector<1xf32>
    %145 = vector.shape_cast %144 : vector<1xf32> to vector<1x1x1xf32>
    %146 = vector.extract %145[0, 0, 0] : f32 from vector<1x1x1xf32>
    %cst_59 = arith.constant 8.192000e+03 : f32
    %147 = arith.divf %146, %cst_59 : f32
    %148 = vector.shape_cast %142 : vector<32x1xf32> to vector<1x32x1xf32>
    %cst_60 = arith.constant dense<0.000000e+00> : vector<1xf32>
    %149 = vector.multi_reduction <add>, %148, %cst_60 [1, 2] : vector<1x32x1xf32> to vector<1xf32>
    %150 = vector.shape_cast %149 : vector<1xf32> to vector<1x1x1xf32>
    %151 = vector.extract %150[0, 0, 0] : f32 from vector<1x1x1xf32>
    %cst_61 = arith.constant 8.192000e+03 : f32
    %152 = arith.divf %151, %cst_61 : f32
    %153 = arith.mulf %147, %147 : f32
    %154 = arith.subf %152, %153 : f32
    %cst_62 = arith.constant 9.99999993E-9 : f32
    %155 = arith.addf %154, %cst_62 : f32
    %156 = math.rsqrt %155 : f32
    %157 = vector.broadcast %156 : f32 to vector<32x1xf32>
    %158 = arith.mulf %157, %135 : vector<32x1xf32>
    %159 = vector.broadcast %158 : vector<32x1xf32> to vector<32x256xf32>
    %160 = arith.mulf %133, %159 : vector<32x256xf32>
    %161 = vector.broadcast %147 : f32 to vector<32x1xf32>
    %162 = arith.mulf %161, %158 : vector<32x1xf32>
    %163 = arith.subf %137, %162 : vector<32x1xf32>
    %164 = vector.broadcast %163 : vector<32x1xf32> to vector<32x256xf32>
    %165 = arith.addf %160, %164 : vector<32x256xf32>
    %c0_63 = arith.constant 0 : index
    %c0_64 = arith.constant 0 : index
    %c0_65 = arith.constant 0 : index
    %166 = vector.load %arg16[%c0_63, %c0_64, %c0_65] : memref<4x16x1xf32, #tpu.memory_space<vmem>>, vector<1x16x1xf32>
    %167 = vector.shape_cast %166 : vector<1x16x1xf32> to vector<16x1xf32>
    %168 = vector.broadcast %167 : vector<16x1xf32> to vector<16x256xf32>
    %169 = arith.addf %46, %168 : vector<16x256xf32>
    %c0_66 = arith.constant 0 : index
    %c0_67 = arith.constant 0 : index
    %c0_68 = arith.constant 0 : index
    %170 = vector.load %arg15[%c0_66, %c0_67, %c0_68] : memref<4x16x32xbf16, #tpu.memory_space<vmem>>, vector<1x16x32xbf16>
    %171 = vector.shape_cast %170 : vector<1x16x32xbf16> to vector<16x32xbf16>
    %172 = arith.truncf %165 : vector<32x256xf32> to vector<32x256xbf16>
    %cst_69 = arith.constant dense<0.000000e+00> : vector<16x256xf32>
    %173 = tpu.matmul %171, %172, %cst_69 {dimension_numbers = #tpu.dot_dimension_numbers<[1], [0], [0], [1], [0, 0, 1, 1], [], []>} : vector<16x32xbf16>, vector<32x256xbf16>, vector<16x256xf32> -> vector<16x256xf32>
    %174 = arith.addf %169, %173 : vector<16x256xf32>
    %c2 = arith.constant 2 : index
    %175 = memref.load %arg1[%c2] : memref<9xf32, #tpu.memory_space<smem>>
    %c3 = arith.constant 3 : index
    %176 = memref.load %arg1[%c3] : memref<9xf32, #tpu.memory_space<smem>>
    %c1_70 = arith.constant 1 : index
    %c0_71 = arith.constant 0 : index
    %c0_72 = arith.constant 0 : index
    %177 = vector.load %arg7[%c1_70, %c0_71, %c0_72] : memref<4x16x16xbf16, #tpu.memory_space<vmem>>, vector<1x16x16xbf16>
    %178 = vector.shape_cast %177 : vector<1x16x16xbf16> to vector<16x16xbf16>
    %179 = arith.truncf %174 : vector<16x256xf32> to vector<16x256xbf16>
    %cst_73 = arith.constant dense<0.000000e+00> : vector<16x256xf32>
    %180 = tpu.matmul %178, %179, %cst_73 {dimension_numbers = #tpu.dot_dimension_numbers<[1], [0], [0], [1], [0, 0, 1, 1], [], []>} : vector<16x16xbf16>, vector<16x256xbf16>, vector<16x256xf32> -> vector<16x256xf32>
    %c1_74 = arith.constant 1 : index
    %c0_75 = arith.constant 0 : index
    %c0_76 = arith.constant 0 : index
    %181 = vector.load %arg8[%c1_74, %c0_75, %c0_76] : memref<4x16x1xf32, #tpu.memory_space<vmem>>, vector<1x16x1xf32>
    %182 = vector.shape_cast %181 : vector<1x16x1xf32> to vector<16x1xf32>
    %183 = vector.broadcast %182 : vector<16x1xf32> to vector<16x256xf32>
    %184 = arith.addf %180, %183 : vector<16x256xf32>
    %cst_77 = arith.constant 0.000000e+00 : f32
    %185 = vector.broadcast %cst_77 : f32 to vector<16x256xf32>
    %186 = arith.cmpf oge, %184, %185 : vector<16x256xf32>
    %187 = vector.broadcast %175 : f32 to vector<16x256xf32>
    %188 = arith.mulf %187, %184 : vector<16x256xf32>
    %189 = arith.select %186, %184, %188 : vector<16x256xi1>, vector<16x256xf32>
    %c1_78 = arith.constant 1 : index
    %c0_79 = arith.constant 0 : index
    %c0_80 = arith.constant 0 : index
    %190 = vector.load %arg9[%c1_78, %c0_79, %c0_80] : memref<4x16x1xf32, #tpu.memory_space<vmem>>, vector<1x16x1xf32>
    %191 = vector.shape_cast %190 : vector<1x16x1xf32> to vector<16x1xf32>
    %c1_81 = arith.constant 1 : index
    %c0_82 = arith.constant 0 : index
    %c0_83 = arith.constant 0 : index
    %192 = vector.load %arg10[%c1_81, %c0_82, %c0_83] : memref<4x16x1xf32, #tpu.memory_space<vmem>>, vector<1x16x1xf32>
    %193 = vector.shape_cast %192 : vector<1x16x1xf32> to vector<16x1xf32>
    %cst_84 = arith.constant dense<0.000000e+00> : vector<16xf32>
    %194 = vector.multi_reduction <add>, %189, %cst_84 [1] : vector<16x256xf32> to vector<16xf32>
    %195 = vector.shape_cast %194 : vector<16xf32> to vector<16x1xf32>
    %196 = arith.mulf %189, %189 : vector<16x256xf32>
    %cst_85 = arith.constant dense<0.000000e+00> : vector<16xf32>
    %197 = vector.multi_reduction <add>, %196, %cst_85 [1] : vector<16x256xf32> to vector<16xf32>
    %198 = vector.shape_cast %197 : vector<16xf32> to vector<16x1xf32>
    %199 = vector.shape_cast %195 : vector<16x1xf32> to vector<1x16x1xf32>
    %cst_86 = arith.constant dense<0.000000e+00> : vector<1xf32>
    %200 = vector.multi_reduction <add>, %199, %cst_86 [1, 2] : vector<1x16x1xf32> to vector<1xf32>
    %201 = vector.shape_cast %200 : vector<1xf32> to vector<1x1x1xf32>
    %202 = vector.extract %201[0, 0, 0] : f32 from vector<1x1x1xf32>
    %cst_87 = arith.constant 4.096000e+03 : f32
    %203 = arith.divf %202, %cst_87 : f32
    %204 = vector.shape_cast %198 : vector<16x1xf32> to vector<1x16x1xf32>
    %cst_88 = arith.constant dense<0.000000e+00> : vector<1xf32>
    %205 = vector.multi_reduction <add>, %204, %cst_88 [1, 2] : vector<1x16x1xf32> to vector<1xf32>
    %206 = vector.shape_cast %205 : vector<1xf32> to vector<1x1x1xf32>
    %207 = vector.extract %206[0, 0, 0] : f32 from vector<1x1x1xf32>
    %cst_89 = arith.constant 4.096000e+03 : f32
    %208 = arith.divf %207, %cst_89 : f32
    %209 = arith.mulf %203, %203 : f32
    %210 = arith.subf %208, %209 : f32
    %cst_90 = arith.constant 9.99999993E-9 : f32
    %211 = arith.addf %210, %cst_90 : f32
    %212 = math.rsqrt %211 : f32
    %213 = vector.broadcast %212 : f32 to vector<16x1xf32>
    %214 = arith.mulf %213, %191 : vector<16x1xf32>
    %215 = vector.broadcast %214 : vector<16x1xf32> to vector<16x256xf32>
    %216 = arith.mulf %189, %215 : vector<16x256xf32>
    %217 = vector.broadcast %203 : f32 to vector<16x1xf32>
    %218 = arith.mulf %217, %214 : vector<16x1xf32>
    %219 = arith.subf %193, %218 : vector<16x1xf32>
    %220 = vector.broadcast %219 : vector<16x1xf32> to vector<16x256xf32>
    %221 = arith.addf %216, %220 : vector<16x256xf32>
    %c2_i32_91 = arith.constant 2 : i32
    %222 = tpu.dynamic_rotate %221 by %c2_i32_91 dim 1 : vector<16x256xf32>, i32 -> vector<16x256xf32>
    %cst_92 = arith.constant 0.000000e+00 : f32
    %223 = vector.broadcast %cst_92 : f32 to vector<16x256xf32>
    %224 = arith.select %8, %222, %223 : vector<16x256xi1>, vector<16x256xf32>
    %c254_i32_93 = arith.constant 254 : i32
    %225 = tpu.dynamic_rotate %221 by %c254_i32_93 dim 1 : vector<16x256xf32>, i32 -> vector<16x256xf32>
    %cst_94 = arith.constant 0.000000e+00 : f32
    %226 = vector.broadcast %cst_94 : f32 to vector<16x256xf32>
    %227 = arith.select %10, %225, %226 : vector<16x256xi1>, vector<16x256xf32>
    %c1_95 = arith.constant 1 : index
    %c0_96 = arith.constant 0 : index
    %c0_97 = arith.constant 0 : index
    %228 = vector.load %arg11[%c1_95, %c0_96, %c0_97] : memref<4x16x6xf32, #tpu.memory_space<vmem>>, vector<1x16x6xf32>
    %229 = vector.shape_cast %228 : vector<1x16x6xf32> to vector<16x6xf32>
    %230 = vector.extract_strided_slice %229 {offsets = [0, 0], sizes = [16, 1], strides = [1, 1]} : vector<16x6xf32> to vector<16x1xf32>
    %231 = vector.broadcast %230 : vector<16x1xf32> to vector<16x256xf32>
    %232 = arith.mulf %231, %224 : vector<16x256xf32>
    %233 = vector.extract_strided_slice %229 {offsets = [0, 1], sizes = [16, 1], strides = [1, 1]} : vector<16x6xf32> to vector<16x1xf32>
    %234 = vector.broadcast %233 : vector<16x1xf32> to vector<16x256xf32>
    %235 = arith.mulf %234, %221 : vector<16x256xf32>
    %236 = arith.addf %232, %235 : vector<16x256xf32>
    %237 = vector.extract_strided_slice %229 {offsets = [0, 2], sizes = [16, 1], strides = [1, 1]} : vector<16x6xf32> to vector<16x1xf32>
    %238 = vector.broadcast %237 : vector<16x1xf32> to vector<16x256xf32>
    %239 = arith.mulf %238, %227 : vector<16x256xf32>
    %240 = arith.addf %236, %239 : vector<16x256xf32>
    %241 = vector.extract_strided_slice %229 {offsets = [0, 3], sizes = [16, 1], strides = [1, 1]} : vector<16x6xf32> to vector<16x1xf32>
    %242 = vector.broadcast %241 : vector<16x1xf32> to vector<16x256xf32>
    %243 = arith.mulf %242, %224 : vector<16x256xf32>
    %244 = vector.extract_strided_slice %229 {offsets = [0, 4], sizes = [16, 1], strides = [1, 1]} : vector<16x6xf32> to vector<16x1xf32>
    %245 = vector.broadcast %244 : vector<16x1xf32> to vector<16x256xf32>
    %246 = arith.mulf %245, %221 : vector<16x256xf32>
    %247 = arith.addf %243, %246 : vector<16x256xf32>
    %248 = vector.extract_strided_slice %229 {offsets = [0, 5], sizes = [16, 1], strides = [1, 1]} : vector<16x6xf32> to vector<16x1xf32>
    %249 = vector.broadcast %248 : vector<16x1xf32> to vector<16x256xf32>
    %250 = arith.mulf %249, %227 : vector<16x256xf32>
    %251 = arith.addf %247, %250 : vector<16x256xf32>
    %252 = tpu.concatenate %240, %251 in 0 : vector<16x256xf32>, vector<16x256xf32> -> vector<32x256xf32>
    %c1_98 = arith.constant 1 : index
    %c0_99 = arith.constant 0 : index
    %c0_100 = arith.constant 0 : index
    %253 = vector.load %arg12[%c1_98, %c0_99, %c0_100] : memref<4x32x1xf32, #tpu.memory_space<vmem>>, vector<1x32x1xf32>
    %254 = vector.shape_cast %253 : vector<1x32x1xf32> to vector<32x1xf32>
    %255 = vector.broadcast %254 : vector<32x1xf32> to vector<32x256xf32>
    %256 = arith.addf %252, %255 : vector<32x256xf32>
    %cst_101 = arith.constant 0.000000e+00 : f32
    %257 = vector.broadcast %cst_101 : f32 to vector<32x256xf32>
    %258 = arith.cmpf oge, %256, %257 : vector<32x256xf32>
    %259 = vector.broadcast %176 : f32 to vector<32x256xf32>
    %260 = arith.mulf %259, %256 : vector<32x256xf32>
    %261 = arith.select %258, %256, %260 : vector<32x256xi1>, vector<32x256xf32>
    %c1_102 = arith.constant 1 : index
    %c0_103 = arith.constant 0 : index
    %c0_104 = arith.constant 0 : index
    %262 = vector.load %arg13[%c1_102, %c0_103, %c0_104] : memref<4x32x1xf32, #tpu.memory_space<vmem>>, vector<1x32x1xf32>
    %263 = vector.shape_cast %262 : vector<1x32x1xf32> to vector<32x1xf32>
    %c1_105 = arith.constant 1 : index
    %c0_106 = arith.constant 0 : index
    %c0_107 = arith.constant 0 : index
    %264 = vector.load %arg14[%c1_105, %c0_106, %c0_107] : memref<4x32x1xf32, #tpu.memory_space<vmem>>, vector<1x32x1xf32>
    %265 = vector.shape_cast %264 : vector<1x32x1xf32> to vector<32x1xf32>
    %cst_108 = arith.constant dense<0.000000e+00> : vector<32xf32>
    %266 = vector.multi_reduction <add>, %261, %cst_108 [1] : vector<32x256xf32> to vector<32xf32>
    %267 = vector.shape_cast %266 : vector<32xf32> to vector<32x1xf32>
    %268 = arith.mulf %261, %261 : vector<32x256xf32>
    %cst_109 = arith.constant dense<0.000000e+00> : vector<32xf32>
    %269 = vector.multi_reduction <add>, %268, %cst_109 [1] : vector<32x256xf32> to vector<32xf32>
    %270 = vector.shape_cast %269 : vector<32xf32> to vector<32x1xf32>
    %271 = vector.shape_cast %267 : vector<32x1xf32> to vector<1x32x1xf32>
    %cst_110 = arith.constant dense<0.000000e+00> : vector<1xf32>
    %272 = vector.multi_reduction <add>, %271, %cst_110 [1, 2] : vector<1x32x1xf32> to vector<1xf32>
    %273 = vector.shape_cast %272 : vector<1xf32> to vector<1x1x1xf32>
    %274 = vector.extract %273[0, 0, 0] : f32 from vector<1x1x1xf32>
    %cst_111 = arith.constant 8.192000e+03 : f32
    %275 = arith.divf %274, %cst_111 : f32
    %276 = vector.shape_cast %270 : vector<32x1xf32> to vector<1x32x1xf32>
    %cst_112 = arith.constant dense<0.000000e+00> : vector<1xf32>
    %277 = vector.multi_reduction <add>, %276, %cst_112 [1, 2] : vector<1x32x1xf32> to vector<1xf32>
    %278 = vector.shape_cast %277 : vector<1xf32> to vector<1x1x1xf32>
    %279 = vector.extract %278[0, 0, 0] : f32 from vector<1x1x1xf32>
    %cst_113 = arith.constant 8.192000e+03 : f32
    %280 = arith.divf %279, %cst_113 : f32
    %281 = arith.mulf %275, %275 : f32
    %282 = arith.subf %280, %281 : f32
    %cst_114 = arith.constant 9.99999993E-9 : f32
    %283 = arith.addf %282, %cst_114 : f32
    %284 = math.rsqrt %283 : f32
    %285 = vector.broadcast %284 : f32 to vector<32x1xf32>
    %286 = arith.mulf %285, %263 : vector<32x1xf32>
    %287 = vector.broadcast %286 : vector<32x1xf32> to vector<32x256xf32>
    %288 = arith.mulf %261, %287 : vector<32x256xf32>
    %289 = vector.broadcast %275 : f32 to vector<32x1xf32>
    %290 = arith.mulf %289, %286 : vector<32x1xf32>
    %291 = arith.subf %265, %290 : vector<32x1xf32>
    %292 = vector.broadcast %291 : vector<32x1xf32> to vector<32x256xf32>
    %293 = arith.addf %288, %292 : vector<32x256xf32>
    %c1_115 = arith.constant 1 : index
    %c0_116 = arith.constant 0 : index
    %c0_117 = arith.constant 0 : index
    %294 = vector.load %arg16[%c1_115, %c0_116, %c0_117] : memref<4x16x1xf32, #tpu.memory_space<vmem>>, vector<1x16x1xf32>
    %295 = vector.shape_cast %294 : vector<1x16x1xf32> to vector<16x1xf32>
    %296 = vector.broadcast %295 : vector<16x1xf32> to vector<16x256xf32>
    %297 = arith.addf %174, %296 : vector<16x256xf32>
    %c1_118 = arith.constant 1 : index
    %c0_119 = arith.constant 0 : index
    %c0_120 = arith.constant 0 : index
    %298 = vector.load %arg15[%c1_118, %c0_119, %c0_120] : memref<4x16x32xbf16, #tpu.memory_space<vmem>>, vector<1x16x32xbf16>
    %299 = vector.shape_cast %298 : vector<1x16x32xbf16> to vector<16x32xbf16>
    %300 = arith.truncf %293 : vector<32x256xf32> to vector<32x256xbf16>
    %cst_121 = arith.constant dense<0.000000e+00> : vector<16x256xf32>
    %301 = tpu.matmul %299, %300, %cst_121 {dimension_numbers = #tpu.dot_dimension_numbers<[1], [0], [0], [1], [0, 0, 1, 1], [], []>} : vector<16x32xbf16>, vector<32x256xbf16>, vector<16x256xf32> -> vector<16x256xf32>
    %302 = arith.addf %297, %301 : vector<16x256xf32>
    %c4 = arith.constant 4 : index
    %303 = memref.load %arg1[%c4] : memref<9xf32, #tpu.memory_space<smem>>
    %c5 = arith.constant 5 : index
    %304 = memref.load %arg1[%c5] : memref<9xf32, #tpu.memory_space<smem>>
    %c2_122 = arith.constant 2 : index
    %c0_123 = arith.constant 0 : index
    %c0_124 = arith.constant 0 : index
    %305 = vector.load %arg7[%c2_122, %c0_123, %c0_124] : memref<4x16x16xbf16, #tpu.memory_space<vmem>>, vector<1x16x16xbf16>
    %306 = vector.shape_cast %305 : vector<1x16x16xbf16> to vector<16x16xbf16>
    %307 = arith.truncf %302 : vector<16x256xf32> to vector<16x256xbf16>
    %cst_125 = arith.constant dense<0.000000e+00> : vector<16x256xf32>
    %308 = tpu.matmul %306, %307, %cst_125 {dimension_numbers = #tpu.dot_dimension_numbers<[1], [0], [0], [1], [0, 0, 1, 1], [], []>} : vector<16x16xbf16>, vector<16x256xbf16>, vector<16x256xf32> -> vector<16x256xf32>
    %c2_126 = arith.constant 2 : index
    %c0_127 = arith.constant 0 : index
    %c0_128 = arith.constant 0 : index
    %309 = vector.load %arg8[%c2_126, %c0_127, %c0_128] : memref<4x16x1xf32, #tpu.memory_space<vmem>>, vector<1x16x1xf32>
    %310 = vector.shape_cast %309 : vector<1x16x1xf32> to vector<16x1xf32>
    %311 = vector.broadcast %310 : vector<16x1xf32> to vector<16x256xf32>
    %312 = arith.addf %308, %311 : vector<16x256xf32>
    %cst_129 = arith.constant 0.000000e+00 : f32
    %313 = vector.broadcast %cst_129 : f32 to vector<16x256xf32>
    %314 = arith.cmpf oge, %312, %313 : vector<16x256xf32>
    %315 = vector.broadcast %303 : f32 to vector<16x256xf32>
    %316 = arith.mulf %315, %312 : vector<16x256xf32>
    %317 = arith.select %314, %312, %316 : vector<16x256xi1>, vector<16x256xf32>
    %c2_130 = arith.constant 2 : index
    %c0_131 = arith.constant 0 : index
    %c0_132 = arith.constant 0 : index
    %318 = vector.load %arg9[%c2_130, %c0_131, %c0_132] : memref<4x16x1xf32, #tpu.memory_space<vmem>>, vector<1x16x1xf32>
    %319 = vector.shape_cast %318 : vector<1x16x1xf32> to vector<16x1xf32>
    %c2_133 = arith.constant 2 : index
    %c0_134 = arith.constant 0 : index
    %c0_135 = arith.constant 0 : index
    %320 = vector.load %arg10[%c2_133, %c0_134, %c0_135] : memref<4x16x1xf32, #tpu.memory_space<vmem>>, vector<1x16x1xf32>
    %321 = vector.shape_cast %320 : vector<1x16x1xf32> to vector<16x1xf32>
    %cst_136 = arith.constant dense<0.000000e+00> : vector<16xf32>
    %322 = vector.multi_reduction <add>, %317, %cst_136 [1] : vector<16x256xf32> to vector<16xf32>
    %323 = vector.shape_cast %322 : vector<16xf32> to vector<16x1xf32>
    %324 = arith.mulf %317, %317 : vector<16x256xf32>
    %cst_137 = arith.constant dense<0.000000e+00> : vector<16xf32>
    %325 = vector.multi_reduction <add>, %324, %cst_137 [1] : vector<16x256xf32> to vector<16xf32>
    %326 = vector.shape_cast %325 : vector<16xf32> to vector<16x1xf32>
    %327 = vector.shape_cast %323 : vector<16x1xf32> to vector<1x16x1xf32>
    %cst_138 = arith.constant dense<0.000000e+00> : vector<1xf32>
    %328 = vector.multi_reduction <add>, %327, %cst_138 [1, 2] : vector<1x16x1xf32> to vector<1xf32>
    %329 = vector.shape_cast %328 : vector<1xf32> to vector<1x1x1xf32>
    %330 = vector.extract %329[0, 0, 0] : f32 from vector<1x1x1xf32>
    %cst_139 = arith.constant 4.096000e+03 : f32
    %331 = arith.divf %330, %cst_139 : f32
    %332 = vector.shape_cast %326 : vector<16x1xf32> to vector<1x16x1xf32>
    %cst_140 = arith.constant dense<0.000000e+00> : vector<1xf32>
    %333 = vector.multi_reduction <add>, %332, %cst_140 [1, 2] : vector<1x16x1xf32> to vector<1xf32>
    %334 = vector.shape_cast %333 : vector<1xf32> to vector<1x1x1xf32>
    %335 = vector.extract %334[0, 0, 0] : f32 from vector<1x1x1xf32>
    %cst_141 = arith.constant 4.096000e+03 : f32
    %336 = arith.divf %335, %cst_141 : f32
    %337 = arith.mulf %331, %331 : f32
    %338 = arith.subf %336, %337 : f32
    %cst_142 = arith.constant 9.99999993E-9 : f32
    %339 = arith.addf %338, %cst_142 : f32
    %340 = math.rsqrt %339 : f32
    %341 = vector.broadcast %340 : f32 to vector<16x1xf32>
    %342 = arith.mulf %341, %319 : vector<16x1xf32>
    %343 = vector.broadcast %342 : vector<16x1xf32> to vector<16x256xf32>
    %344 = arith.mulf %317, %343 : vector<16x256xf32>
    %345 = vector.broadcast %331 : f32 to vector<16x1xf32>
    %346 = arith.mulf %345, %342 : vector<16x1xf32>
    %347 = arith.subf %321, %346 : vector<16x1xf32>
    %348 = vector.broadcast %347 : vector<16x1xf32> to vector<16x256xf32>
    %349 = arith.addf %344, %348 : vector<16x256xf32>
    %c1_i32_143 = arith.constant 1 : i32
    %350 = tpu.dynamic_rotate %349 by %c1_i32_143 dim 1 : vector<16x256xf32>, i32 -> vector<16x256xf32>
    %cst_144 = arith.constant 0.000000e+00 : f32
    %351 = vector.broadcast %cst_144 : f32 to vector<16x256xf32>
    %352 = arith.select %4, %350, %351 : vector<16x256xi1>, vector<16x256xf32>
    %c255_i32_145 = arith.constant 255 : i32
    %353 = tpu.dynamic_rotate %349 by %c255_i32_145 dim 1 : vector<16x256xf32>, i32 -> vector<16x256xf32>
    %cst_146 = arith.constant 0.000000e+00 : f32
    %354 = vector.broadcast %cst_146 : f32 to vector<16x256xf32>
    %355 = arith.select %6, %353, %354 : vector<16x256xi1>, vector<16x256xf32>
    %c2_147 = arith.constant 2 : index
    %c0_148 = arith.constant 0 : index
    %c0_149 = arith.constant 0 : index
    %356 = vector.load %arg11[%c2_147, %c0_148, %c0_149] : memref<4x16x6xf32, #tpu.memory_space<vmem>>, vector<1x16x6xf32>
    %357 = vector.shape_cast %356 : vector<1x16x6xf32> to vector<16x6xf32>
    %358 = vector.extract_strided_slice %357 {offsets = [0, 0], sizes = [16, 1], strides = [1, 1]} : vector<16x6xf32> to vector<16x1xf32>
    %359 = vector.broadcast %358 : vector<16x1xf32> to vector<16x256xf32>
    %360 = arith.mulf %359, %352 : vector<16x256xf32>
    %361 = vector.extract_strided_slice %357 {offsets = [0, 1], sizes = [16, 1], strides = [1, 1]} : vector<16x6xf32> to vector<16x1xf32>
    %362 = vector.broadcast %361 : vector<16x1xf32> to vector<16x256xf32>
    %363 = arith.mulf %362, %349 : vector<16x256xf32>
    %364 = arith.addf %360, %363 : vector<16x256xf32>
    %365 = vector.extract_strided_slice %357 {offsets = [0, 2], sizes = [16, 1], strides = [1, 1]} : vector<16x6xf32> to vector<16x1xf32>
    %366 = vector.broadcast %365 : vector<16x1xf32> to vector<16x256xf32>
    %367 = arith.mulf %366, %355 : vector<16x256xf32>
    %368 = arith.addf %364, %367 : vector<16x256xf32>
    %369 = vector.extract_strided_slice %357 {offsets = [0, 3], sizes = [16, 1], strides = [1, 1]} : vector<16x6xf32> to vector<16x1xf32>
    %370 = vector.broadcast %369 : vector<16x1xf32> to vector<16x256xf32>
    %371 = arith.mulf %370, %352 : vector<16x256xf32>
    %372 = vector.extract_strided_slice %357 {offsets = [0, 4], sizes = [16, 1], strides = [1, 1]} : vector<16x6xf32> to vector<16x1xf32>
    %373 = vector.broadcast %372 : vector<16x1xf32> to vector<16x256xf32>
    %374 = arith.mulf %373, %349 : vector<16x256xf32>
    %375 = arith.addf %371, %374 : vector<16x256xf32>
    %376 = vector.extract_strided_slice %357 {offsets = [0, 5], sizes = [16, 1], strides = [1, 1]} : vector<16x6xf32> to vector<16x1xf32>
    %377 = vector.broadcast %376 : vector<16x1xf32> to vector<16x256xf32>
    %378 = arith.mulf %377, %355 : vector<16x256xf32>
    %379 = arith.addf %375, %378 : vector<16x256xf32>
    %380 = tpu.concatenate %368, %379 in 0 : vector<16x256xf32>, vector<16x256xf32> -> vector<32x256xf32>
    %c2_150 = arith.constant 2 : index
    %c0_151 = arith.constant 0 : index
    %c0_152 = arith.constant 0 : index
    %381 = vector.load %arg12[%c2_150, %c0_151, %c0_152] : memref<4x32x1xf32, #tpu.memory_space<vmem>>, vector<1x32x1xf32>
    %382 = vector.shape_cast %381 : vector<1x32x1xf32> to vector<32x1xf32>
    %383 = vector.broadcast %382 : vector<32x1xf32> to vector<32x256xf32>
    %384 = arith.addf %380, %383 : vector<32x256xf32>
    %cst_153 = arith.constant 0.000000e+00 : f32
    %385 = vector.broadcast %cst_153 : f32 to vector<32x256xf32>
    %386 = arith.cmpf oge, %384, %385 : vector<32x256xf32>
    %387 = vector.broadcast %304 : f32 to vector<32x256xf32>
    %388 = arith.mulf %387, %384 : vector<32x256xf32>
    %389 = arith.select %386, %384, %388 : vector<32x256xi1>, vector<32x256xf32>
    %c2_154 = arith.constant 2 : index
    %c0_155 = arith.constant 0 : index
    %c0_156 = arith.constant 0 : index
    %390 = vector.load %arg13[%c2_154, %c0_155, %c0_156] : memref<4x32x1xf32, #tpu.memory_space<vmem>>, vector<1x32x1xf32>
    %391 = vector.shape_cast %390 : vector<1x32x1xf32> to vector<32x1xf32>
    %c2_157 = arith.constant 2 : index
    %c0_158 = arith.constant 0 : index
    %c0_159 = arith.constant 0 : index
    %392 = vector.load %arg14[%c2_157, %c0_158, %c0_159] : memref<4x32x1xf32, #tpu.memory_space<vmem>>, vector<1x32x1xf32>
    %393 = vector.shape_cast %392 : vector<1x32x1xf32> to vector<32x1xf32>
    %cst_160 = arith.constant dense<0.000000e+00> : vector<32xf32>
    %394 = vector.multi_reduction <add>, %389, %cst_160 [1] : vector<32x256xf32> to vector<32xf32>
    %395 = vector.shape_cast %394 : vector<32xf32> to vector<32x1xf32>
    %396 = arith.mulf %389, %389 : vector<32x256xf32>
    %cst_161 = arith.constant dense<0.000000e+00> : vector<32xf32>
    %397 = vector.multi_reduction <add>, %396, %cst_161 [1] : vector<32x256xf32> to vector<32xf32>
    %398 = vector.shape_cast %397 : vector<32xf32> to vector<32x1xf32>
    %399 = vector.shape_cast %395 : vector<32x1xf32> to vector<1x32x1xf32>
    %cst_162 = arith.constant dense<0.000000e+00> : vector<1xf32>
    %400 = vector.multi_reduction <add>, %399, %cst_162 [1, 2] : vector<1x32x1xf32> to vector<1xf32>
    %401 = vector.shape_cast %400 : vector<1xf32> to vector<1x1x1xf32>
    %402 = vector.extract %401[0, 0, 0] : f32 from vector<1x1x1xf32>
    %cst_163 = arith.constant 8.192000e+03 : f32
    %403 = arith.divf %402, %cst_163 : f32
    %404 = vector.shape_cast %398 : vector<32x1xf32> to vector<1x32x1xf32>
    %cst_164 = arith.constant dense<0.000000e+00> : vector<1xf32>
    %405 = vector.multi_reduction <add>, %404, %cst_164 [1, 2] : vector<1x32x1xf32> to vector<1xf32>
    %406 = vector.shape_cast %405 : vector<1xf32> to vector<1x1x1xf32>
    %407 = vector.extract %406[0, 0, 0] : f32 from vector<1x1x1xf32>
    %cst_165 = arith.constant 8.192000e+03 : f32
    %408 = arith.divf %407, %cst_165 : f32
    %409 = arith.mulf %403, %403 : f32
    %410 = arith.subf %408, %409 : f32
    %cst_166 = arith.constant 9.99999993E-9 : f32
    %411 = arith.addf %410, %cst_166 : f32
    %412 = math.rsqrt %411 : f32
    %413 = vector.broadcast %412 : f32 to vector<32x1xf32>
    %414 = arith.mulf %413, %391 : vector<32x1xf32>
    %415 = vector.broadcast %414 : vector<32x1xf32> to vector<32x256xf32>
    %416 = arith.mulf %389, %415 : vector<32x256xf32>
    %417 = vector.broadcast %403 : f32 to vector<32x1xf32>
    %418 = arith.mulf %417, %414 : vector<32x1xf32>
    %419 = arith.subf %393, %418 : vector<32x1xf32>
    %420 = vector.broadcast %419 : vector<32x1xf32> to vector<32x256xf32>
    %421 = arith.addf %416, %420 : vector<32x256xf32>
    %c2_167 = arith.constant 2 : index
    %c0_168 = arith.constant 0 : index
    %c0_169 = arith.constant 0 : index
    %422 = vector.load %arg16[%c2_167, %c0_168, %c0_169] : memref<4x16x1xf32, #tpu.memory_space<vmem>>, vector<1x16x1xf32>
    %423 = vector.shape_cast %422 : vector<1x16x1xf32> to vector<16x1xf32>
    %424 = vector.broadcast %423 : vector<16x1xf32> to vector<16x256xf32>
    %425 = arith.addf %302, %424 : vector<16x256xf32>
    %c2_170 = arith.constant 2 : index
    %c0_171 = arith.constant 0 : index
    %c0_172 = arith.constant 0 : index
    %426 = vector.load %arg15[%c2_170, %c0_171, %c0_172] : memref<4x16x32xbf16, #tpu.memory_space<vmem>>, vector<1x16x32xbf16>
    %427 = vector.shape_cast %426 : vector<1x16x32xbf16> to vector<16x32xbf16>
    %428 = arith.truncf %421 : vector<32x256xf32> to vector<32x256xbf16>
    %cst_173 = arith.constant dense<0.000000e+00> : vector<16x256xf32>
    %429 = tpu.matmul %427, %428, %cst_173 {dimension_numbers = #tpu.dot_dimension_numbers<[1], [0], [0], [1], [0, 0, 1, 1], [], []>} : vector<16x32xbf16>, vector<32x256xbf16>, vector<16x256xf32> -> vector<16x256xf32>
    %430 = arith.addf %425, %429 : vector<16x256xf32>
    %c6 = arith.constant 6 : index
    %431 = memref.load %arg1[%c6] : memref<9xf32, #tpu.memory_space<smem>>
    %c7 = arith.constant 7 : index
    %432 = memref.load %arg1[%c7] : memref<9xf32, #tpu.memory_space<smem>>
    %c3_174 = arith.constant 3 : index
    %c0_175 = arith.constant 0 : index
    %c0_176 = arith.constant 0 : index
    %433 = vector.load %arg7[%c3_174, %c0_175, %c0_176] : memref<4x16x16xbf16, #tpu.memory_space<vmem>>, vector<1x16x16xbf16>
    %434 = vector.shape_cast %433 : vector<1x16x16xbf16> to vector<16x16xbf16>
    %435 = arith.truncf %430 : vector<16x256xf32> to vector<16x256xbf16>
    %cst_177 = arith.constant dense<0.000000e+00> : vector<16x256xf32>
    %436 = tpu.matmul %434, %435, %cst_177 {dimension_numbers = #tpu.dot_dimension_numbers<[1], [0], [0], [1], [0, 0, 1, 1], [], []>} : vector<16x16xbf16>, vector<16x256xbf16>, vector<16x256xf32> -> vector<16x256xf32>
    %c3_178 = arith.constant 3 : index
    %c0_179 = arith.constant 0 : index
    %c0_180 = arith.constant 0 : index
    %437 = vector.load %arg8[%c3_178, %c0_179, %c0_180] : memref<4x16x1xf32, #tpu.memory_space<vmem>>, vector<1x16x1xf32>
    %438 = vector.shape_cast %437 : vector<1x16x1xf32> to vector<16x1xf32>
    %439 = vector.broadcast %438 : vector<16x1xf32> to vector<16x256xf32>
    %440 = arith.addf %436, %439 : vector<16x256xf32>
    %cst_181 = arith.constant 0.000000e+00 : f32
    %441 = vector.broadcast %cst_181 : f32 to vector<16x256xf32>
    %442 = arith.cmpf oge, %440, %441 : vector<16x256xf32>
    %443 = vector.broadcast %431 : f32 to vector<16x256xf32>
    %444 = arith.mulf %443, %440 : vector<16x256xf32>
    %445 = arith.select %442, %440, %444 : vector<16x256xi1>, vector<16x256xf32>
    %c3_182 = arith.constant 3 : index
    %c0_183 = arith.constant 0 : index
    %c0_184 = arith.constant 0 : index
    %446 = vector.load %arg9[%c3_182, %c0_183, %c0_184] : memref<4x16x1xf32, #tpu.memory_space<vmem>>, vector<1x16x1xf32>
    %447 = vector.shape_cast %446 : vector<1x16x1xf32> to vector<16x1xf32>
    %c3_185 = arith.constant 3 : index
    %c0_186 = arith.constant 0 : index
    %c0_187 = arith.constant 0 : index
    %448 = vector.load %arg10[%c3_185, %c0_186, %c0_187] : memref<4x16x1xf32, #tpu.memory_space<vmem>>, vector<1x16x1xf32>
    %449 = vector.shape_cast %448 : vector<1x16x1xf32> to vector<16x1xf32>
    %cst_188 = arith.constant dense<0.000000e+00> : vector<16xf32>
    %450 = vector.multi_reduction <add>, %445, %cst_188 [1] : vector<16x256xf32> to vector<16xf32>
    %451 = vector.shape_cast %450 : vector<16xf32> to vector<16x1xf32>
    %452 = arith.mulf %445, %445 : vector<16x256xf32>
    %cst_189 = arith.constant dense<0.000000e+00> : vector<16xf32>
    %453 = vector.multi_reduction <add>, %452, %cst_189 [1] : vector<16x256xf32> to vector<16xf32>
    %454 = vector.shape_cast %453 : vector<16xf32> to vector<16x1xf32>
    %455 = vector.shape_cast %451 : vector<16x1xf32> to vector<1x16x1xf32>
    %cst_190 = arith.constant dense<0.000000e+00> : vector<1xf32>
    %456 = vector.multi_reduction <add>, %455, %cst_190 [1, 2] : vector<1x16x1xf32> to vector<1xf32>
    %457 = vector.shape_cast %456 : vector<1xf32> to vector<1x1x1xf32>
    %458 = vector.extract %457[0, 0, 0] : f32 from vector<1x1x1xf32>
    %cst_191 = arith.constant 4.096000e+03 : f32
    %459 = arith.divf %458, %cst_191 : f32
    %460 = vector.shape_cast %454 : vector<16x1xf32> to vector<1x16x1xf32>
    %cst_192 = arith.constant dense<0.000000e+00> : vector<1xf32>
    %461 = vector.multi_reduction <add>, %460, %cst_192 [1, 2] : vector<1x16x1xf32> to vector<1xf32>
    %462 = vector.shape_cast %461 : vector<1xf32> to vector<1x1x1xf32>
    %463 = vector.extract %462[0, 0, 0] : f32 from vector<1x1x1xf32>
    %cst_193 = arith.constant 4.096000e+03 : f32
    %464 = arith.divf %463, %cst_193 : f32
    %465 = arith.mulf %459, %459 : f32
    %466 = arith.subf %464, %465 : f32
    %cst_194 = arith.constant 9.99999993E-9 : f32
    %467 = arith.addf %466, %cst_194 : f32
    %468 = math.rsqrt %467 : f32
    %469 = vector.broadcast %468 : f32 to vector<16x1xf32>
    %470 = arith.mulf %469, %447 : vector<16x1xf32>
    %471 = vector.broadcast %470 : vector<16x1xf32> to vector<16x256xf32>
    %472 = arith.mulf %445, %471 : vector<16x256xf32>
    %473 = vector.broadcast %459 : f32 to vector<16x1xf32>
    %474 = arith.mulf %473, %470 : vector<16x1xf32>
    %475 = arith.subf %449, %474 : vector<16x1xf32>
    %476 = vector.broadcast %475 : vector<16x1xf32> to vector<16x256xf32>
    %477 = arith.addf %472, %476 : vector<16x256xf32>
    %c2_i32_195 = arith.constant 2 : i32
    %478 = tpu.dynamic_rotate %477 by %c2_i32_195 dim 1 : vector<16x256xf32>, i32 -> vector<16x256xf32>
    %cst_196 = arith.constant 0.000000e+00 : f32
    %479 = vector.broadcast %cst_196 : f32 to vector<16x256xf32>
    %480 = arith.select %8, %478, %479 : vector<16x256xi1>, vector<16x256xf32>
    %c254_i32_197 = arith.constant 254 : i32
    %481 = tpu.dynamic_rotate %477 by %c254_i32_197 dim 1 : vector<16x256xf32>, i32 -> vector<16x256xf32>
    %cst_198 = arith.constant 0.000000e+00 : f32
    %482 = vector.broadcast %cst_198 : f32 to vector<16x256xf32>
    %483 = arith.select %10, %481, %482 : vector<16x256xi1>, vector<16x256xf32>
    %c3_199 = arith.constant 3 : index
    %c0_200 = arith.constant 0 : index
    %c0_201 = arith.constant 0 : index
    %484 = vector.load %arg11[%c3_199, %c0_200, %c0_201] : memref<4x16x6xf32, #tpu.memory_space<vmem>>, vector<1x16x6xf32>
    %485 = vector.shape_cast %484 : vector<1x16x6xf32> to vector<16x6xf32>
    %486 = vector.extract_strided_slice %485 {offsets = [0, 0], sizes = [16, 1], strides = [1, 1]} : vector<16x6xf32> to vector<16x1xf32>
    %487 = vector.broadcast %486 : vector<16x1xf32> to vector<16x256xf32>
    %488 = arith.mulf %487, %480 : vector<16x256xf32>
    %489 = vector.extract_strided_slice %485 {offsets = [0, 1], sizes = [16, 1], strides = [1, 1]} : vector<16x6xf32> to vector<16x1xf32>
    %490 = vector.broadcast %489 : vector<16x1xf32> to vector<16x256xf32>
    %491 = arith.mulf %490, %477 : vector<16x256xf32>
    %492 = arith.addf %488, %491 : vector<16x256xf32>
    %493 = vector.extract_strided_slice %485 {offsets = [0, 2], sizes = [16, 1], strides = [1, 1]} : vector<16x6xf32> to vector<16x1xf32>
    %494 = vector.broadcast %493 : vector<16x1xf32> to vector<16x256xf32>
    %495 = arith.mulf %494, %483 : vector<16x256xf32>
    %496 = arith.addf %492, %495 : vector<16x256xf32>
    %497 = vector.extract_strided_slice %485 {offsets = [0, 3], sizes = [16, 1], strides = [1, 1]} : vector<16x6xf32> to vector<16x1xf32>
    %498 = vector.broadcast %497 : vector<16x1xf32> to vector<16x256xf32>
    %499 = arith.mulf %498, %480 : vector<16x256xf32>
    %500 = vector.extract_strided_slice %485 {offsets = [0, 4], sizes = [16, 1], strides = [1, 1]} : vector<16x6xf32> to vector<16x1xf32>
    %501 = vector.broadcast %500 : vector<16x1xf32> to vector<16x256xf32>
    %502 = arith.mulf %501, %477 : vector<16x256xf32>
    %503 = arith.addf %499, %502 : vector<16x256xf32>
    %504 = vector.extract_strided_slice %485 {offsets = [0, 5], sizes = [16, 1], strides = [1, 1]} : vector<16x6xf32> to vector<16x1xf32>
    %505 = vector.broadcast %504 : vector<16x1xf32> to vector<16x256xf32>
    %506 = arith.mulf %505, %483 : vector<16x256xf32>
    %507 = arith.addf %503, %506 : vector<16x256xf32>
    %508 = tpu.concatenate %496, %507 in 0 : vector<16x256xf32>, vector<16x256xf32> -> vector<32x256xf32>
    %c3_202 = arith.constant 3 : index
    %c0_203 = arith.constant 0 : index
    %c0_204 = arith.constant 0 : index
    %509 = vector.load %arg12[%c3_202, %c0_203, %c0_204] : memref<4x32x1xf32, #tpu.memory_space<vmem>>, vector<1x32x1xf32>
    %510 = vector.shape_cast %509 : vector<1x32x1xf32> to vector<32x1xf32>
    %511 = vector.broadcast %510 : vector<32x1xf32> to vector<32x256xf32>
    %512 = arith.addf %508, %511 : vector<32x256xf32>
    %cst_205 = arith.constant 0.000000e+00 : f32
    %513 = vector.broadcast %cst_205 : f32 to vector<32x256xf32>
    %514 = arith.cmpf oge, %512, %513 : vector<32x256xf32>
    %515 = vector.broadcast %432 : f32 to vector<32x256xf32>
    %516 = arith.mulf %515, %512 : vector<32x256xf32>
    %517 = arith.select %514, %512, %516 : vector<32x256xi1>, vector<32x256xf32>
    %c3_206 = arith.constant 3 : index
    %c0_207 = arith.constant 0 : index
    %c0_208 = arith.constant 0 : index
    %518 = vector.load %arg13[%c3_206, %c0_207, %c0_208] : memref<4x32x1xf32, #tpu.memory_space<vmem>>, vector<1x32x1xf32>
    %519 = vector.shape_cast %518 : vector<1x32x1xf32> to vector<32x1xf32>
    %c3_209 = arith.constant 3 : index
    %c0_210 = arith.constant 0 : index
    %c0_211 = arith.constant 0 : index
    %520 = vector.load %arg14[%c3_209, %c0_210, %c0_211] : memref<4x32x1xf32, #tpu.memory_space<vmem>>, vector<1x32x1xf32>
    %521 = vector.shape_cast %520 : vector<1x32x1xf32> to vector<32x1xf32>
    %cst_212 = arith.constant dense<0.000000e+00> : vector<32xf32>
    %522 = vector.multi_reduction <add>, %517, %cst_212 [1] : vector<32x256xf32> to vector<32xf32>
    %523 = vector.shape_cast %522 : vector<32xf32> to vector<32x1xf32>
    %524 = arith.mulf %517, %517 : vector<32x256xf32>
    %cst_213 = arith.constant dense<0.000000e+00> : vector<32xf32>
    %525 = vector.multi_reduction <add>, %524, %cst_213 [1] : vector<32x256xf32> to vector<32xf32>
    %526 = vector.shape_cast %525 : vector<32xf32> to vector<32x1xf32>
    %527 = vector.shape_cast %523 : vector<32x1xf32> to vector<1x32x1xf32>
    %cst_214 = arith.constant dense<0.000000e+00> : vector<1xf32>
    %528 = vector.multi_reduction <add>, %527, %cst_214 [1, 2] : vector<1x32x1xf32> to vector<1xf32>
    %529 = vector.shape_cast %528 : vector<1xf32> to vector<1x1x1xf32>
    %530 = vector.extract %529[0, 0, 0] : f32 from vector<1x1x1xf32>
    %cst_215 = arith.constant 8.192000e+03 : f32
    %531 = arith.divf %530, %cst_215 : f32
    %532 = vector.shape_cast %526 : vector<32x1xf32> to vector<1x32x1xf32>
    %cst_216 = arith.constant dense<0.000000e+00> : vector<1xf32>
    %533 = vector.multi_reduction <add>, %532, %cst_216 [1, 2] : vector<1x32x1xf32> to vector<1xf32>
    %534 = vector.shape_cast %533 : vector<1xf32> to vector<1x1x1xf32>
    %535 = vector.extract %534[0, 0, 0] : f32 from vector<1x1x1xf32>
    %cst_217 = arith.constant 8.192000e+03 : f32
    %536 = arith.divf %535, %cst_217 : f32
    %537 = arith.mulf %531, %531 : f32
    %538 = arith.subf %536, %537 : f32
    %cst_218 = arith.constant 9.99999993E-9 : f32
    %539 = arith.addf %538, %cst_218 : f32
    %540 = math.rsqrt %539 : f32
    %541 = vector.broadcast %540 : f32 to vector<32x1xf32>
    %542 = arith.mulf %541, %519 : vector<32x1xf32>
    %543 = vector.broadcast %542 : vector<32x1xf32> to vector<32x256xf32>
    %544 = arith.mulf %517, %543 : vector<32x256xf32>
    %545 = vector.broadcast %531 : f32 to vector<32x1xf32>
    %546 = arith.mulf %545, %542 : vector<32x1xf32>
    %547 = arith.subf %521, %546 : vector<32x1xf32>
    %548 = vector.broadcast %547 : vector<32x1xf32> to vector<32x256xf32>
    %549 = arith.addf %544, %548 : vector<32x256xf32>
    %c3_219 = arith.constant 3 : index
    %c0_220 = arith.constant 0 : index
    %c0_221 = arith.constant 0 : index
    %550 = vector.load %arg16[%c3_219, %c0_220, %c0_221] : memref<4x16x1xf32, #tpu.memory_space<vmem>>, vector<1x16x1xf32>
    %551 = vector.shape_cast %550 : vector<1x16x1xf32> to vector<16x1xf32>
    %552 = vector.broadcast %551 : vector<16x1xf32> to vector<16x256xf32>
    %553 = arith.addf %430, %552 : vector<16x256xf32>
    %c3_222 = arith.constant 3 : index
    %c0_223 = arith.constant 0 : index
    %c0_224 = arith.constant 0 : index
    %554 = vector.load %arg15[%c3_222, %c0_223, %c0_224] : memref<4x16x32xbf16, #tpu.memory_space<vmem>>, vector<1x16x32xbf16>
    %555 = vector.shape_cast %554 : vector<1x16x32xbf16> to vector<16x32xbf16>
    %556 = arith.truncf %549 : vector<32x256xf32> to vector<32x256xbf16>
    %cst_225 = arith.constant dense<0.000000e+00> : vector<16x256xf32>
    %557 = tpu.matmul %555, %556, %cst_225 {dimension_numbers = #tpu.dot_dimension_numbers<[1], [0], [0], [1], [0, 0, 1, 1], [], []>} : vector<16x32xbf16>, vector<32x256xbf16>, vector<16x256xf32> -> vector<16x256xf32>
    %558 = arith.addf %553, %557 : vector<16x256xf32>
    %c8 = arith.constant 8 : index
    %559 = memref.load %arg1[%c8] : memref<9xf32, #tpu.memory_space<smem>>
    %cst_226 = arith.constant 0.000000e+00 : f32
    %560 = vector.broadcast %cst_226 : f32 to vector<16x256xf32>
    %561 = arith.cmpf oge, %558, %560 : vector<16x256xf32>
    %562 = vector.broadcast %559 : f32 to vector<16x256xf32>
    %563 = arith.mulf %562, %558 : vector<16x256xf32>
    %564 = arith.select %561, %558, %563 : vector<16x256xi1>, vector<16x256xf32>
    %c0_227 = arith.constant 0 : index
    %c0_228 = arith.constant 0 : index
    %565 = vector.load %arg17[%c0_227, %c0_228] : memref<8x16xbf16, #tpu.memory_space<vmem>>, vector<8x16xbf16>
    %566 = arith.truncf %564 : vector<16x256xf32> to vector<16x256xbf16>
    %cst_229 = arith.constant dense<0.000000e+00> : vector<8x256xf32>
    %567 = tpu.matmul %565, %566, %cst_229 {dimension_numbers = #tpu.dot_dimension_numbers<[1], [0], [0], [1], [0, 0, 1, 1], [], []>} : vector<8x16xbf16>, vector<16x256xbf16>, vector<8x256xf32> -> vector<8x256xf32>
    %c0_230 = arith.constant 0 : index
    %c0_231 = arith.constant 0 : index
    %568 = vector.load %arg18[%c0_230, %c0_231] : memref<8x1xf32, #tpu.memory_space<vmem>>, vector<8x1xf32>
    %569 = vector.broadcast %568 : vector<8x1xf32> to vector<8x256xf32>
    %570 = arith.addf %567, %569 : vector<8x256xf32>
    %c0_232 = arith.constant 0 : index
    %c0_233 = arith.constant 0 : index
    %c0_234 = arith.constant 0 : index
    %571 = vector.load %arg19[%c0_232, %c0_233, %c0_234] : memref<1x8x256xf32, #tpu.memory_space<vmem>>, vector<1x8x256xf32>
    %572 = vector.shape_cast %571 : vector<1x8x256xf32> to vector<8x256xf32>
    %573 = vector.shape_cast %570 : vector<8x256xf32> to vector<1x8x256xf32>
    tpu.vector_store %arg19[%c0_232, %c0_233, %c0_234], %573 {strides = array<i32>} : memref<1x8x256xf32, #tpu.memory_space<vmem>>, vector<1x8x256xf32>,
    return
  }
  func.func @transform_0(%arg0: i32) -> i32 {
    %c0_i32 = arith.constant 0 : i32
    %c0_i32_0 = arith.constant 0 : i32
    return %c0_i32 : i32
  }
  func.func @transform_1(%arg0: i32) -> (i32, i32, i32) {
    %c0_i32 = arith.constant 0 : i32
    %c0_i32_0 = arith.constant 0 : i32
    %c0_i32_1 = arith.constant 0 : i32
    return %arg0, %c0_i32, %c0_i32_0 : i32, i32, i32
  }
  func.func @transform_2(%arg0: i32) -> (i32, i32) {
    %c0_i32 = arith.constant 0 : i32
    %c0_i32_0 = arith.constant 0 : i32
    %c0_i32_1 = arith.constant 0 : i32
    return %c0_i32, %c0_i32_0 : i32, i32
  }
  func.func @transform_3(%arg0: i32) -> (i32, i32) {
    %c0_i32 = arith.constant 0 : i32
    %c0_i32_0 = arith.constant 0 : i32
    %c0_i32_1 = arith.constant 0 : i32
    return %c0_i32, %c0_i32_0 : i32, i32
  }
  func.func @transform_4(%arg0: i32) -> (i32, i32) {
    %c0_i32 = arith.constant 0 : i32
    %c0_i32_0 = arith.constant 0 : i32
    %c0_i32_1 = arith.constant 0 : i32
    return %c0_i32, %c0_i32_0 : i32, i32
  }
  func.func @transform_5(%arg0: i32) -> (i32, i32) {
    %c0_i32 = arith.constant 0 : i32
    %c0_i32_0 = arith.constant 0 : i32
    %c0_i32_1 = arith.constant 0 : i32
    return %c0_i32, %c0_i32_0 : i32, i32
  }
  func.func @transform_6(%arg0: i32) -> (i32, i32, i32) {
    %c0_i32 = arith.constant 0 : i32
    %c0_i32_0 = arith.constant 0 : i32
    %c0_i32_1 = arith.constant 0 : i32
    %c0_i32_2 = arith.constant 0 : i32
    return %c0_i32, %c0_i32_0, %c0_i32_1 : i32, i32, i32
  }
  func.func @transform_7(%arg0: i32) -> (i32, i32, i32) {
    %c0_i32 = arith.constant 0 : i32
    %c0_i32_0 = arith.constant 0 : i32
    %c0_i32_1 = arith.constant 0 : i32
    %c0_i32_2 = arith.constant 0 : i32
    return %c0_i32, %c0_i32_0, %c0_i32_1 : i32, i32, i32
  }
  func.func @transform_8(%arg0: i32) -> (i32, i32, i32) {
    %c0_i32 = arith.constant 0 : i32
    %c0_i32_0 = arith.constant 0 : i32
    %c0_i32_1 = arith.constant 0 : i32
    %c0_i32_2 = arith.constant 0 : i32
    return %c0_i32, %c0_i32_0, %c0_i32_1 : i32, i32, i32
  }
  func.func @transform_9(%arg0: i32) -> (i32, i32, i32) {
    %c0_i32 = arith.constant 0 : i32
    %c0_i32_0 = arith.constant 0 : i32
    %c0_i32_1 = arith.constant 0 : i32
    %c0_i32_2 = arith.constant 0 : i32
    return %c0_i32, %c0_i32_0, %c0_i32_1 : i32, i32, i32
  }
  func.func @transform_10(%arg0: i32) -> (i32, i32, i32) {
    %c0_i32 = arith.constant 0 : i32
    %c0_i32_0 = arith.constant 0 : i32
    %c0_i32_1 = arith.constant 0 : i32
    %c0_i32_2 = arith.constant 0 : i32
    return %c0_i32, %c0_i32_0, %c0_i32_1 : i32, i32, i32
  }
  func.func @transform_11(%arg0: i32) -> (i32, i32, i32) {
    %c0_i32 = arith.constant 0 : i32
    %c0_i32_0 = arith.constant 0 : i32
    %c0_i32_1 = arith.constant 0 : i32
    %c0_i32_2 = arith.constant 0 : i32
    return %c0_i32, %c0_i32_0, %c0_i32_1 : i32, i32, i32
  }
  func.func @transform_12(%arg0: i32) -> (i32, i32, i32) {
    %c0_i32 = arith.constant 0 : i32
    %c0_i32_0 = arith.constant 0 : i32
    %c0_i32_1 = arith.constant 0 : i32
    %c0_i32_2 = arith.constant 0 : i32
    return %c0_i32, %c0_i32_0, %c0_i32_1 : i32, i32, i32
  }
  func.func @transform_13(%arg0: i32) -> (i32, i32, i32) {
    %c0_i32 = arith.constant 0 : i32
    %c0_i32_0 = arith.constant 0 : i32
    %c0_i32_1 = arith.constant 0 : i32
    %c0_i32_2 = arith.constant 0 : i32
    return %c0_i32, %c0_i32_0, %c0_i32_1 : i32, i32, i32
  }
  func.func @transform_14(%arg0: i32) -> (i32, i32, i32) {
    %c0_i32 = arith.constant 0 : i32
    %c0_i32_0 = arith.constant 0 : i32
    %c0_i32_1 = arith.constant 0 : i32
    %c0_i32_2 = arith.constant 0 : i32
    return %c0_i32, %c0_i32_0, %c0_i32_1 : i32, i32, i32
  }
  func.func @transform_15(%arg0: i32) -> (i32, i32, i32) {
    %c0_i32 = arith.constant 0 : i32
    %c0_i32_0 = arith.constant 0 : i32
    %c0_i32_1 = arith.constant 0 : i32
    %c0_i32_2 = arith.constant 0 : i32
    return %c0_i32, %c0_i32_0, %c0_i32_1 : i32, i32, i32
  }
  func.func @transform_16(%arg0: i32) -> (i32, i32) {
    %c0_i32 = arith.constant 0 : i32
    %c0_i32_0 = arith.constant 0 : i32
    %c0_i32_1 = arith.constant 0 : i32
    return %c0_i32, %c0_i32_0 : i32, i32
  }
  func.func @transform_17(%arg0: i32) -> (i32, i32) {
    %c0_i32 = arith.constant 0 : i32
    %c0_i32_0 = arith.constant 0 : i32
    %c0_i32_1 = arith.constant 0 : i32
    return %c0_i32, %c0_i32_0 : i32, i32
  }
  func.func @transform_18(%arg0: i32) -> (i32, i32, i32) {
    %c0_i32 = arith.constant 0 : i32
    %c0_i32_0 = arith.constant 0 : i32
    %c0_i32_1 = arith.constant 0 : i32
    return %arg0, %c0_i32, %c0_i32_0 : i32, i32, i32
  }
}

</mosaic_0001>

<llo_original>
// kernel: tcn_forward.1
$region0: #{tcn_forward.1}
  #allocation0 [shape = 'u32[]', space=smem, size = 0x4, offset = 0x4, fixed_abs, tag = 'smem constant byte address 0x4 - core index']
  #allocation1 [shape = 'u32[144,128]{1,0:T(1,128)}', space=vmem, size = 0x12000, scoped, tag = 'internal scratch']
  %s0 = inlined_call_operand.vmem [shape: f32[9], index: 0, kind: input, shape index: {}]
  %s1 = inlined_call_operand.vmem [shape: f32[2,8,256], index: 1, kind: input, shape index: {}]
  %s2 = inlined_call_operand.vmem [shape: f32[8,1], index: 2, kind: input, shape index: {}]
  %s3 = inlined_call_operand.vmem [shape: f32[8,1], index: 3, kind: input, shape index: {}]
  %s4 = inlined_call_operand.vmem [shape: bf16[16,8], index: 4, kind: input, shape index: {}]
  %s5 = inlined_call_operand.vmem [shape: f32[16,1], index: 5, kind: input, shape index: {}]
  %s6 = inlined_call_operand.vmem [shape: bf16[4,16,16], index: 6, kind: input, shape index: {}]
  %s7 = inlined_call_operand.vmem [shape: f32[4,16,1], index: 7, kind: input, shape index: {}]
  %s8 = inlined_call_operand.vmem [shape: f32[4,16,1], index: 8, kind: input, shape index: {}]
  %s9 = inlined_call_operand.vmem [shape: f32[4,16,1], index: 9, kind: input, shape index: {}]
  %s10 = inlined_call_operand.vmem [shape: f32[4,16,6], index: 10, kind: input, shape index: {}]
  %s11 = inlined_call_operand.vmem [shape: f32[4,32,1], index: 11, kind: input, shape index: {}]
  %s12 = inlined_call_operand.vmem [shape: f32[4,32,1], index: 12, kind: input, shape index: {}]
  %s13 = inlined_call_operand.vmem [shape: f32[4,32,1], index: 13, kind: input, shape index: {}]
  %s14 = inlined_call_operand.vmem [shape: bf16[4,16,32], index: 14, kind: input, shape index: {}]
  %s15 = inlined_call_operand.vmem [shape: f32[4,16,1], index: 15, kind: input, shape index: {}]
  %s16 = inlined_call_operand.vmem [shape: bf16[8,16], index: 16, kind: input, shape index: {}]
  %s17 = inlined_call_operand.vmem [shape: f32[8,1], index: 17, kind: input, shape index: {}]
  %s18 = inlined_call_operand.hbm [shape: f32[2,8,256], index: 18, kind: output, shape index: {}]
  %s19 = sld [smem:[#allocation0]]
  $region109: #{tcn_forward.1} parent=0
    _
  %s21 = ssub.s32 1, %s19
  %s22 = scalar_select 0, %s21, %s19
  $region1: #{tcn_forward.1} parent=0
    #allocation2 [shape = 'u8[512]{0}', space=smem, size = 0x200, scoped, tag = 'input window, operand 0, single buffered']
    #allocation3 [shape = 's32[2]{0}', space=sflag, size = 0x8, scoped, tag = 'scoped memory for tcn_forward.1']
    #allocation4 [shape = 's32[2]{0}', space=sflag, size = 0x8, scoped, tag = 'scoped memory for tcn_forward.1']
    #allocation5 [shape = 'u8[16384]{0}', space=vmem, size = 0x4000, scoped, tag = 'output window, operand 0']
    %23 = vsyncpa [#allocation4], 0
    %24 = vsyncpa [#allocation3], 0
    %s25 = scalar_lea.sflag [#allocation3], 1
    %26 = vsyncpa %s25, 0
    loop: start=0, step=1, limit=4
    $region2: #{tcn_forward.1} parent=1 // loop_pre_header
      _
    $region3: #{tcn_forward.1} parent=1 // loop_header
      %s28 = sphi 0, %s32
      %p29 = scmp.ge.s32.totalorder %s28, 4
      %s36 = sphi 0, %s36
      %s38 = sphi 0, %s36
      %s39 = sphi 0, %s38
      %s53 = sphi 0, %s39
      %s59 = sphi 0, %s61
      %s62 = sphi 0, %s59
      %s63 = sphi 0, %s62
      %s79 = sphi 0, %s63
      %s83 = sphi 0, %s83
      %s85 = sphi 0, %s83
      %s86 = sphi 0, %s85
      %s100 = sphi 0, %s86
      %s104 = sphi 0, %s104
      %s106 = sphi 0, %s104
      %s107 = sphi 0, %s106
      %s121 = sphi 0, %s107
      %s125 = sphi 0, %s125
      %s127 = sphi 0, %s125
      %s128 = sphi 0, %s127
      %s142 = sphi 0, %s128
      %s146 = sphi 0, %s146
      %s148 = sphi 0, %s146
      %s149 = sphi 0, %s148
      %s163 = sphi 0, %s149
      %s167 = sphi 0, %s167
      %s169 = sphi 0, %s167
      %s170 = sphi 0, %s169
      %s184 = sphi 0, %s170
      %s188 = sphi 0, %s188
      %s190 = sphi 0, %s188
      %s191 = sphi 0, %s190
      %s205 = sphi 0, %s191
      %s209 = sphi 0, %s209
      %s211 = sphi 0, %s209
      %s212 = sphi 0, %s211
      %s226 = sphi 0, %s212
      %s230 = sphi 0, %s230
      %s232 = sphi 0, %s230
      %s233 = sphi 0, %s232
      %s247 = sphi 0, %s233
      %s251 = sphi 0, %s251
      %s253 = sphi 0, %s251
      %s254 = sphi 0, %s253
      %s268 = sphi 0, %s254
      %s272 = sphi 0, %s272
      %s274 = sphi 0, %s272
      %s275 = sphi 0, %s274
      %s289 = sphi 0, %s275
      %s293 = sphi 0, %s293
      %s295 = sphi 0, %s293
      %s296 = sphi 0, %s295
      %s310 = sphi 0, %s296
      %s314 = sphi 0, %s314
      %s316 = sphi 0, %s314
      %s317 = sphi 0, %s316
      %s331 = sphi 0, %s317
      %s335 = sphi 0, %s335
      %s337 = sphi 0, %s335
      %s338 = sphi 0, %s337
      %s352 = sphi 0, %s338
      %s356 = sphi 0, %s356
      %s358 = sphi 0, %s356
      %s359 = sphi 0, %s358
      %s373 = sphi 0, %s359
      %s377 = sphi 0, %s377
      %s379 = sphi 0, %s377
      %s380 = sphi 0, %s379
      %s394 = sphi 0, %s380
      %s398 = sphi 0, %s398
      %s400 = sphi 0, %s398
      %s401 = sphi 0, %s400
      %s415 = sphi 0, %s401
      %s421 = sphi 0, %s423
      %s424 = sphi 0, %s421
      %s425 = sphi 0, %s424
      %s441 = sphi 0, %s425
    $region4: #{tcn_forward.1} parent=1 // loop_header_branch
      %31 = sbr.rel (%p29) target = $region8
    $region5: #{tcn_forward.1} parent=1 // loop_body
      %s33 = ssub.s32 %s28, 1
      %s34 = ssub.s32 %s28, 2
      %s35 = sadd.s32 %s28, 1
      %s37 = sadd.s32 %s36, 1
      %p40 = scmp.eq.s32.totalorder %s28, 1
      %p41 = scmp.ne.s32.totalorder %s36, %s38
      %p42 = scmp.eq.s32.totalorder %s28, 0
      %p43 = por %p41, %p42
      %p44 = scmp.ne.s32.totalorder %s36, %s38
      %p45 = scmp.eq.s32.totalorder %s33, 1
      %p46 = por %p44, %p45
      %p47 = scmp.ne.s32.totalorder %s38, %s39
      %p48 = scmp.eq.s32.totalorder %s33, 0
      %p49 = por %p47, %p48
      %p50 = scmp.ne.s32.totalorder %s38, %s39
      %p51 = scmp.eq.s32.totalorder %s34, 1
      %p52 = por %p50, %p51
      %p54 = scmp.ne.s32.totalorder %s39, %s53
      %p55 = scmp.eq.s32.totalorder %s34, 0
      %p56 = por %p54, %p55
      %s57 = ssub.s32 %s28, %s35
      %p58 = scmp.eq.s32.totalorder %s57, 0
      %s60 = sadd.s32 %s59, 1
      %s61 = scalar_select %p58, %s59, %s60
      %p64 = pneg %p58
      %p65 = scmp.eq.s32.totalorder %s28, 1
      %p66 = por %p64, %p65
      %p67 = scmp.ne.s32.totalorder %s59, %s62
      %p68 = scmp.eq.s32.totalorder %s28, 0
      %p69 = por %p67, %p68
      %p70 = scmp.ne.s32.totalorder %s59, %s62
      %p71 = scmp.eq.s32.totalorder %s33, 1
      %p72 = por %p70, %p71
      %p73 = scmp.ne.s32.totalorder %s62, %s63
      %p74 = scmp.eq.s32.totalorder %s33, 0
      %p75 = por %p73, %p74
      %p76 = scmp.ne.s32.totalorder %s62, %s63
      %p77 = scmp.eq.s32.totalorder %s34, 1
      %p78 = por %p76, %p77
      %p80 = scmp.ne.s32.totalorder %s63, %s79
      %p81 = scmp.eq.s32.totalorder %s34, 0
      %p82 = por %p80, %p81
      %s84 = sadd.s32 %s83, 1
      %p87 = scmp.eq.s32.totalorder %s28, 1
      %p88 = scmp.ne.s32.totalorder %s83, %s85
      %p89 = scmp.eq.s32.totalorder %s28, 0
      %p90 = por %p88, %p89
      %p91 = scmp.ne.s32.totalorder %s83, %s85
      %p92 = scmp.eq.s32.totalorder %s33, 1
      %p93 = por %p91, %p92
      %p94 = scmp.ne.s32.totalorder %s85, %s86
      %p95 = scmp.eq.s32.totalorder %s33, 0
      %p96 = por %p94, %p95
      %p97 = scmp.ne.s32.totalorder %s85, %s86
      %p98 = scmp.eq.s32.totalorder %s34, 1
      %p99 = por %p97, %p98
      %p101 = scmp.ne.s32.totalorder %s86, %s100
      %p102 = scmp.eq.s32.totalorder %s34, 0
      %p103 = por %p101, %p102
      %s105 = sadd.s32 %s104, 1
      %p108 = scmp.eq.s32.totalorder %s28, 1
      %p109 = scmp.ne.s32.totalorder %s104, %s106
      %p110 = scmp.eq.s32.totalorder %s28, 0
      %p111 = por %p109, %p110
      %p112 = scmp.ne.s32.totalorder %s104, %s106
      %p113 = scmp.eq.s32.totalorder %s33, 1
      %p114 = por %p112, %p113
      %p115 = scmp.ne.s32.totalorder %s106, %s107
      %p116 = scmp.eq.s32.totalorder %s33, 0
      %p117 = por %p115, %p116
      %p118 = scmp.ne.s32.totalorder %s106, %s107
      %p119 = scmp.eq.s32.totalorder %s34, 1
      %p120 = por %p118, %p119
      %p122 = scmp.ne.s32.totalorder %s107, %s121
      %p123 = scmp.eq.s32.totalorder %s34, 0
      %p124 = por %p122, %p123
      %s126 = sadd.s32 %s125, 1
      %p129 = scmp.eq.s32.totalorder %s28, 1
      %p130 = scmp.ne.s32.totalorder %s125, %s127
      %p131 = scmp.eq.s32.totalorder %s28, 0
      %p132 = por %p130, %p131
      %p133 = scmp.ne.s32.totalorder %s125, %s127
      %p134 = scmp.eq.s32.totalorder %s33, 1
      %p135 = por %p133, %p134
      %p136 = scmp.ne.s32.totalorder %s127, %s128
      %p137 = scmp.eq.s32.totalorder %s33, 0
      %p138 = por %p136, %p137
      %p139 = scmp.ne.s32.totalorder %s127, %s128
      %p140 = scmp.eq.s32.totalorder %s34, 1
      %p141 = por %p139, %p140
      %p143 = scmp.ne.s32.totalorder %s128, %s142
      %p144 = scmp.eq.s32.totalorder %s34, 0
      %p145 = por %p143, %p144
      %s147 = sadd.s32 %s146, 1
      %p150 = scmp.eq.s32.totalorder %s28, 1
      %p151 = scmp.ne.s32.totalorder %s146, %s148
      %p152 = scmp.eq.s32.totalorder %s28, 0
      %p153 = por %p151, %p152
      %p154 = scmp.ne.s32.totalorder %s146, %s148
      %p155 = scmp.eq.s32.totalorder %s33, 1
      %p156 = por %p154, %p155
      %p157 = scmp.ne.s32.totalorder %s148, %s149
      %p158 = scmp.eq.s32.totalorder %s33, 0
      %p159 = por %p157, %p158
      %p160 = scmp.ne.s32.totalorder %s148, %s149
      %p161 = scmp.eq.s32.totalorder %s34, 1
      %p162 = por %p160, %p161
      %p164 = scmp.ne.s32.totalorder %s149, %s163
      %p165 = scmp.eq.s32.totalorder %s34, 0
      %p166 = por %p164, %p165
      %s168 = sadd.s32 %s167, 1
      %p171 = scmp.eq.s32.totalorder %s28, 1
      %p172 = scmp.ne.s32.totalorder %s167, %s169
      %p173 = scmp.eq.s32.totalorder %s28, 0
      %p174 = por %p172, %p173
      %p175 = scmp.ne.s32.totalorder %s167, %s169
      %p176 = scmp.eq.s32.totalorder %s33, 1
      %p177 = por %p175, %p176
      %p178 = scmp.ne.s32.totalorder %s169, %s170
      %p179 = scmp.eq.s32.totalorder %s33, 0
      %p180 = por %p178, %p179
      %p181 = scmp.ne.s32.totalorder %s169, %s170
      %p182 = scmp.eq.s32.totalorder %s34, 1
      %p183 = por %p181, %p182
      %p185 = scmp.ne.s32.totalorder %s170, %s184
      %p186 = scmp.eq.s32.totalorder %s34, 0
      %p187 = por %p185, %p186
      %s189 = sadd.s32 %s188, 1
      %p192 = scmp.eq.s32.totalorder %s28, 1
      %p193 = scmp.ne.s32.totalorder %s188, %s190
      %p194 = scmp.eq.s32.totalorder %s28, 0
      %p195 = por %p193, %p194
      %p196 = scmp.ne.s32.totalorder %s188, %s190
      %p197 = scmp.eq.s32.totalorder %s33, 1
      %p198 = por %p196, %p197
      %p199 = scmp.ne.s32.totalorder %s190, %s191
      %p200 = scmp.eq.s32.totalorder %s33, 0
      %p201 = por %p199, %p200
      %p202 = scmp.ne.s32.totalorder %s190, %s191
      %p203 = scmp.eq.s32.totalorder %s34, 1
      %p204 = por %p202, %p203
      %p206 = scmp.ne.s32.totalorder %s191, %s205
      %p207 = scmp.eq.s32.totalorder %s34, 0
      %p208 = por %p206, %p207
      %s210 = sadd.s32 %s209, 1
      %p213 = scmp.eq.s32.totalorder %s28, 1
      %p214 = scmp.ne.s32.totalorder %s209, %s211
      %p215 = scmp.eq.s32.totalorder %s28, 0
      %p216 = por %p214, %p215
      %p217 = scmp.ne.s32.totalorder %s209, %s211
      %p218 = scmp.eq.s32.totalorder %s33, 1
      %p219 = por %p217, %p218
      %p220 = scmp.ne.s32.totalorder %s211, %s212
      %p221 = scmp.eq.s32.totalorder %s33, 0
      %p222 = por %p220, %p221
      %p223 = scmp.ne.s32.totalorder %s211, %s212
      %p224 = scmp.eq.s32.totalorder %s34, 1
      %p225 = por %p223, %p224
      %p227 = scmp.ne.s32.totalorder %s212, %s226
      %p228 = scmp.eq.s32.totalorder %s34, 0
      %p229 = por %p227, %p228
      %s231 = sadd.s32 %s230, 1
      %p234 = scmp.eq.s32.totalorder %s28, 1
      %p235 = scmp.ne.s32.totalorder %s230, %s232
      %p236 = scmp.eq.s32.totalorder %s28, 0
      %p237 = por %p235, %p236
      %p238 = scmp.ne.s32.totalorder %s230, %s232
      %p239 = scmp.eq.s32.totalorder %s33, 1
      %p240 = por %p238, %p239
      %p241 = scmp.ne.s32.totalorder %s232, %s233
      %p242 = scmp.eq.s32.totalorder %s33, 0
      %p243 = por %p241, %p242
      %p244 = scmp.ne.s32.totalorder %s232, %s233
      %p245 = scmp.eq.s32.totalorder %s34, 1
      %p246 = por %p244, %p245
      %p248 = scmp.ne.s32.totalorder %s233, %s247
      %p249 = scmp.eq.s32.totalorder %s34, 0
      %p250 = por %p248, %p249
      %s252 = sadd.s32 %s251, 1
      %p255 = scmp.eq.s32.totalorder %s28, 1
      %p256 = scmp.ne.s32.totalorder %s251, %s253
      %p257 = scmp.eq.s32.totalorder %s28, 0
      %p258 = por %p256, %p257
      %p259 = scmp.ne.s32.totalorder %s251, %s253
      %p260 = scmp.eq.s32.totalorder %s33, 1
      %p261 = por %p259, %p260
      %p262 = scmp.ne.s32.totalorder %s253, %s254
      %p263 = scmp.eq.s32.totalorder %s33, 0
      %p264 = por %p262, %p263
      %p265 = scmp.ne.s32.totalorder %s253, %s254
      %p266 = scmp.eq.s32.totalorder %s34, 1
      %p267 = por %p265, %p266
      %p269 = scmp.ne.s32.totalorder %s254, %s268
      %p270 = scmp.eq.s32.totalorder %s34, 0
      %p271 = por %p269, %p270
      %s273 = sadd.s32 %s272, 1
      %p276 = scmp.eq.s32.totalorder %s28, 1
      %p277 = scmp.ne.s32.totalorder %s272, %s274
      %p278 = scmp.eq.s32.totalorder %s28, 0
      %p279 = por %p277, %p278
      %p280 = scmp.ne.s32.totalorder %s272, %s274
      %p281 = scmp.eq.s32.totalorder %s33, 1
      %p282 = por %p280, %p281
      %p283 = scmp.ne.s32.totalorder %s274, %s275
      %p284 = scmp.eq.s32.totalorder %s33, 0
      %p285 = por %p283, %p284
      %p286 = scmp.ne.s32.totalorder %s274, %s275
      %p287 = scmp.eq.s32.totalorder %s34, 1
      %p288 = por %p286, %p287
      %p290 = scmp.ne.s32.totalorder %s275, %s289
      %p291 = scmp.eq.s32.totalorder %s34, 0
      %p292 = por %p290, %p291
      %s294 = sadd.s32 %s293, 1
      %p297 = scmp.eq.s32.totalorder %s28, 1
      %p298 = scmp.ne.s32.totalorder %s293, %s295
      %p299 = scmp.eq.s32.totalorder %s28, 0
      %p300 = por %p298, %p299
      %p301 = scmp.ne.s32.totalorder %s293, %s295
      %p302 = scmp.eq.s32.totalorder %s33, 1
      %p303 = por %p301, %p302
      %p304 = scmp.ne.s32.totalorder %s295, %s296
      %p305 = scmp.eq.s32.totalorder %s33, 0
      %p306 = por %p304, %p305
      %p307 = scmp.ne.s32.totalorder %s295, %s296
      %p308 = scmp.eq.s32.totalorder %s34, 1
      %p309 = por %p307, %p308
      %p311 = scmp.ne.s32.totalorder %s296, %s310
      %p312 = scmp.eq.s32.totalorder %s34, 0
      %p313 = por %p311, %p312
      %s315 = sadd.s32 %s314, 1
      %p318 = scmp.eq.s32.totalorder %s28, 1
      %p319 = scmp.ne.s32.totalorder %s314, %s316
      %p320 = scmp.eq.s32.totalorder %s28, 0
      %p321 = por %p319, %p320
      %p322 = scmp.ne.s32.totalorder %s314, %s316
      %p323 = scmp.eq.s32.totalorder %s33, 1
      %p324 = por %p322, %p323
      %p325 = scmp.ne.s32.totalorder %s316, %s317
      %p326 = scmp.eq.s32.totalorder %s33, 0
      %p327 = por %p325, %p326
      %p328 = scmp.ne.s32.totalorder %s316, %s317
      %p329 = scmp.eq.s32.totalorder %s34, 1
      %p330 = por %p328, %p329
      %p332 = scmp.ne.s32.totalorder %s317, %s331
      %p333 = scmp.eq.s32.totalorder %s34, 0
      %p334 = por %p332, %p333
      %s336 = sadd.s32 %s335, 1
      %p339 = scmp.eq.s32.totalorder %s28, 1
      %p340 = scmp.ne.s32.totalorder %s335, %s337
      %p341 = scmp.eq.s32.totalorder %s28, 0
      %p342 = por %p340, %p341
      %p343 = scmp.ne.s32.totalorder %s335, %s337
      %p344 = scmp.eq.s32.totalorder %s33, 1
      %p345 = por %p343, %p344
      %p346 = scmp.ne.s32.totalorder %s337, %s338
      %p347 = scmp.eq.s32.totalorder %s33, 0
      %p348 = por %p346, %p347
      %p349 = scmp.ne.s32.totalorder %s337, %s338
      %p350 = scmp.eq.s32.totalorder %s34, 1
      %p351 = por %p349, %p350
      %p353 = scmp.ne.s32.totalorder %s338, %s352
      %p354 = scmp.eq.s32.totalorder %s34, 0
      %p355 = por %p353, %p354
      %s357 = sadd.s32 %s356, 1
      %p360 = scmp.eq.s32.totalorder %s28, 1
      %p361 = scmp.ne.s32.totalorder %s356, %s358
      %p362 = scmp.eq.s32.totalorder %s28, 0
      %p363 = por %p361, %p362
      %p364 = scmp.ne.s32.totalorder %s356, %s358
      %p365 = scmp.eq.s32.totalorder %s33, 1
      %p366 = por %p364, %p365
      %p367 = scmp.ne.s32.totalorder %s358, %s359
      %p368 = scmp.eq.s32.totalorder %s33, 0
      %p369 = por %p367, %p368
      %p370 = scmp.ne.s32.totalorder %s358, %s359
      %p371 = scmp.eq.s32.totalorder %s34, 1
      %p372 = por %p370, %p371
      %p374 = scmp.ne.s32.totalorder %s359, %s373
      %p375 = scmp.eq.s32.totalorder %s34, 0
      %p376 = por %p374, %p375
      %s378 = sadd.s32 %s377, 1
      %p381 = scmp.eq.s32.totalorder %s28, 1
      %p382 = scmp.ne.s32.totalorder %s377, %s379
      %p383 = scmp.eq.s32.totalorder %s28, 0
      %p384 = por %p382, %p383
      %p385 = scmp.ne.s32.totalorder %s377, %s379
      %p386 = scmp.eq.s32.totalorder %s33, 1
      %p387 = por %p385, %p386
      %p388 = scmp.ne.s32.totalorder %s379, %s380
      %p389 = scmp.eq.s32.totalorder %s33, 0
      %p390 = por %p388, %p389
      %p391 = scmp.ne.s32.totalorder %s379, %s380
      %p392 = scmp.eq.s32.totalorder %s34, 1
      %p393 = por %p391, %p392
      %p395 = scmp.ne.s32.totalorder %s380, %s394
      %p396 = scmp.eq.s32.totalorder %s34, 0
      %p397 = por %p395, %p396
      %s399 = sadd.s32 %s398, 1
      %p402 = scmp.eq.s32.totalorder %s28, 1
      %p403 = scmp.ne.s32.totalorder %s398, %s400
      %p404 = scmp.eq.s32.totalorder %s28, 0
      %p405 = por %p403, %p404
      %p406 = scmp.ne.s32.totalorder %s398, %s400
      %p407 = scmp.eq.s32.totalorder %s33, 1
      %p408 = por %p406, %p407
      %p409 = scmp.ne.s32.totalorder %s400, %s401
      %p410 = scmp.eq.s32.totalorder %s33, 0
      %p411 = por %p409, %p410
      %p412 = scmp.ne.s32.totalorder %s400, %s401
      %p413 = scmp.eq.s32.totalorder %s34, 1
      %p414 = por %p412, %p413
      %p416 = scmp.ne.s32.totalorder %s401, %s415
      %p417 = scmp.eq.s32.totalorder %s34, 0
      %p418 = por %p416, %p417
      %s419 = ssub.s32 %s28, %s35
      %p420 = scmp.eq.s32.totalorder %s419, 0
      %s422 = sadd.s32 %s421, 1
      %s423 = scalar_select %p420, %s421, %s422
      %p426 = pneg %p420
      %p427 = scmp.eq.s32.totalorder %s28, 1
      %p428 = por %p426, %p427
      %p429 = scmp.ne.s32.totalorder %s421, %s424
      %p430 = scmp.eq.s32.totalorder %s28, 0
      %p431 = por %p429, %p430
      %p432 = scmp.ne.s32.totalorder %s421, %s424
      %p433 = scmp.eq.s32.totalorder %s33, 1
      %p434 = por %p432, %p433
      %p435 = scmp.ne.s32.totalorder %s424, %s425
      %p436 = scmp.eq.s32.totalorder %s33, 0
      %p437 = por %p435, %p436
      %p438 = scmp.ne.s32.totalorder %s424, %s425
      %p439 = scmp.eq.s32.totalorder %s34, 1
      %p440 = por %p438, %p439
      %p442 = scmp.ne.s32.totalorder %s425, %s441
      %p443 = scmp.eq.s32.totalorder %s34, 0
      %p444 = por %p442, %p443
      %p445 = scmp.le.s32.totalorder 1, %s28
      %p446 = scmp.lt.s32.totalorder %s28, 3
      %p447 = pnand %p445, %p446
      %p448 = pneg %p447
      // Predicated region
      $region9: #{tcn_forward.1} parent=5 // pred_check
        _
      $region10: #{tcn_forward.1} parent=5 // pred_check_branch
        %450 = sbr.rel (%p447) target = $region12
      $region11: #{tcn_forward.1} parent=5 // pred_region
        %s451 = ssub.s32 %s28, 1
        // Predicated region
        $region13: #{tcn_forward.1} parent=11 // pred_check
          %p452 = pneg %p49
        $region14: #{tcn_forward.1} parent=11 // pred_check_branch
          %454 = sbr.rel (%p452) target = $region16
        $region15: #{tcn_forward.1} parent=11 // pred_region
          %s456 = ssub.s32 16, 16
          %457 = vsyncadd [#allocation4], %s456
          %s459 = sshll.u32 %s0, 4
          %s460 = int_to_ptr.vmem [resolvable:$true] %s459
          %462 = dma.vmem_to_smem %s460, 16, [#allocation2], [#allocation4]
        $region16: #{tcn_forward.1} parent=11 // pred_fallthru
          _
        // Predicated region
        $region17: #{tcn_forward.1} parent=11 // pred_check
          %p463 = pneg %p96
        $region18: #{tcn_forward.1} parent=11 // pred_check_branch
          %465 = sbr.rel (%p463) target = $region20
        $region19: #{tcn_forward.1} parent=11 // pred_region
          _
        $region20: #{tcn_forward.1} parent=11 // pred_fallthru
          _
        // Predicated region
        $region21: #{tcn_forward.1} parent=11 // pred_check
          %p466 = pneg %p117
        $region22: #{tcn_forward.1} parent=11 // pred_check_branch
          %468 = sbr.rel (%p466) target = $region24
        $region23: #{tcn_forward.1} parent=11 // pred_region
          _
        $region24: #{tcn_forward.1} parent=11 // pred_fallthru
          _
        // Predicated region
        $region25: #{tcn_forward.1} parent=11 // pred_check
          %p469 = pneg %p138
        $region26: #{tcn_forward.1} parent=11 // pred_check_branch
          %471 = sbr.rel (%p469) target = $region28
        $region27: #{tcn_forward.1} parent=11 // pred_region
          _
        $region28: #{tcn_forward.1} parent=11 // pred_fallthru
          _
        // Predicated region
        $region29: #{tcn_forward.1} parent=11 // pred_check
          %p472 = pneg %p159
        $region30: #{tcn_forward.1} parent=11 // pred_check_branch
          %474 = sbr.rel (%p472) target = $region32
        $region31: #{tcn_forward.1} parent=11 // pred_region
          _
        $region32: #{tcn_forward.1} parent=11 // pred_fallthru
          _
        // Predicated region
        $region33: #{tcn_forward.1} parent=11 // pred_check
          %p475 = pneg %p180
        $region34: #{tcn_forward.1} parent=11 // pred_check_branch
          %477 = sbr.rel (%p475) target = $region36
        $region35: #{tcn_forward.1} parent=11 // pred_region
          _
        $region36: #{tcn_forward.1} parent=11 // pred_fallthru
          _
        // Predicated region
        $region37: #{tcn_forward.1} parent=11 // pred_check
          %p478 = pneg %p201
        $region38: #{tcn_forward.1} parent=11 // pred_check_branch
          %480 = sbr.rel (%p478) target = $region40
        $region39: #{tcn_forward.1} parent=11 // pred_region
          _
        $region40: #{tcn_forward.1} parent=11 // pred_fallthru
          _
        // Predicated region
        $region41: #{tcn_forward.1} parent=11 // pred_check
          %p481 = pneg %p222
        $region42: #{tcn_forward.1} parent=11 // pred_check_branch
          %483 = sbr.rel (%p481) target = $region44
        $region43: #{tcn_forward.1} parent=11 // pred_region
          _
        $region44: #{tcn_forward.1} parent=11 // pred_fallthru
          _
        // Predicated region
        $region45: #{tcn_forward.1} parent=11 // pred_check
          %p484 = pneg %p243
        $region46: #{tcn_forward.1} parent=11 // pred_check_branch
          %486 = sbr.rel (%p484) target = $region48
        $region47: #{tcn_forward.1} parent=11 // pred_region
          _
        $region48: #{tcn_forward.1} parent=11 // pred_fallthru
          _
        // Predicated region
        $region49: #{tcn_forward.1} parent=11 // pred_check
          %p487 = pneg %p264
        $region50: #{tcn_forward.1} parent=11 // pred_check_branch
          %489 = sbr.rel (%p487) target = $region52
        $region51: #{tcn_forward.1} parent=11 // pred_region
          _
        $region52: #{tcn_forward.1} parent=11 // pred_fallthru
          _
        // Predicated region
        $region53: #{tcn_forward.1} parent=11 // pred_check
          %p490 = pneg %p285
        $region54: #{tcn_forward.1} parent=11 // pred_check_branch
          %492 = sbr.rel (%p490) target = $region56
        $region55: #{tcn_forward.1} parent=11 // pred_region
          _
        $region56: #{tcn_forward.1} parent=11 // pred_fallthru
          _
        // Predicated region
        $region57: #{tcn_forward.1} parent=11 // pred_check
          %p493 = pneg %p306
        $region58: #{tcn_forward.1} parent=11 // pred_check_branch
          %495 = sbr.rel (%p493) target = $region60
        $region59: #{tcn_forward.1} parent=11 // pred_region
          _
        $region60: #{tcn_forward.1} parent=11 // pred_fallthru
          _
        // Predicated region
        $region61: #{tcn_forward.1} parent=11 // pred_check
          %p496 = pneg %p327
        $region62: #{tcn_forward.1} parent=11 // pred_check_branch
          %498 = sbr.rel (%p496) target = $region64
        $region63: #{tcn_forward.1} parent=11 // pred_region
          _
        $region64: #{tcn_forward.1} parent=11 // pred_fallthru
          _
        // Predicated region
        $region65: #{tcn_forward.1} parent=11 // pred_check
          %p499 = pneg %p348
        $region66: #{tcn_forward.1} parent=11 // pred_check_branch
          %501 = sbr.rel (%p499) target = $region68
        $region67: #{tcn_forward.1} parent=11 // pred_region
          _
        $region68: #{tcn_forward.1} parent=11 // pred_fallthru
          _
        // Predicated region
        $region69: #{tcn_forward.1} parent=11 // pred_check
          %p502 = pneg %p369
        $region70: #{tcn_forward.1} parent=11 // pred_check_branch
          %504 = sbr.rel (%p502) target = $region72
        $region71: #{tcn_forward.1} parent=11 // pred_region
          _
        $region72: #{tcn_forward.1} parent=11 // pred_fallthru
          _
        // Predicated region
        $region73: #{tcn_forward.1} parent=11 // pred_check
          %p505 = pneg %p390
        $region74: #{tcn_forward.1} parent=11 // pred_check_branch
          %507 = sbr.rel (%p505) target = $region76
        $region75: #{tcn_forward.1} parent=11 // pred_region
          _
        $region76: #{tcn_forward.1} parent=11 // pred_fallthru
          _
        // Predicated region
        $region77: #{tcn_forward.1} parent=11 // pred_check
          %p508 = pneg %p411
        $region78: #{tcn_forward.1} parent=11 // pred_check_branch
          %510 = sbr.rel (%p508) target = $region80
        $region79: #{tcn_forward.1} parent=11 // pred_region
          _
        $region80: #{tcn_forward.1} parent=11 // pred_fallthru
          _
      $region12: #{tcn_forward.1} parent=5 // pred_fallthru
        _
      %p511 = scmp.lt.s32.totalorder %s28, 2
      // Predicated region
      $region81: #{tcn_forward.1} parent=5 // pred_check
        %p512 = pneg %p511
      $region82: #{tcn_forward.1} parent=5 // pred_check_branch
        %514 = sbr.rel (%p512) target = $region84
      $region83: #{tcn_forward.1} parent=5 // pred_region
        // Predicated region
        $region85: #{tcn_forward.1} parent=83 // pred_check
          %p515 = pneg %p69
        $region86: #{tcn_forward.1} parent=83 // pred_check_branch
          %517 = sbr.rel (%p515) target = $region88
        $region87: #{tcn_forward.1} parent=83 // pred_region
          %p518 = scmp.lt.s32.totalorder %s28, 1
          %s519 = scalar_select %p518, %s28, 1
          %s520 = smul.addr %s519, 2
          %s521 = smul.addr %s520, 8
          %s522 = scalar_lea.vmem %s1, %s521
        $region88: #{tcn_forward.1} parent=83 // pred_fallthru
          _
      $region84: #{tcn_forward.1} parent=5 // pred_fallthru
        _
      %p523 = scmp.le.s32.totalorder 1, %s28
      %p524 = scmp.lt.s32.totalorder %s28, 3
      %p525 = pnand %p523, %p524
      %p526 = pneg %p525
      // Predicated region
      $region89: #{tcn_forward.1} parent=5 // pred_check
        _
      $region90: #{tcn_forward.1} parent=5 // pred_check_branch
        %528 = sbr.rel (%p525) target = $region92
      $region91: #{tcn_forward.1} parent=5 // pred_region
        %s529 = ssub.s32 %s28, 1
        // Predicated region
        $region93: #{tcn_forward.1} parent=91 // pred_check
          %p530 = pneg %p49
        $region94: #{tcn_forward.1} parent=91 // pred_check_branch
          %532 = sbr.rel (%p530) target = $region96
        $region95: #{tcn_forward.1} parent=91 // pred_region
          %533 = dma.done [#allocation4], 16
        $region96: #{tcn_forward.1} parent=91 // pred_fallthru
          _
        %534 = sfence
        %p535 = pneg %p49
        %p536 = pneg %p46
        %p537 = scmp.lt.s32.totalorder %s33, 1
        %s538 = scalar_select %p537, %s33, 1
        %s539 = smul.addr %s538, 2
        %s540 = smul.addr %s539, 8
        %s541 = scalar_lea.vmem %s1, %s540
        %p542 = pneg %p75
        %p543 = pneg %p72
        %p544 = pneg %p96
        %p545 = pneg %p93
        %p546 = pneg %p117
        %p547 = pneg %p114
        %p548 = pneg %p138
        %p549 = pneg %p135
        %p550 = pneg %p159
        %p551 = pneg %p156
        %p552 = pneg %p180
        %p553 = pneg %p177
        %p554 = pneg %p201
        %p555 = pneg %p198
        %p556 = pneg %p222
        %p557 = pneg %p219
        %p558 = pneg %p243
        %p559 = pneg %p240
        %p560 = pneg %p264
        %p561 = pneg %p261
        %p562 = pneg %p285
        %p563 = pneg %p282
        %p564 = pneg %p306
        %p565 = pneg %p303
        %p566 = pneg %p327
        %p567 = pneg %p324
        %p568 = pneg %p348
        %p569 = pneg %p345
        %p570 = pneg %p369
        %p571 = pneg %p366
        %p572 = pneg %p390
        %p573 = pneg %p387
        %p574 = pneg %p411
        %p575 = pneg %p408
        %p576 = pneg %p437
        %p577 = pneg %p434
        %s578 = sand.u32 %s424, 1
        %s579 = scalar_lea.sflag [#allocation3], %s578
        %s580 = sand.u32 %s424, 1
        %s581 = smul.addr %s580, 16
        %s582 = scalar_lea.vmem [#allocation5], %s581
        %p583 = scmp.lt.s32.totalorder %s33, 1
        %s584 = scalar_select %p583, %s33, 1
        %s585 = smul.addr %s584, 2
        %s586 = smul.addr %s585, 8
        %s587 = scalar_lea.vmem %s1, %s586
        %v589 = vld [vmem:[%s587] sm:$0xff]
        %v590 = vld [vmem:[%s587 + $0x8] sm:$0xff]
        %v591 = vlaneseq
        %v592 = vand.u32 %v591, 127
        %v593 = vadd.s32 %v592, 128
        %vm594 = vcmp.ge.s32.totalorder %v592, 1
        %vm595 = vcmp.ge.s32.totalorder %v593, 1
        %vm596 = vcmp.lt.s32.totalorder %v592, 255
        %vm597 = vcmp.lt.s32.totalorder %v593, 255
        %vm598 = vcmp.ge.s32.totalorder %v592, 2
        %vm599 = vcmp.ge.s32.totalorder %v593, 2
        %vm600 = vcmp.lt.s32.totalorder %v592, 254
        %vm601 = vcmp.lt.s32.totalorder %v593, 254
        %v602 = vld [vmem:[%s2] sm:$0xff]
        %v603 = vld [vmem:[%s3] sm:$0xff]
        %v604 = vadd.f32 %v589, %v590
        %605 = vadd.xlane.f32.xlu0 %v604
        %v606 = vpop.xlane.xlu0 %605
        %v607 = vmul.f32 %v589, %v589
        %v608 = vmul.f32 %v590, %v590
        %v609 = vadd.f32 %v607, %v608
        %610 = vadd.xlane.f32.xlu0 %v609
        %v611 = vpop.xlane.xlu0 %610
        %vm612 = vcmask 7168
        %v613 = vsel %vm612, %v606, 0.0
        %614 = vadd.xlane.f32.xlu0 %v613
        %v615 = vpop.xlane.xlu0 %614
        %v616 = vrot.slane %v615, 4
        %v617 = vadd.f32 %v615, %v616
        %v618 = vrot.slane %v617, 2
        %v619 = vadd.f32 %v617, %v618
        %v620 = vrot.slane %v619, 1
        %v621 = vadd.f32 %v619, %v620
        %s622 = vtos %v621
        %v623 = vrcp.pop 2048.0
        %s624 = vtos %v623
        %s625 = smul.f32 %s622, %s624
        %v626 = vsel %vm612, %v611, 0.0
        %627 = vadd.xlane.f32.xlu0 %v626
        %v628 = vpop.xlane.xlu0 %627
        %v629 = vrot.slane %v628, 4
        %v630 = vadd.f32 %v628, %v629
        %v631 = vrot.slane %v630, 2
        %v632 = vadd.f32 %v630, %v631
        %v633 = vrot.slane %v632, 1
        %v634 = vadd.f32 %v632, %v633
        %s635 = vtos %v634
        %v636 = vrcp.pop 2048.0
        %s637 = vtos %v636
        %s638 = smul.f32 %s635, %s637
        %s639 = smul.f32 %s625, %s625
        %s640 = ssub.f32 %s638, %s639
        %s641 = sadd.f32 %s640, 1e-08
        %v642 = vstv %s641
        %v643 = vrsqrt.pop %v642
        %s644 = vtos %v643
        %v645 = vstv %s644
        %v646 = vmul.f32 %v645, %v602
        %648 = vset.pattern.permute.xlu0 0
        %649 = vperm.xlu0 %648, %v646
        %v650 = vpop.permute.xlu0 %649
        %v652 = vmul.f32 %v589, %v650
        %v653 = vmul.f32 %v590, %v650
        %v654 = vstv %s625
        %v655 = vmul.f32 %v654, %v646
        %v656 = vsub.f32 %v603, %v655
        %658 = vset.pattern.permute.xlu0 0
        %659 = vperm.xlu0 %658, %v656
        %v660 = vpop.permute.xlu0 %659
        %v662 = vadd.f32 %v652, %v660
        %v663 = vadd.f32 %v653, %v660
        %v664 = vld [vmem:[%s4] sm:$0xf]
        %v665 = vld [vmem:[%s4 + $0x4] sm:$0xf]
        %v666 = vpack.c.bf16 %v662, %v662
        %v667 = vpack.c.bf16 %v663, %v663
        %v668 = vld [vmem:[%s5] sm:$0xff]
        %v669 = vld [vmem:[%s5 + $0x8] sm:$0xff]
        %671 = vset.pattern.permute.xlu0 0
        %672 = vperm.xlu0 %671, %v668
        %v673 = vpop.permute.xlu0 %672
        %676 = vset.pattern.permute.xlu0 0
        %677 = vperm.xlu0 %676, %v669
        %v678 = vpop.permute.xlu0 %677
        %v682 = vunpack.c.l.b16 %v664
        %v683 = vunpack.c.l.b16 %v665
        %v684 = vpack.c.b16 %v683, %v682
        %vm685 = vcmask 64512
        %v687 = vsel %vm685, %v684, 0
        %vm689 = vcmask 1043456
        %v691 = vsel %vm689, %v666, 0
        %v694 = vsel %vm689, %v667, 0
        %696 = vmatprep.subr.bf16.mxu0 %v694
        %697 = vmatpush1.bf16.msra.mxu0 %v691
        %698 = vmatprep.subr.bf16.mxu0 0
        %699 = vmatpush1.bf16.msra.mxu0 0
        %700 = vmatprep.subr.bf16.mxu0 0
        %701 = vmatpush1.bf16.msra.mxu0 0
        %702 = vmatprep.subr.bf16.mxu0 0
        %703 = vmatpush1.bf16.msra.mxu0 0
        %704 = vmatprep.subr.bf16.mxu0 0
        %705 = vmatpush1.bf16.msra.mxu0 0
        %706 = vmatprep.subr.bf16.mxu0 0
        %707 = vmatpush1.bf16.msra.mxu0 0
        %708 = vmatprep.subr.bf16.mxu0 0
        %709 = vmatpush1.bf16.msra.mxu0 0
        %710 = vmatprep.subr.bf16.mxu0 0
        %711 = vmatpush1.bf16.msra.mxu0 0
        %712 = vmatprep.subr.bf16.mxu0 0
        %713 = vmatpush1.bf16.msra.mxu0 0
        %714 = vmatprep.subr.bf16.mxu0 0
        %715 = vmatpush1.bf16.msra.mxu0 0
        %716 = vmatprep.subr.bf16.mxu0 0
        %717 = vmatpush1.bf16.msra.mxu0 0
        %718 = vmatprep.subr.bf16.mxu0 0
        %719 = vmatpush1.bf16.msra.mxu0 0
        %720 = vmatprep.subr.bf16.mxu0 0
        %721 = vmatpush1.bf16.msra.mxu0 0
        %722 = vmatprep.subr.bf16.mxu0 0
        %723 = vmatpush1.bf16.msra.mxu0 0
        %724 = vmatprep.subr.bf16.mxu0 0
        %725 = vmatpush1.bf16.msra.mxu0 0
        %726 = vmatprep.subr.bf16.mxu0 0
        %727 = vmatpush1.bf16.msra.mxu0 0
        %728 = vmatprep.mubr.bf16.mxu0 0
        %729 = vmatmul.mubr.bf16.gmra.mrb[0].mxu0 %v687
        %v730 = vpop.f32.mrb[0].mxu0
        %v731 = vadd.f32 %v673, %v730
        %v732 = vpop.f32.mrb[0].mxu0
        %v733 = vadd.f32 %v673, %v732
        %v734 = vpop.f32.mrb[0].mxu0
        %v735 = vadd.f32 %v678, %v734
        %v736 = vpop.f32.mrb[0].mxu0
        %v737 = vadd.f32 %v678, %v736
        %738 = vdwg.mxu0
        %s739 = sld [smem:[#allocation2]]
        %s740 = sld [smem:[#allocation2 + $0x1]]
        %v741 = vld [vmem:[%s6] sm:$0xf]
        %v742 = vld [vmem:[%s6 + $0x4] sm:$0xf]
        %v743 = vpack.c.bf16 %v735, %v731
        %v744 = vpack.c.bf16 %v737, %v733
        %v745 = vld [vmem:[%s7] sm:$0xff]
        %v746 = vld [vmem:[%s7 + $0x8] sm:$0xff]
        %748 = vset.pattern.permute.xlu0 0
        %749 = vperm.xlu0 %748, %v745
        %v750 = vpop.permute.xlu0 %749
        %753 = vset.pattern.permute.xlu0 0
        %754 = vperm.xlu0 %753, %v746
        %v755 = vpop.permute.xlu0 %754
        %v759 = vunpack.c.l.b16 %v741
        %v760 = vunpack.c.l.b16 %v742
        %v761 = vpack.c.b16 %v760, %v759
        %vm762 = vcmask 130048
        %v764 = vsel %vm762, %v761, 0
        %766 = vmatprep.subr.bf16.mxu0 %v744
        %767 = vmatpush1.bf16.msra.mxu0 %v743
        %768 = vmatprep.subr.bf16.mxu0 0
        %769 = vmatpush1.bf16.msra.mxu0 0
        %770 = vmatprep.subr.bf16.mxu0 0
        %771 = vmatpush1.bf16.msra.mxu0 0
        %772 = vmatprep.subr.bf16.mxu0 0
        %773 = vmatpush1.bf16.msra.mxu0 0
        %774 = vmatprep.subr.bf16.mxu0 0
        %775 = vmatpush1.bf16.msra.mxu0 0
        %776 = vmatprep.subr.bf16.mxu0 0
        %777 = vmatpush1.bf16.msra.mxu0 0
        %778 = vmatprep.subr.bf16.mxu0 0
        %779 = vmatpush1.bf16.msra.mxu0 0
        %780 = vmatprep.subr.bf16.mxu0 0
        %781 = vmatpush1.bf16.msra.mxu0 0
        %782 = vmatprep.subr.bf16.mxu0 0
        %783 = vmatpush1.bf16.msra.mxu0 0
        %784 = vmatprep.subr.bf16.mxu0 0
        %785 = vmatpush1.bf16.msra.mxu0 0
        %786 = vmatprep.subr.bf16.mxu0 0
        %787 = vmatpush1.bf16.msra.mxu0 0
        %788 = vmatprep.subr.bf16.mxu0 0
        %789 = vmatpush1.bf16.msra.mxu0 0
        %790 = vmatprep.subr.bf16.mxu0 0
        %791 = vmatpush1.bf16.msra.mxu0 0
        %792 = vmatprep.subr.bf16.mxu0 0
        %793 = vmatpush1.bf16.msra.mxu0 0
        %794 = vmatprep.subr.bf16.mxu0 0
        %795 = vmatpush1.bf16.msra.mxu0 0
        %796 = vmatprep.subr.bf16.mxu0 0
        %797 = vmatpush1.bf16.msra.mxu0 0
        %798 = vmatprep.mubr.bf16.mxu0 0
        %799 = vmatmul.mubr.bf16.gmra.mrb[0].mxu0 %v764
        %v800 = vpop.f32.mrb[0].mxu0
        %v801 = vadd.f32 %v750, %v800
        %v802 = vpop.f32.mrb[0].mxu0
        %v803 = vadd.f32 %v750, %v802
        %v804 = vpop.f32.mrb[0].mxu0
        %v805 = vadd.f32 %v755, %v804
        %v806 = vpop.f32.mrb[0].mxu0
        %v807 = vadd.f32 %v755, %v806
        %808 = vdwg.mxu0
        %vm809 = vcmp.ge.f32.partialorder %v801, 0.0
        %vm810 = vcmp.ge.f32.partialorder %v803, 0.0
        %vm811 = vcmp.ge.f32.partialorder %v805, 0.0
        %vm812 = vcmp.ge.f32.partialorder %v807, 0.0
        %v813 = vstv %s739
        %v814 = vmul.f32 %v813, %v801
        %v815 = vmul.f32 %v813, %v803
        %v816 = vmul.f32 %v813, %v805
        %v817 = vmul.f32 %v813, %v807
        %v818 = vsel %vm809, %v801, %v814
        %v819 = vsel %vm810, %v803, %v815
        %v820 = vsel %vm811, %v805, %v816
        %v821 = vsel %vm812, %v807, %v817
        %v822 = vld [vmem:[%s8] sm:$0xff]
        %v823 = vld [vmem:[%s8 + $0x8] sm:$0xff]
        %v824 = vld [vmem:[%s9] sm:$0xff]
        %v825 = vld [vmem:[%s9 + $0x8] sm:$0xff]
        %v826 = vadd.f32 %v818, %v819
        %827 = vadd.xlane.f32.xlu0 %v826
        %v828 = vpop.xlane.xlu0 %827
        %v829 = vadd.f32 %v820, %v821
        %830 = vadd.xlane.f32.xlu0 %v829
        %v831 = vpop.xlane.xlu0 %830
        %v832 = vmul.f32 %v818, %v818
        %v833 = vmul.f32 %v819, %v819
        %v834 = vmul.f32 %v820, %v820
        %v835 = vmul.f32 %v821, %v821
        %v836 = vadd.f32 %v832, %v833
        %837 = vadd.xlane.f32.xlu0 %v836
        %v838 = vpop.xlane.xlu0 %837
        %v839 = vadd.f32 %v834, %v835
        %840 = vadd.xlane.f32.xlu0 %v839
        %v841 = vpop.xlane.xlu0 %840
        %v842 = vsel %vm612, %v828, 0.0
        %v843 = vsel %vm612, %v831, 0.0
        %v844 = vadd.f32 %v842, %v843
        %845 = vadd.xlane.f32.xlu0 %v844
        %v846 = vpop.xlane.xlu0 %845
        %v847 = vrot.slane %v846, 4
        %v848 = vadd.f32 %v846, %v847
        %v849 = vrot.slane %v848, 2
        %v850 = vadd.f32 %v848, %v849
        %v851 = vrot.slane %v850, 1
        %v852 = vadd.f32 %v850, %v851
        %s853 = vtos %v852
        %v854 = vrcp.pop 4096.0
        %s855 = vtos %v854
        %s856 = smul.f32 %s853, %s855
        %v857 = vsel %vm612, %v838, 0.0
        %v858 = vsel %vm612, %v841, 0.0
        %v859 = vadd.f32 %v857, %v858
        %860 = vadd.xlane.f32.xlu0 %v859
        %v861 = vpop.xlane.xlu0 %860
        %v862 = vrot.slane %v861, 4
        %v863 = vadd.f32 %v861, %v862
        %v864 = vrot.slane %v863, 2
        %v865 = vadd.f32 %v863, %v864
        %v866 = vrot.slane %v865, 1
        %v867 = vadd.f32 %v865, %v866
        %s868 = vtos %v867
        %v869 = vrcp.pop 4096.0
        %s870 = vtos %v869
        %s871 = smul.f32 %s868, %s870
        %s872 = smul.f32 %s856, %s856
        %s873 = ssub.f32 %s871, %s872
        %s874 = sadd.f32 %s873, 1e-08
        %v875 = vstv %s874
        %v876 = vrsqrt.pop %v875
        %s877 = vtos %v876
        %v878 = vstv %s877
        %v879 = vmul.f32 %v878, %v822
        %v880 = vmul.f32 %v878, %v823
        %882 = vset.pattern.permute.xlu0 0
        %883 = vperm.xlu0 %882, %v879
        %v884 = vpop.permute.xlu0 %883
        %887 = vset.pattern.permute.xlu0 0
        %888 = vperm.xlu0 %887, %v880
        %v889 = vpop.permute.xlu0 %888
        %v891 = vmul.f32 %v818, %v884
        %v892 = vmul.f32 %v819, %v884
        %v893 = vmul.f32 %v820, %v889
        %v894 = vmul.f32 %v821, %v889
        %v895 = vstv %s856
        %v896 = vmul.f32 %v895, %v879
        %v897 = vmul.f32 %v895, %v880
        %v898 = vsub.f32 %v824, %v896
        %v899 = vsub.f32 %v825, %v897
        %901 = vset.pattern.permute.xlu0 0
        %902 = vperm.xlu0 %901, %v898
        %v903 = vpop.permute.xlu0 %902
        %906 = vset.pattern.permute.xlu0 0
        %907 = vperm.xlu0 %906, %v899
        %v908 = vpop.permute.xlu0 %907
        %v910 = vadd.f32 %v891, %v903
        %v911 = vadd.f32 %v892, %v903
        %v912 = vadd.f32 %v893, %v908
        %v913 = vadd.f32 %v894, %v908
        %914 = vrot.lane.b32.xlu0 %v910, 1
        %v915 = vpop.permute.xlu0 %914
        %916 = vrot.lane.b32.xlu0 %v912, 1
        %v917 = vpop.permute.xlu0 %916
        %918 = vrot.lane.b32.xlu0 %v911, 1
        %v919 = vpop.permute.xlu0 %918
        %920 = vrot.lane.b32.xlu0 %v913, 1
        %v921 = vpop.permute.xlu0 %920
        %vm922 = vcmp.lt.s32.totalorder %v592, 1
        %v923 = vsel %vm922, %v915, %v919
        %v924 = vsel %vm922, %v917, %v921
        %v925 = vsel %vm922, %v919, %v915
        %v926 = vsel %vm922, %v921, %v917
        %v927 = vsel %vm594, %v925, 0.0
        %v928 = vsel %vm595, %v923, 0.0
        %v929 = vsel %vm594, %v926, 0.0
        %v930 = vsel %vm595, %v924, 0.0
        %931 = vrot.lane.b32.xlu0 %v910, 127
        %v932 = vpop.permute.xlu0 %931
        %933 = vrot.lane.b32.xlu0 %v912, 127
        %v934 = vpop.permute.xlu0 %933
        %935 = vrot.lane.b32.xlu0 %v911, 127
        %v936 = vpop.permute.xlu0 %935
        %937 = vrot.lane.b32.xlu0 %v913, 127
        %v938 = vpop.permute.xlu0 %937
        %vm939 = vcmp.lt.s32.totalorder %v592, 127
        %v940 = vsel %vm939, %v932, %v936
        %v941 = vsel %vm939, %v934, %v938
        %v942 = vsel %vm939, %v936, %v932
        %v943 = vsel %vm939, %v938, %v934
        %v944 = vsel %vm596, %v940, 0.0
        %v945 = vsel %vm597, %v942, 0.0
        %v946 = vsel %vm596, %v941, 0.0
        %v947 = vsel %vm597, %v943, 0.0
        %v948 = vld [vmem:[%s10] sm:$0xff]
        %v949 = vld [vmem:[%s10 + $0x8] sm:$0xff]
        %951 = vset.pattern.permute.xlu0 0
        %952 = vperm.xlu0 %951, %v948
        %v953 = vpop.permute.xlu0 %952
        %956 = vset.pattern.permute.xlu0 0
        %957 = vperm.xlu0 %956, %v949
        %v958 = vpop.permute.xlu0 %957
        %v960 = vmul.f32 %v953, %v927
        %v961 = vmul.f32 %v953, %v928
        %v962 = vmul.f32 %v958, %v929
        %v963 = vmul.f32 %v958, %v930
        %964 = vset.pattern.permute.xlu0 1
        %965 = vperm.xlu0 %964, %v948
        %v966 = vpop.permute.xlu0 %965
        %968 = vset.pattern.permute.xlu0 1
        %969 = vperm.xlu0 %968, %v949
        %v970 = vpop.permute.xlu0 %969
        %v972 = vmul.f32 %v966, %v910
        %v973 = vmul.f32 %v966, %v911
        %v974 = vmul.f32 %v970, %v912
        %v975 = vmul.f32 %v970, %v913
        %v976 = vadd.f32 %v960, %v972
        %v977 = vadd.f32 %v961, %v973
        %v978 = vadd.f32 %v962, %v974
        %v979 = vadd.f32 %v963, %v975
        %980 = vset.pattern.permute.xlu0 2
        %981 = vperm.xlu0 %980, %v948
        %v982 = vpop.permute.xlu0 %981
        %984 = vset.pattern.permute.xlu0 2
        %985 = vperm.xlu0 %984, %v949
        %v986 = vpop.permute.xlu0 %985
        %v988 = vmul.f32 %v982, %v944
        %v989 = vmul.f32 %v982, %v945
        %v990 = vmul.f32 %v986, %v946
        %v991 = vmul.f32 %v986, %v947
        %v992 = vadd.f32 %v976, %v988
        %v993 = vadd.f32 %v977, %v989
        %v994 = vadd.f32 %v978, %v990
        %v995 = vadd.f32 %v979, %v991
        %996 = vset.pattern.permute.xlu0 3
        %997 = vperm.xlu0 %996, %v948
        %v998 = vpop.permute.xlu0 %997
        %1000 = vset.pattern.permute.xlu0 3
        %1001 = vperm.xlu0 %1000, %v949
        %v1002 = vpop.permute.xlu0 %1001
        %v1004 = vmul.f32 %v998, %v927
        %v1005 = vmul.f32 %v998, %v928
        %v1006 = vmul.f32 %v1002, %v929
        %v1007 = vmul.f32 %v1002, %v930
        %1008 = vset.pattern.permute.xlu0 4
        %1009 = vperm.xlu0 %1008, %v948
        %v1010 = vpop.permute.xlu0 %1009
        %1012 = vset.pattern.permute.xlu0 4
        %1013 = vperm.xlu0 %1012, %v949
        %v1014 = vpop.permute.xlu0 %1013
        %v1016 = vmul.f32 %v1010, %v910
        %v1017 = vmul.f32 %v1010, %v911
        %v1018 = vmul.f32 %v1014, %v912
        %v1019 = vmul.f32 %v1014, %v913
        %v1020 = vadd.f32 %v1004, %v1016
        %v1021 = vadd.f32 %v1005, %v1017
        %v1022 = vadd.f32 %v1006, %v1018
        %v1023 = vadd.f32 %v1007, %v1019
        %1024 = vset.pattern.permute.xlu0 5
        %1025 = vperm.xlu0 %1024, %v948
        %v1026 = vpop.permute.xlu0 %1025
        %1028 = vset.pattern.permute.xlu0 5
        %1029 = vperm.xlu0 %1028, %v949
        %v1030 = vpop.permute.xlu0 %1029
        %v1032 = vmul.f32 %v1026, %v944
        %v1033 = vmul.f32 %v1026, %v945
        %v1034 = vmul.f32 %v1030, %v946
        %v1035 = vmul.f32 %v1030, %v947
        %v1036 = vadd.f32 %v1020, %v1032
        %v1037 = vadd.f32 %v1021, %v1033
        %v1038 = vadd.f32 %v1022, %v1034
        %v1039 = vadd.f32 %v1023, %v1035
        %v1040 = vld [vmem:[%s11] sm:$0xff]
        %v1041 = vld [vmem:[%s11 + $0x8] sm:$0xff]
        %v1042 = vld [vmem:[%s11 + $0x10] sm:$0xff]
        %v1043 = vld [vmem:[%s11 + $0x18] sm:$0xff]
        %1045 = vset.pattern.permute.xlu0 0
        %1046 = vperm.xlu0 %1045, %v1040
        %v1047 = vpop.permute.xlu0 %1046
        %1050 = vset.pattern.permute.xlu0 0
        %1051 = vperm.xlu0 %1050, %v1041
        %v1052 = vpop.permute.xlu0 %1051
        %1055 = vset.pattern.permute.xlu0 0
        %1056 = vperm.xlu0 %1055, %v1042
        %v1057 = vpop.permute.xlu0 %1056
        %1060 = vset.pattern.permute.xlu0 0
        %1061 = vperm.xlu0 %1060, %v1043
        %v1062 = vpop.permute.xlu0 %1061
        %v1064 = vadd.f32 %v992, %v1047
        %v1065 = vadd.f32 %v993, %v1047
        %v1066 = vadd.f32 %v994, %v1052
        %v1067 = vadd.f32 %v995, %v1052
        %v1068 = vadd.f32 %v1036, %v1057
        %v1069 = vadd.f32 %v1037, %v1057
        %v1070 = vadd.f32 %v1038, %v1062
        %v1071 = vadd.f32 %v1039, %v1062
        %vm1072 = vcmp.ge.f32.partialorder %v1064, 0.0
        %vm1073 = vcmp.ge.f32.partialorder %v1065, 0.0
        %vm1074 = vcmp.ge.f32.partialorder %v1066, 0.0
        %vm1075 = vcmp.ge.f32.partialorder %v1067, 0.0
        %vm1076 = vcmp.ge.f32.partialorder %v1068, 0.0
        %vm1077 = vcmp.ge.f32.partialorder %v1069, 0.0
        %vm1078 = vcmp.ge.f32.partialorder %v1070, 0.0
        %vm1079 = vcmp.ge.f32.partialorder %v1071, 0.0
        %v1080 = vstv %s740
        %v1081 = vmul.f32 %v1080, %v1064
        %v1082 = vmul.f32 %v1080, %v1065
        %v1083 = vmul.f32 %v1080, %v1066
        %v1084 = vmul.f32 %v1080, %v1067
        %v1085 = vmul.f32 %v1080, %v1068
        %v1086 = vmul.f32 %v1080, %v1069
        %v1087 = vmul.f32 %v1080, %v1070
        %v1088 = vmul.f32 %v1080, %v1071
        %v1089 = vsel %vm1072, %v1064, %v1081
        %v1090 = vsel %vm1073, %v1065, %v1082
        %v1091 = vsel %vm1074, %v1066, %v1083
        %v1092 = vsel %vm1075, %v1067, %v1084
        %v1093 = vsel %vm1076, %v1068, %v1085
        %v1094 = vsel %vm1077, %v1069, %v1086
        %v1095 = vsel %vm1078, %v1070, %v1087
        %v1096 = vsel %vm1079, %v1071, %v1088
        %v1097 = vld [vmem:[%s12] sm:$0xff]
        %v1098 = vld [vmem:[%s12 + $0x8] sm:$0xff]
        %v1099 = vld [vmem:[%s12 + $0x10] sm:$0xff]
        %v1100 = vld [vmem:[%s12 + $0x18] sm:$0xff]
        %v1101 = vld [vmem:[%s13] sm:$0xff]
        %v1102 = vld [vmem:[%s13 + $0x8] sm:$0xff]
        %v1103 = vld [vmem:[%s13 + $0x10] sm:$0xff]
        %v1104 = vld [vmem:[%s13 + $0x18] sm:$0xff]
        %v1105 = vadd.f32 %v1089, %v1090
        %1106 = vadd.xlane.f32.xlu0 %v1105
        %v1107 = vpop.xlane.xlu0 %1106
        %v1108 = vadd.f32 %v1091, %v1092
        %1109 = vadd.xlane.f32.xlu0 %v1108
        %v1110 = vpop.xlane.xlu0 %1109
        %v1111 = vadd.f32 %v1093, %v1094
        %1112 = vadd.xlane.f32.xlu0 %v1111
        %v1113 = vpop.xlane.xlu0 %1112
        %v1114 = vadd.f32 %v1095, %v1096
        %1115 = vadd.xlane.f32.xlu0 %v1114
        %v1116 = vpop.xlane.xlu0 %1115
        %v1117 = vmul.f32 %v1089, %v1089
        %v1118 = vmul.f32 %v1090, %v1090
        %v1119 = vmul.f32 %v1091, %v1091
        %v1120 = vmul.f32 %v1092, %v1092
        %v1121 = vmul.f32 %v1093, %v1093
        %v1122 = vmul.f32 %v1094, %v1094
        %v1123 = vmul.f32 %v1095, %v1095
        %v1124 = vmul.f32 %v1096, %v1096
        %v1125 = vadd.f32 %v1117, %v1118
        %1126 = vadd.xlane.f32.xlu0 %v1125
        %v1127 = vpop.xlane.xlu0 %1126
        %v1128 = vadd.f32 %v1119, %v1120
        %1129 = vadd.xlane.f32.xlu0 %v1128
        %v1130 = vpop.xlane.xlu0 %1129
        %v1131 = vadd.f32 %v1121, %v1122
        %1132 = vadd.xlane.f32.xlu0 %v1131
        %v1133 = vpop.xlane.xlu0 %1132
        %v1134 = vadd.f32 %v1123, %v1124
        %1135 = vadd.xlane.f32.xlu0 %v1134
        %v1136 = vpop.xlane.xlu0 %1135
        %v1137 = vsel %vm612, %v1107, 0.0
        %v1138 = vsel %vm612, %v1110, 0.0
        %v1139 = vadd.f32 %v1137, %v1138
        %v1140 = vsel %vm612, %v1113, 0.0
        %v1141 = vadd.f32 %v1139, %v1140
        %v1142 = vsel %vm612, %v1116, 0.0
        %v1143 = vadd.f32 %v1141, %v1142
        %1144 = vadd.xlane.f32.xlu0 %v1143
        %v1145 = vpop.xlane.xlu0 %1144
        %v1146 = vrot.slane %v1145, 4
        %v1147 = vadd.f32 %v1145, %v1146
        %v1148 = vrot.slane %v1147, 2
        %v1149 = vadd.f32 %v1147, %v1148
        %v1150 = vrot.slane %v1149, 1
        %v1151 = vadd.f32 %v1149, %v1150
        %s1152 = vtos %v1151
        %v1153 = vrcp.pop 8192.0
        %s1154 = vtos %v1153
        %s1155 = smul.f32 %s1152, %s1154
        %v1156 = vsel %vm612, %v1127, 0.0
        %v1157 = vsel %vm612, %v1130, 0.0
        %v1158 = vadd.f32 %v1156, %v1157
        %v1159 = vsel %vm612, %v1133, 0.0
        %v1160 = vadd.f32 %v1158, %v1159
        %v1161 = vsel %vm612, %v1136, 0.0
        %v1162 = vadd.f32 %v1160, %v1161
        %1163 = vadd.xlane.f32.xlu0 %v1162
        %v1164 = vpop.xlane.xlu0 %1163
        %v1165 = vrot.slane %v1164, 4
        %v1166 = vadd.f32 %v1164, %v1165
        %v1167 = vrot.slane %v1166, 2
        %v1168 = vadd.f32 %v1166, %v1167
        %v1169 = vrot.slane %v1168, 1
        %v1170 = vadd.f32 %v1168, %v1169
        %s1171 = vtos %v1170
        %v1172 = vrcp.pop 8192.0
        %s1173 = vtos %v1172
        %s1174 = smul.f32 %s1171, %s1173
        %s1175 = smul.f32 %s1155, %s1155
        %s1176 = ssub.f32 %s1174, %s1175
        %s1177 = sadd.f32 %s1176, 1e-08
        %v1178 = vstv %s1177
        %v1179 = vrsqrt.pop %v1178
        %s1180 = vtos %v1179
        %v1181 = vstv %s1180
        %v1182 = vmul.f32 %v1181, %v1097
        %v1183 = vmul.f32 %v1181, %v1098
        %v1184 = vmul.f32 %v1181, %v1099
        %v1185 = vmul.f32 %v1181, %v1100
        %1187 = vset.pattern.permute.xlu0 0
        %1188 = vperm.xlu0 %1187, %v1182
        %v1189 = vpop.permute.xlu0 %1188
        %1192 = vset.pattern.permute.xlu0 0
        %1193 = vperm.xlu0 %1192, %v1183
        %v1194 = vpop.permute.xlu0 %1193
        %1197 = vset.pattern.permute.xlu0 0
        %1198 = vperm.xlu0 %1197, %v1184
        %v1199 = vpop.permute.xlu0 %1198
        %1202 = vset.pattern.permute.xlu0 0
        %1203 = vperm.xlu0 %1202, %v1185
        %v1204 = vpop.permute.xlu0 %1203
        %v1206 = vmul.f32 %v1089, %v1189
        %v1207 = vmul.f32 %v1090, %v1189
        %v1208 = vmul.f32 %v1091, %v1194
        %v1209 = vmul.f32 %v1092, %v1194
        %v1210 = vmul.f32 %v1093, %v1199
        %v1211 = vmul.f32 %v1094, %v1199
        %v1212 = vmul.f32 %v1095, %v1204
        %v1213 = vmul.f32 %v1096, %v1204
        %v1214 = vstv %s1155
        %v1215 = vmul.f32 %v1214, %v1182
        %v1216 = vmul.f32 %v1214, %v1183
        %v1217 = vmul.f32 %v1214, %v1184
        %v1218 = vmul.f32 %v1214, %v1185
        %v1219 = vsub.f32 %v1101, %v1215
        %v1220 = vsub.f32 %v1102, %v1216
        %v1221 = vsub.f32 %v1103, %v1217
        %v1222 = vsub.f32 %v1104, %v1218
        %1224 = vset.pattern.permute.xlu0 0
        %1225 = vperm.xlu0 %1224, %v1219
        %v1226 = vpop.permute.xlu0 %1225
        %1229 = vset.pattern.permute.xlu0 0
        %1230 = vperm.xlu0 %1229, %v1220
        %v1231 = vpop.permute.xlu0 %1230
        %1234 = vset.pattern.permute.xlu0 0
        %1235 = vperm.xlu0 %1234, %v1221
        %v1236 = vpop.permute.xlu0 %1235
        %1239 = vset.pattern.permute.xlu0 0
        %1240 = vperm.xlu0 %1239, %v1222
        %v1241 = vpop.permute.xlu0 %1240
        %v1243 = vadd.f32 %v1206, %v1226
        %v1244 = vadd.f32 %v1207, %v1226
        %v1245 = vadd.f32 %v1208, %v1231
        %v1246 = vadd.f32 %v1209, %v1231
        %v1247 = vadd.f32 %v1210, %v1236
        %v1248 = vadd.f32 %v1211, %v1236
        %v1249 = vadd.f32 %v1212, %v1241
        %v1250 = vadd.f32 %v1213, %v1241
        %v1251 = vld [vmem:[%s15] sm:$0xff]
        %v1252 = vld [vmem:[%s15 + $0x8] sm:$0xff]
        %1254 = vset.pattern.permute.xlu0 0
        %1255 = vperm.xlu0 %1254, %v1251
        %v1256 = vpop.permute.xlu0 %1255
        %1259 = vset.pattern.permute.xlu0 0
        %1260 = vperm.xlu0 %1259, %v1252
        %v1261 = vpop.permute.xlu0 %1260
        %v1263 = vadd.f32 %v731, %v1256
        %v1264 = vadd.f32 %v733, %v1256
        %v1265 = vadd.f32 %v735, %v1261
        %v1266 = vadd.f32 %v737, %v1261
        %v1267 = vld [vmem:[%s14] sm:$0xf]
        %v1268 = vld [vmem:[%s14 + $0x4] sm:$0xf]
        %v1269 = vpack.c.bf16 %v1245, %v1243
        %v1270 = vpack.c.bf16 %v1246, %v1244
        %v1271 = vpack.c.bf16 %v1249, %v1247
        %v1272 = vpack.c.bf16 %v1250, %v1248
        %v1275 = vunpack.c.l.b16 %v1267
        %v1276 = vunpack.c.l.b16 %v1268
        %v1277 = vpack.c.b16 %v1276, %v1275
        %vm1278 = vcmask 261120
        %v1280 = vsel %vm1278, %v1277, 0
        %1282 = vmatprep.subr.bf16.mxu0 %v1270
        %1283 = vmatpush1.bf16.msra.mxu0 %v1269
        %1284 = vmatprep.subr.bf16.mxu0 %v1272
        %1285 = vmatpush1.bf16.msra.mxu0 %v1271
        %1286 = vmatprep.subr.bf16.mxu0 0
        %1287 = vmatpush1.bf16.msra.mxu0 0
        %1288 = vmatprep.subr.bf16.mxu0 0
        %1289 = vmatpush1.bf16.msra.mxu0 0
        %1290 = vmatprep.subr.bf16.mxu0 0
        %1291 = vmatpush1.bf16.msra.mxu0 0
        %1292 = vmatprep.subr.bf16.mxu0 0
        %1293 = vmatpush1.bf16.msra.mxu0 0
        %1294 = vmatprep.subr.bf16.mxu0 0
        %1295 = vmatpush1.bf16.msra.mxu0 0
        %1296 = vmatprep.subr.bf16.mxu0 0
        %1297 = vmatpush1.bf16.msra.mxu0 0
        %1298 = vmatprep.subr.bf16.mxu0 0
        %1299 = vmatpush1.bf16.msra.mxu0 0
        %1300 = vmatprep.subr.bf16.mxu0 0
        %1301 = vmatpush1.bf16.msra.mxu0 0
        %1302 = vmatprep.subr.bf16.mxu0 0
        %1303 = vmatpush1.bf16.msra.mxu0 0
        %1304 = vmatprep.subr.bf16.mxu0 0
        %1305 = vmatpush1.bf16.msra.mxu0 0
        %1306 = vmatprep.subr.bf16.mxu0 0
        %1307 = vmatpush1.bf16.msra.mxu0 0
        %1308 = vmatprep.subr.bf16.mxu0 0
        %1309 = vmatpush1.bf16.msra.mxu0 0
        %1310 = vmatprep.subr.bf16.mxu0 0
        %1311 = vmatpush1.bf16.msra.mxu0 0
        %1312 = vmatprep.subr.bf16.mxu0 0
        %1313 = vmatpush1.bf16.msra.mxu0 0
        %1314 = vmatprep.mubr.bf16.mxu0 0
        %1315 = vmatmul.mubr.bf16.gmra.mrb[0].mxu0 %v1280
        %v1316 = vpop.f32.mrb[0].mxu0
        %v1317 = vadd.f32 0.0, %v1316
        %v1318 = vpop.f32.mrb[0].mxu0
        %v1319 = vadd.f32 0.0, %v1318
        %v1320 = vpop.f32.mrb[0].mxu0
        %v1321 = vadd.f32 0.0, %v1320
        %v1322 = vpop.f32.mrb[0].mxu0
        %v1323 = vadd.f32 0.0, %v1322
        %1324 = vdwg.mxu0
        %v1325 = vadd.f32 %v1263, %v1317
        %v1326 = vadd.f32 %v1264, %v1319
        %v1327 = vadd.f32 %v1265, %v1321
        %v1328 = vadd.f32 %v1266, %v1323
        %s1329 = sld [smem:[#allocation2 + $0x2]]
        %s1330 = sld [smem:[#allocation2 + $0x3]]
        %s1331 = scalar_lea.vmem %s6, 8
        %v1332 = vld [vmem:[%s1331] sm:$0xf]
        %v1333 = vld [vmem:[%s1331 + $0x4] sm:$0xf]
        %v1334 = vpack.c.bf16 %v1327, %v1325
        %v1335 = vpack.c.bf16 %v1328, %v1326
        %s1336 = scalar_lea.vmem %s7, 16
        %v1337 = vld [vmem:[%s1336] sm:$0xff]
        %v1338 = vld [vmem:[%s1336 + $0x8] sm:$0xff]
        %1340 = vset.pattern.permute.xlu0 0
        %1341 = vperm.xlu0 %1340, %v1337
        %v1342 = vpop.permute.xlu0 %1341
        %1345 = vset.pattern.permute.xlu0 0
        %1346 = vperm.xlu0 %1345, %v1338
        %v1347 = vpop.permute.xlu0 %1346
        %v1351 = vunpack.c.l.b16 %v1332
        %v1352 = vunpack.c.l.b16 %v1333
        %v1353 = vpack.c.b16 %v1352, %v1351
        %v1355 = vsel %vm762, %v1353, 0
        %1357 = vmatprep.subr.bf16.mxu0 %v1335
        %1358 = vmatpush1.bf16.msra.mxu0 %v1334
        %1359 = vmatprep.subr.bf16.mxu0 0
        %1360 = vmatpush1.bf16.msra.mxu0 0
        %1361 = vmatprep.subr.bf16.mxu0 0
        %1362 = vmatpush1.bf16.msra.mxu0 0
        %1363 = vmatprep.subr.bf16.mxu0 0
        %1364 = vmatpush1.bf16.msra.mxu0 0
        %1365 = vmatprep.subr.bf16.mxu0 0
        %1366 = vmatpush1.bf16.msra.mxu0 0
        %1367 = vmatprep.subr.bf16.mxu0 0
        %1368 = vmatpush1.bf16.msra.mxu0 0
        %1369 = vmatprep.subr.bf16.mxu0 0
        %1370 = vmatpush1.bf16.msra.mxu0 0
        %1371 = vmatprep.subr.bf16.mxu0 0
        %1372 = vmatpush1.bf16.msra.mxu0 0
        %1373 = vmatprep.subr.bf16.mxu0 0
        %1374 = vmatpush1.bf16.msra.mxu0 0
        %1375 = vmatprep.subr.bf16.mxu0 0
        %1376 = vmatpush1.bf16.msra.mxu0 0
        %1377 = vmatprep.subr.bf16.mxu0 0
        %1378 = vmatpush1.bf16.msra.mxu0 0
        %1379 = vmatprep.subr.bf16.mxu0 0
        %1380 = vmatpush1.bf16.msra.mxu0 0
        %1381 = vmatprep.subr.bf16.mxu0 0
        %1382 = vmatpush1.bf16.msra.mxu0 0
        %1383 = vmatprep.subr.bf16.mxu0 0
        %1384 = vmatpush1.bf16.msra.mxu0 0
        %1385 = vmatprep.subr.bf16.mxu0 0
        %1386 = vmatpush1.bf16.msra.mxu0 0
        %1387 = vmatprep.subr.bf16.mxu0 0
        %1388 = vmatpush1.bf16.msra.mxu0 0
        %1389 = vmatprep.mubr.bf16.mxu0 0
        %1390 = vmatmul.mubr.bf16.gmra.mrb[0].mxu0 %v1355
        %v1391 = vpop.f32.mrb[0].mxu0
        %v1392 = vadd.f32 %v1342, %v1391
        %v1393 = vpop.f32.mrb[0].mxu0
        %v1394 = vadd.f32 %v1342, %v1393
        %v1395 = vpop.f32.mrb[0].mxu0
        %v1396 = vadd.f32 %v1347, %v1395
        %v1397 = vpop.f32.mrb[0].mxu0
        %v1398 = vadd.f32 %v1347, %v1397
        %1399 = vdwg.mxu0
        %vm1400 = vcmp.ge.f32.partialorder %v1392, 0.0
        %vm1401 = vcmp.ge.f32.partialorder %v1394, 0.0
        %vm1402 = vcmp.ge.f32.partialorder %v1396, 0.0
        %vm1403 = vcmp.ge.f32.partialorder %v1398, 0.0
        %v1404 = vstv %s1329
        %v1405 = vmul.f32 %v1404, %v1392
        %v1406 = vmul.f32 %v1404, %v1394
        %v1407 = vmul.f32 %v1404, %v1396
        %v1408 = vmul.f32 %v1404, %v1398
        %v1409 = vsel %vm1400, %v1392, %v1405
        %v1410 = vsel %vm1401, %v1394, %v1406
        %v1411 = vsel %vm1402, %v1396, %v1407
        %v1412 = vsel %vm1403, %v1398, %v1408
        %s1413 = scalar_lea.vmem %s8, 16
        %v1414 = vld [vmem:[%s1413] sm:$0xff]
        %v1415 = vld [vmem:[%s1413 + $0x8] sm:$0xff]
        %s1416 = scalar_lea.vmem %s9, 16
        %v1417 = vld [vmem:[%s1416] sm:$0xff]
        %v1418 = vld [vmem:[%s1416 + $0x8] sm:$0xff]
        %v1419 = vadd.f32 %v1409, %v1410
        %1420 = vadd.xlane.f32.xlu0 %v1419
        %v1421 = vpop.xlane.xlu0 %1420
        %v1422 = vadd.f32 %v1411, %v1412
        %1423 = vadd.xlane.f32.xlu0 %v1422
        %v1424 = vpop.xlane.xlu0 %1423
        %v1425 = vmul.f32 %v1409, %v1409
        %v1426 = vmul.f32 %v1410, %v1410
        %v1427 = vmul.f32 %v1411, %v1411
        %v1428 = vmul.f32 %v1412, %v1412
        %v1429 = vadd.f32 %v1425, %v1426
        %1430 = vadd.xlane.f32.xlu0 %v1429
        %v1431 = vpop.xlane.xlu0 %1430
        %v1432 = vadd.f32 %v1427, %v1428
        %1433 = vadd.xlane.f32.xlu0 %v1432
        %v1434 = vpop.xlane.xlu0 %1433
        %v1435 = vsel %vm612, %v1421, 0.0
        %v1436 = vsel %vm612, %v1424, 0.0
        %v1437 = vadd.f32 %v1435, %v1436
        %1438 = vadd.xlane.f32.xlu0 %v1437
        %v1439 = vpop.xlane.xlu0 %1438
        %v1440 = vrot.slane %v1439, 4
        %v1441 = vadd.f32 %v1439, %v1440
        %v1442 = vrot.slane %v1441, 2
        %v1443 = vadd.f32 %v1441, %v1442
        %v1444 = vrot.slane %v1443, 1
        %v1445 = vadd.f32 %v1443, %v1444
        %s1446 = vtos %v1445
        %v1447 = vrcp.pop 4096.0
        %s1448 = vtos %v1447
        %s1449 = smul.f32 %s1446, %s1448
        %v1450 = vsel %vm612, %v1431, 0.0
        %v1451 = vsel %vm612, %v1434, 0.0
        %v1452 = vadd.f32 %v1450, %v1451
        %1453 = vadd.xlane.f32.xlu0 %v1452
        %v1454 = vpop.xlane.xlu0 %1453
        %v1455 = vrot.slane %v1454, 4
        %v1456 = vadd.f32 %v1454, %v1455
        %v1457 = vrot.slane %v1456, 2
        %v1458 = vadd.f32 %v1456, %v1457
        %v1459 = vrot.slane %v1458, 1
        %v1460 = vadd.f32 %v1458, %v1459
        %s1461 = vtos %v1460
        %v1462 = vrcp.pop 4096.0
        %s1463 = vtos %v1462
        %s1464 = smul.f32 %s1461, %s1463
        %s1465 = smul.f32 %s1449, %s1449
        %s1466 = ssub.f32 %s1464, %s1465
        %s1467 = sadd.f32 %s1466, 1e-08
        %v1468 = vstv %s1467
        %v1469 = vrsqrt.pop %v1468
        %s1470 = vtos %v1469
        %v1471 = vstv %s1470
        %v1472 = vmul.f32 %v1471, %v1414
        %v1473 = vmul.f32 %v1471, %v1415
        %1475 = vset.pattern.permute.xlu0 0
        %1476 = vperm.xlu0 %1475, %v1472
        %v1477 = vpop.permute.xlu0 %1476
        %1480 = vset.pattern.permute.xlu0 0
        %1481 = vperm.xlu0 %1480, %v1473
        %v1482 = vpop.permute.xlu0 %1481
        %v1484 = vmul.f32 %v1409, %v1477
        %v1485 = vmul.f32 %v1410, %v1477
        %v1486 = vmul.f32 %v1411, %v1482
        %v1487 = vmul.f32 %v1412, %v1482
        %v1488 = vstv %s1449
        %v1489 = vmul.f32 %v1488, %v1472
        %v1490 = vmul.f32 %v1488, %v1473
        %v1491 = vsub.f32 %v1417, %v1489
        %v1492 = vsub.f32 %v1418, %v1490
        %1494 = vset.pattern.permute.xlu0 0
        %1495 = vperm.xlu0 %1494, %v1491
        %v1496 = vpop.permute.xlu0 %1495
        %1499 = vset.pattern.permute.xlu0 0
        %1500 = vperm.xlu0 %1499, %v1492
        %v1501 = vpop.permute.xlu0 %1500
        %v1503 = vadd.f32 %v1484, %v1496
        %v1504 = vadd.f32 %v1485, %v1496
        %v1505 = vadd.f32 %v1486, %v1501
        %v1506 = vadd.f32 %v1487, %v1501
        %1507 = vrot.lane.b32.xlu0 %v1503, 2
        %v1508 = vpop.permute.xlu0 %1507
        %1509 = vrot.lane.b32.xlu0 %v1505, 2
        %v1510 = vpop.permute.xlu0 %1509
        %1511 = vrot.lane.b32.xlu0 %v1504, 2
        %v1512 = vpop.permute.xlu0 %1511
        %1513 = vrot.lane.b32.xlu0 %v1506, 2
        %v1514 = vpop.permute.xlu0 %1513
        %vm1515 = vcmp.lt.s32.totalorder %v592, 2
        %v1516 = vsel %vm1515, %v1508, %v1512
        %v1517 = vsel %vm1515, %v1510, %v1514
        %v1518 = vsel %vm1515, %v1512, %v1508
        %v1519 = vsel %vm1515, %v1514, %v1510
        %v1520 = vsel %vm598, %v1518, 0.0
        %v1521 = vsel %vm599, %v1516, 0.0
        %v1522 = vsel %vm598, %v1519, 0.0
        %v1523 = vsel %vm599, %v1517, 0.0
        %1524 = vrot.lane.b32.xlu0 %v1503, 126
        %v1525 = vpop.permute.xlu0 %1524
        %1526 = vrot.lane.b32.xlu0 %v1505, 126
        %v1527 = vpop.permute.xlu0 %1526
        %1528 = vrot.lane.b32.xlu0 %v1504, 126
        %v1529 = vpop.permute.xlu0 %1528
        %1530 = vrot.lane.b32.xlu0 %v1506, 126
        %v1531 = vpop.permute.xlu0 %1530
        %vm1532 = vcmp.lt.s32.totalorder %v592, 126
        %v1533 = vsel %vm1532, %v1525, %v1529
        %v1534 = vsel %vm1532, %v1527, %v1531
        %v1535 = vsel %vm1532, %v1529, %v1525
        %v1536 = vsel %vm1532, %v1531, %v1527
        %v1537 = vsel %vm600, %v1533, 0.0
        %v1538 = vsel %vm601, %v1535, 0.0
        %v1539 = vsel %vm600, %v1534, 0.0
        %v1540 = vsel %vm601, %v1536, 0.0
        %s1541 = scalar_lea.vmem %s10, 16
        %v1542 = vld [vmem:[%s1541] sm:$0xff]
        %v1543 = vld [vmem:[%s1541 + $0x8] sm:$0xff]
        %1545 = vset.pattern.permute.xlu0 0
        %1546 = vperm.xlu0 %1545, %v1542
        %v1547 = vpop.permute.xlu0 %1546
        %1550 = vset.pattern.permute.xlu0 0
        %1551 = vperm.xlu0 %1550, %v1543
        %v1552 = vpop.permute.xlu0 %1551
        %v1554 = vmul.f32 %v1547, %v1520
        %v1555 = vmul.f32 %v1547, %v1521
        %v1556 = vmul.f32 %v1552, %v1522
        %v1557 = vmul.f32 %v1552, %v1523
        %1558 = vset.pattern.permute.xlu0 1
        %1559 = vperm.xlu0 %1558, %v1542
        %v1560 = vpop.permute.xlu0 %1559
        %1562 = vset.pattern.permute.xlu0 1
        %1563 = vperm.xlu0 %1562, %v1543
        %v1564 = vpop.permute.xlu0 %1563
        %v1566 = vmul.f32 %v1560, %v1503
        %v1567 = vmul.f32 %v1560, %v1504
        %v1568 = vmul.f32 %v1564, %v1505
        %v1569 = vmul.f32 %v1564, %v1506
        %v1570 = vadd.f32 %v1554, %v1566
        %v1571 = vadd.f32 %v1555, %v1567
        %v1572 = vadd.f32 %v1556, %v1568
        %v1573 = vadd.f32 %v1557, %v1569
        %1574 = vset.pattern.permute.xlu0 2
        %1575 = vperm.xlu0 %1574, %v1542
        %v1576 = vpop.permute.xlu0 %1575
        %1578 = vset.pattern.permute.xlu0 2
        %1579 = vperm.xlu0 %1578, %v1543
        %v1580 = vpop.permute.xlu0 %1579
        %v1582 = vmul.f32 %v1576, %v1537
        %v1583 = vmul.f32 %v1576, %v1538
        %v1584 = vmul.f32 %v1580, %v1539
        %v1585 = vmul.f32 %v1580, %v1540
        %v1586 = vadd.f32 %v1570, %v1582
        %v1587 = vadd.f32 %v1571, %v1583
        %v1588 = vadd.f32 %v1572, %v1584
        %v1589 = vadd.f32 %v1573, %v1585
        %1590 = vset.pattern.permute.xlu0 3
        %1591 = vperm.xlu0 %1590, %v1542
        %v1592 = vpop.permute.xlu0 %1591
        %1594 = vset.pattern.permute.xlu0 3
        %1595 = vperm.xlu0 %1594, %v1543
        %v1596 = vpop.permute.xlu0 %1595
        %v1598 = vmul.f32 %v1592, %v1520
        %v1599 = vmul.f32 %v1592, %v1521
        %v1600 = vmul.f32 %v1596, %v1522
        %v1601 = vmul.f32 %v1596, %v1523
        %1602 = vset.pattern.permute.xlu0 4
        %1603 = vperm.xlu0 %1602, %v1542
        %v1604 = vpop.permute.xlu0 %1603
        %1606 = vset.pattern.permute.xlu0 4
        %1607 = vperm.xlu0 %1606, %v1543
        %v1608 = vpop.permute.xlu0 %1607
        %v1610 = vmul.f32 %v1604, %v1503
        %v1611 = vmul.f32 %v1604, %v1504
        %v1612 = vmul.f32 %v1608, %v1505
        %v1613 = vmul.f32 %v1608, %v1506
        %v1614 = vadd.f32 %v1598, %v1610
        %v1615 = vadd.f32 %v1599, %v1611
        %v1616 = vadd.f32 %v1600, %v1612
        %v1617 = vadd.f32 %v1601, %v1613
        %1618 = vset.pattern.permute.xlu0 5
        %1619 = vperm.xlu0 %1618, %v1542
        %v1620 = vpop.permute.xlu0 %1619
        %1622 = vset.pattern.permute.xlu0 5
        %1623 = vperm.xlu0 %1622, %v1543
        %v1624 = vpop.permute.xlu0 %1623
        %v1626 = vmul.f32 %v1620, %v1537
        %v1627 = vmul.f32 %v1620, %v1538
        %v1628 = vmul.f32 %v1624, %v1539
        %v1629 = vmul.f32 %v1624, %v1540
        %v1630 = vadd.f32 %v1614, %v1626
        %v1631 = vadd.f32 %v1615, %v1627
        %v1632 = vadd.f32 %v1616, %v1628
        %v1633 = vadd.f32 %v1617, %v1629
        %s1634 = scalar_lea.vmem %s11, 32
        %v1635 = vld [vmem:[%s1634] sm:$0xff]
        %v1636 = vld [vmem:[%s1634 + $0x8] sm:$0xff]
        %v1637 = vld [vmem:[%s1634 + $0x10] sm:$0xff]
        %v1638 = vld [vmem:[%s1634 + $0x18] sm:$0xff]
        %1640 = vset.pattern.permute.xlu0 0
        %1641 = vperm.xlu0 %1640, %v1635
        %v1642 = vpop.permute.xlu0 %1641
        %1645 = vset.pattern.permute.xlu0 0
        %1646 = vperm.xlu0 %1645, %v1636
        %v1647 = vpop.permute.xlu0 %1646
        %1650 = vset.pattern.permute.xlu0 0
        %1651 = vperm.xlu0 %1650, %v1637
        %v1652 = vpop.permute.xlu0 %1651
        %1655 = vset.pattern.permute.xlu0 0
        %1656 = vperm.xlu0 %1655, %v1638
        %v1657 = vpop.permute.xlu0 %1656
        %v1659 = vadd.f32 %v1586, %v1642
        %v1660 = vadd.f32 %v1587, %v1642
        %v1661 = vadd.f32 %v1588, %v1647
        %v1662 = vadd.f32 %v1589, %v1647
        %v1663 = vadd.f32 %v1630, %v1652
        %v1664 = vadd.f32 %v1631, %v1652
        %v1665 = vadd.f32 %v1632, %v1657
        %v1666 = vadd.f32 %v1633, %v1657
        %vm1667 = vcmp.ge.f32.partialorder %v1659, 0.0
        %vm1668 = vcmp.ge.f32.partialorder %v1660, 0.0
        %vm1669 = vcmp.ge.f32.partialorder %v1661, 0.0
        %vm1670 = vcmp.ge.f32.partialorder %v1662, 0.0
        %vm1671 = vcmp.ge.f32.partialorder %v1663, 0.0
        %vm1672 = vcmp.ge.f32.partialorder %v1664, 0.0
        %vm1673 = vcmp.ge.f32.partialorder %v1665, 0.0
        %vm1674 = vcmp.ge.f32.partialorder %v1666, 0.0
        %v1675 = vstv %s1330
        %v1676 = vmul.f32 %v1675, %v1659
        %v1677 = vmul.f32 %v1675, %v1660
        %v1678 = vmul.f32 %v1675, %v1661
        %v1679 = vmul.f32 %v1675, %v1662
        %v1680 = vmul.f32 %v1675, %v1663
        %v1681 = vmul.f32 %v1675, %v1664
        %v1682 = vmul.f32 %v1675, %v1665
        %v1683 = vmul.f32 %v1675, %v1666
        %v1684 = vsel %vm1667, %v1659, %v1676
        %v1685 = vsel %vm1668, %v1660, %v1677
        %v1686 = vsel %vm1669, %v1661, %v1678
        %v1687 = vsel %vm1670, %v1662, %v1679
        %v1688 = vsel %vm1671, %v1663, %v1680
        %v1689 = vsel %vm1672, %v1664, %v1681
        %v1690 = vsel %vm1673, %v1665, %v1682
        %v1691 = vsel %vm1674, %v1666, %v1683
        %s1692 = scalar_lea.vmem %s12, 32
        %v1693 = vld [vmem:[%s1692] sm:$0xff]
        %v1694 = vld [vmem:[%s1692 + $0x8] sm:$0xff]
        %v1695 = vld [vmem:[%s1692 + $0x10] sm:$0xff]
        %v1696 = vld [vmem:[%s1692 + $0x18] sm:$0xff]
        %s1697 = scalar_lea.vmem %s13, 32
        %v1698 = vld [vmem:[%s1697] sm:$0xff]
        %v1699 = vld [vmem:[%s1697 + $0x8] sm:$0xff]
        %v1700 = vld [vmem:[%s1697 + $0x10] sm:$0xff]
        %v1701 = vld [vmem:[%s1697 + $0x18] sm:$0xff]
        %v1702 = vadd.f32 %v1684, %v1685
        %1703 = vadd.xlane.f32.xlu0 %v1702
        %v1704 = vpop.xlane.xlu0 %1703
        %v1705 = vadd.f32 %v1686, %v1687
        %1706 = vadd.xlane.f32.xlu0 %v1705
        %v1707 = vpop.xlane.xlu0 %1706
        %v1708 = vadd.f32 %v1688, %v1689
        %1709 = vadd.xlane.f32.xlu0 %v1708
        %v1710 = vpop.xlane.xlu0 %1709
        %v1711 = vadd.f32 %v1690, %v1691
        %1712 = vadd.xlane.f32.xlu0 %v1711
        %v1713 = vpop.xlane.xlu0 %1712
        %v1714 = vmul.f32 %v1684, %v1684
        %v1715 = vmul.f32 %v1685, %v1685
        %v1716 = vmul.f32 %v1686, %v1686
        %v1717 = vmul.f32 %v1687, %v1687
        %v1718 = vmul.f32 %v1688, %v1688
        %v1719 = vmul.f32 %v1689, %v1689
        %v1720 = vmul.f32 %v1690, %v1690
        %v1721 = vmul.f32 %v1691, %v1691
        %v1722 = vadd.f32 %v1714, %v1715
        %1723 = vadd.xlane.f32.xlu0 %v1722
        %v1724 = vpop.xlane.xlu0 %1723
        %v1725 = vadd.f32 %v1716, %v1717
        %1726 = vadd.xlane.f32.xlu0 %v1725
        %v1727 = vpop.xlane.xlu0 %1726
        %v1728 = vadd.f32 %v1718, %v1719
        %1729 = vadd.xlane.f32.xlu0 %v1728
        %v1730 = vpop.xlane.xlu0 %1729
        %v1731 = vadd.f32 %v1720, %v1721
        %1732 = vadd.xlane.f32.xlu0 %v1731
        %v1733 = vpop.xlane.xlu0 %1732
        %v1734 = vsel %vm612, %v1704, 0.0
        %v1735 = vsel %vm612, %v1707, 0.0
        %v1736 = vadd.f32 %v1734, %v1735
        %v1737 = vsel %vm612, %v1710, 0.0
        %v1738 = vadd.f32 %v1736, %v1737
        %v1739 = vsel %vm612, %v1713, 0.0
        %v1740 = vadd.f32 %v1738, %v1739
        %1741 = vadd.xlane.f32.xlu0 %v1740
        %v1742 = vpop.xlane.xlu0 %1741
        %v1743 = vrot.slane %v1742, 4
        %v1744 = vadd.f32 %v1742, %v1743
        %v1745 = vrot.slane %v1744, 2
        %v1746 = vadd.f32 %v1744, %v1745
        %v1747 = vrot.slane %v1746, 1
        %v1748 = vadd.f32 %v1746, %v1747
        %s1749 = vtos %v1748
        %v1750 = vrcp.pop 8192.0
        %s1751 = vtos %v1750
        %s1752 = smul.f32 %s1749, %s1751
        %v1753 = vsel %vm612, %v1724, 0.0
        %v1754 = vsel %vm612, %v1727, 0.0
        %v1755 = vadd.f32 %v1753, %v1754
        %v1756 = vsel %vm612, %v1730, 0.0
        %v1757 = vadd.f32 %v1755, %v1756
        %v1758 = vsel %vm612, %v1733, 0.0
        %v1759 = vadd.f32 %v1757, %v1758
        %1760 = vadd.xlane.f32.xlu0 %v1759
        %v1761 = vpop.xlane.xlu0 %1760
        %v1762 = vrot.slane %v1761, 4
        %v1763 = vadd.f32 %v1761, %v1762
        %v1764 = vrot.slane %v1763, 2
        %v1765 = vadd.f32 %v1763, %v1764
        %v1766 = vrot.slane %v1765, 1
        %v1767 = vadd.f32 %v1765, %v1766
        %s1768 = vtos %v1767
        %v1769 = vrcp.pop 8192.0
        %s1770 = vtos %v1769
        %s1771 = smul.f32 %s1768, %s1770
        %s1772 = smul.f32 %s1752, %s1752
        %s1773 = ssub.f32 %s1771, %s1772
        %s1774 = sadd.f32 %s1773, 1e-08
        %v1775 = vstv %s1774
        %v1776 = vrsqrt.pop %v1775
        %s1777 = vtos %v1776
        %v1778 = vstv %s1777
        %v1779 = vmul.f32 %v1778, %v1693
        %v1780 = vmul.f32 %v1778, %v1694
        %v1781 = vmul.f32 %v1778, %v1695
        %v1782 = vmul.f32 %v1778, %v1696
        %1784 = vset.pattern.permute.xlu0 0
        %1785 = vperm.xlu0 %1784, %v1779
        %v1786 = vpop.permute.xlu0 %1785
        %1789 = vset.pattern.permute.xlu0 0
        %1790 = vperm.xlu0 %1789, %v1780
        %v1791 = vpop.permute.xlu0 %1790
        %1794 = vset.pattern.permute.xlu0 0
        %1795 = vperm.xlu0 %1794, %v1781
        %v1796 = vpop.permute.xlu0 %1795
        %1799 = vset.pattern.permute.xlu0 0
        %1800 = vperm.xlu0 %1799, %v1782
        %v1801 = vpop.permute.xlu0 %1800
        %v1803 = vmul.f32 %v1684, %v1786
        %v1804 = vmul.f32 %v1685, %v1786
        %v1805 = vmul.f32 %v1686, %v1791
        %v1806 = vmul.f32 %v1687, %v1791
        %v1807 = vmul.f32 %v1688, %v1796
        %v1808 = vmul.f32 %v1689, %v1796
        %v1809 = vmul.f32 %v1690, %v1801
        %v1810 = vmul.f32 %v1691, %v1801
        %v1811 = vstv %s1752
        %v1812 = vmul.f32 %v1811, %v1779
        %v1813 = vmul.f32 %v1811, %v1780
        %v1814 = vmul.f32 %v1811, %v1781
        %v1815 = vmul.f32 %v1811, %v1782
        %v1816 = vsub.f32 %v1698, %v1812
        %v1817 = vsub.f32 %v1699, %v1813
        %v1818 = vsub.f32 %v1700, %v1814
        %v1819 = vsub.f32 %v1701, %v1815
        %1821 = vset.pattern.permute.xlu0 0
        %1822 = vperm.xlu0 %1821, %v1816
        %v1823 = vpop.permute.xlu0 %1822
        %1826 = vset.pattern.permute.xlu0 0
        %1827 = vperm.xlu0 %1826, %v1817
        %v1828 = vpop.permute.xlu0 %1827
        %1831 = vset.pattern.permute.xlu0 0
        %1832 = vperm.xlu0 %1831, %v1818
        %v1833 = vpop.permute.xlu0 %1832
        %1836 = vset.pattern.permute.xlu0 0
        %1837 = vperm.xlu0 %1836, %v1819
        %v1838 = vpop.permute.xlu0 %1837
        %v1840 = vadd.f32 %v1803, %v1823
        %v1841 = vadd.f32 %v1804, %v1823
        %v1842 = vadd.f32 %v1805, %v1828
        %v1843 = vadd.f32 %v1806, %v1828
        %v1844 = vadd.f32 %v1807, %v1833
        %v1845 = vadd.f32 %v1808, %v1833
        %v1846 = vadd.f32 %v1809, %v1838
        %v1847 = vadd.f32 %v1810, %v1838
        %s1848 = scalar_lea.vmem %s15, 16
        %v1849 = vld [vmem:[%s1848] sm:$0xff]
        %v1850 = vld [vmem:[%s1848 + $0x8] sm:$0xff]
        %1852 = vset.pattern.permute.xlu0 0
        %1853 = vperm.xlu0 %1852, %v1849
        %v1854 = vpop.permute.xlu0 %1853
        %1857 = vset.pattern.permute.xlu0 0
        %1858 = vperm.xlu0 %1857, %v1850
        %v1859 = vpop.permute.xlu0 %1858
        %v1861 = vadd.f32 %v1325, %v1854
        %v1862 = vadd.f32 %v1326, %v1854
        %v1863 = vadd.f32 %v1327, %v1859
        %v1864 = vadd.f32 %v1328, %v1859
        %s1865 = scalar_lea.vmem %s14, 8
        %v1866 = vld [vmem:[%s1865] sm:$0xf]
        %v1867 = vld [vmem:[%s1865 + $0x4] sm:$0xf]
        %v1868 = vpack.c.bf16 %v1842, %v1840
        %v1869 = vpack.c.bf16 %v1843, %v1841
        %v1870 = vpack.c.bf16 %v1846, %v1844
        %v1871 = vpack.c.bf16 %v1847, %v1845
        %v1874 = vunpack.c.l.b16 %v1866
        %v1875 = vunpack.c.l.b16 %v1867
        %v1876 = vpack.c.b16 %v1875, %v1874
        %v1878 = vsel %vm1278, %v1876, 0
        %1880 = vmatprep.subr.bf16.mxu0 %v1869
        %1881 = vmatpush1.bf16.msra.mxu0 %v1868
        %1882 = vmatprep.subr.bf16.mxu0 %v1871
        %1883 = vmatpush1.bf16.msra.mxu0 %v1870
        %1884 = vmatprep.subr.bf16.mxu0 0
        %1885 = vmatpush1.bf16.msra.mxu0 0
        %1886 = vmatprep.subr.bf16.mxu0 0
        %1887 = vmatpush1.bf16.msra.mxu0 0
        %1888 = vmatprep.subr.bf16.mxu0 0
        %1889 = vmatpush1.bf16.msra.mxu0 0
        %1890 = vmatprep.subr.bf16.mxu0 0
        %1891 = vmatpush1.bf16.msra.mxu0 0
        %1892 = vmatprep.subr.bf16.mxu0 0
        %1893 = vmatpush1.bf16.msra.mxu0 0
        %1894 = vmatprep.subr.bf16.mxu0 0
        %1895 = vmatpush1.bf16.msra.mxu0 0
        %1896 = vmatprep.subr.bf16.mxu0 0
        %1897 = vmatpush1.bf16.msra.mxu0 0
        %1898 = vmatprep.subr.bf16.mxu0 0
        %1899 = vmatpush1.bf16.msra.mxu0 0
        %1900 = vmatprep.subr.bf16.mxu0 0
        %1901 = vmatpush1.bf16.msra.mxu0 0
        %1902 = vmatprep.subr.bf16.mxu0 0
        %1903 = vmatpush1.bf16.msra.mxu0 0
        %1904 = vmatprep.subr.bf16.mxu0 0
        %1905 = vmatpush1.bf16.msra.mxu0 0
        %1906 = vmatprep.subr.bf16.mxu0 0
        %1907 = vmatpush1.bf16.msra.mxu0 0
        %1908 = vmatprep.subr.bf16.mxu0 0
        %1909 = vmatpush1.bf16.msra.mxu0 0
        %1910 = vmatprep.subr.bf16.mxu0 0
        %1911 = vmatpush1.bf16.msra.mxu0 0
        %1912 = vmatprep.mubr.bf16.mxu0 0
        %1913 = vmatmul.mubr.bf16.gmra.mrb[0].mxu0 %v1878
        %v1914 = vpop.f32.mrb[0].mxu0
        %v1915 = vadd.f32 0.0, %v1914
        %v1916 = vpop.f32.mrb[0].mxu0
        %v1917 = vadd.f32 0.0, %v1916
        %v1918 = vpop.f32.mrb[0].mxu0
        %v1919 = vadd.f32 0.0, %v1918
        %v1920 = vpop.f32.mrb[0].mxu0
        %v1921 = vadd.f32 0.0, %v1920
        %1922 = vdwg.mxu0
        %v1923 = vadd.f32 %v1861, %v1915
        %v1924 = vadd.f32 %v1862, %v1917
        %v1925 = vadd.f32 %v1863, %v1919
        %v1926 = vadd.f32 %v1864, %v1921
        %s1927 = sld [smem:[#allocation2 + $0x4]]
        %s1928 = sld [smem:[#allocation2 + $0x5]]
        %s1929 = scalar_lea.vmem %s6, 16
        %v1930 = vld [vmem:[%s1929] sm:$0xf]
        %v1931 = vld [vmem:[%s1929 + $0x4] sm:$0xf]
        %v1932 = vpack.c.bf16 %v1925, %v1923
        %v1933 = vpack.c.bf16 %v1926, %v1924
        %s1934 = scalar_lea.vmem %s7, 32
        %v1935 = vld [vmem:[%s1934] sm:$0xff]
        %v1936 = vld [vmem:[%s1934 + $0x8] sm:$0xff]
        %1938 = vset.pattern.permute.xlu0 0
        %1939 = vperm.xlu0 %1938, %v1935
        %v1940 = vpop.permute.xlu0 %1939
        %1943 = vset.pattern.permute.xlu0 0
        %1944 = vperm.xlu0 %1943, %v1936
        %v1945 = vpop.permute.xlu0 %1944
        %v1949 = vunpack.c.l.b16 %v1930
        %v1950 = vunpack.c.l.b16 %v1931
        %v1951 = vpack.c.b16 %v1950, %v1949
        %v1953 = vsel %vm762, %v1951, 0
        %1955 = vmatprep.subr.bf16.mxu0 %v1933
        %1956 = vmatpush1.bf16.msra.mxu0 %v1932
        %1957 = vmatprep.subr.bf16.mxu0 0
        %1958 = vmatpush1.bf16.msra.mxu0 0
        %1959 = vmatprep.subr.bf16.mxu0 0
        %1960 = vmatpush1.bf16.msra.mxu0 0
        %1961 = vmatprep.subr.bf16.mxu0 0
        %1962 = vmatpush1.bf16.msra.mxu0 0
        %1963 = vmatprep.subr.bf16.mxu0 0
        %1964 = vmatpush1.bf16.msra.mxu0 0
        %1965 = vmatprep.subr.bf16.mxu0 0
        %1966 = vmatpush1.bf16.msra.mxu0 0
        %1967 = vmatprep.subr.bf16.mxu0 0
        %1968 = vmatpush1.bf16.msra.mxu0 0
        %1969 = vmatprep.subr.bf16.mxu0 0
        %1970 = vmatpush1.bf16.msra.mxu0 0
        %1971 = vmatprep.subr.bf16.mxu0 0
        %1972 = vmatpush1.bf16.msra.mxu0 0
        %1973 = vmatprep.subr.bf16.mxu0 0
        %1974 = vmatpush1.bf16.msra.mxu0 0
        %1975 = vmatprep.subr.bf16.mxu0 0
        %1976 = vmatpush1.bf16.msra.mxu0 0
        %1977 = vmatprep.subr.bf16.mxu0 0
        %1978 = vmatpush1.bf16.msra.mxu0 0
        %1979 = vmatprep.subr.bf16.mxu0 0
        %1980 = vmatpush1.bf16.msra.mxu0 0
        %1981 = vmatprep.subr.bf16.mxu0 0
        %1982 = vmatpush1.bf16.msra.mxu0 0
        %1983 = vmatprep.subr.bf16.mxu0 0
        %1984 = vmatpush1.bf16.msra.mxu0 0
        %1985 = vmatprep.subr.bf16.mxu0 0
        %1986 = vmatpush1.bf16.msra.mxu0 0
        %1987 = vmatprep.mubr.bf16.mxu0 0
        %1988 = vmatmul.mubr.bf16.gmra.mrb[0].mxu0 %v1953
        %v1989 = vpop.f32.mrb[0].mxu0
        %v1990 = vadd.f32 %v1940, %v1989
        %v1991 = vpop.f32.mrb[0].mxu0
        %v1992 = vadd.f32 %v1940, %v1991
        %v1993 = vpop.f32.mrb[0].mxu0
        %v1994 = vadd.f32 %v1945, %v1993
        %v1995 = vpop.f32.mrb[0].mxu0
        %v1996 = vadd.f32 %v1945, %v1995
        %1997 = vdwg.mxu0
        %vm1998 = vcmp.ge.f32.partialorder %v1990, 0.0
        %vm1999 = vcmp.ge.f32.partialorder %v1992, 0.0
        %vm2000 = vcmp.ge.f32.partialorder %v1994, 0.0
        %vm2001 = vcmp.ge.f32.partialorder %v1996, 0.0
        %v2002 = vstv %s1927
        %v2003 = vmul.f32 %v2002, %v1990
        %v2004 = vmul.f32 %v2002, %v1992
        %v2005 = vmul.f32 %v2002, %v1994
        %v2006 = vmul.f32 %v2002, %v1996
        %v2007 = vsel %vm1998, %v1990, %v2003
        %v2008 = vsel %vm1999, %v1992, %v2004
        %v2009 = vsel %vm2000, %v1994, %v2005
        %v2010 = vsel %vm2001, %v1996, %v2006
        %s2011 = scalar_lea.vmem %s8, 32
        %v2012 = vld [vmem:[%s2011] sm:$0xff]
        %v2013 = vld [vmem:[%s2011 + $0x8] sm:$0xff]
        %s2014 = scalar_lea.vmem %s9, 32
        %v2015 = vld [vmem:[%s2014] sm:$0xff]
        %v2016 = vld [vmem:[%s2014 + $0x8] sm:$0xff]
        %v2017 = vadd.f32 %v2007, %v2008
        %2018 = vadd.xlane.f32.xlu0 %v2017
        %v2019 = vpop.xlane.xlu0 %2018
        %v2020 = vadd.f32 %v2009, %v2010
        %2021 = vadd.xlane.f32.xlu0 %v2020
        %v2022 = vpop.xlane.xlu0 %2021
        %v2023 = vmul.f32 %v2007, %v2007
        %v2024 = vmul.f32 %v2008, %v2008
        %v2025 = vmul.f32 %v2009, %v2009
        %v2026 = vmul.f32 %v2010, %v2010
        %v2027 = vadd.f32 %v2023, %v2024
        %2028 = vadd.xlane.f32.xlu0 %v2027
        %v2029 = vpop.xlane.xlu0 %2028
        %v2030 = vadd.f32 %v2025, %v2026
        %2031 = vadd.xlane.f32.xlu0 %v2030
        %v2032 = vpop.xlane.xlu0 %2031
        %v2033 = vsel %vm612, %v2019, 0.0
        %v2034 = vsel %vm612, %v2022, 0.0
        %v2035 = vadd.f32 %v2033, %v2034
        %2036 = vadd.xlane.f32.xlu0 %v2035
        %v2037 = vpop.xlane.xlu0 %2036
        %v2038 = vrot.slane %v2037, 4
        %v2039 = vadd.f32 %v2037, %v2038
        %v2040 = vrot.slane %v2039, 2
        %v2041 = vadd.f32 %v2039, %v2040
        %v2042 = vrot.slane %v2041, 1
        %v2043 = vadd.f32 %v2041, %v2042
        %s2044 = vtos %v2043
        %v2045 = vrcp.pop 4096.0
        %s2046 = vtos %v2045
        %s2047 = smul.f32 %s2044, %s2046
        %v2048 = vsel %vm612, %v2029, 0.0
        %v2049 = vsel %vm612, %v2032, 0.0
        %v2050 = vadd.f32 %v2048, %v2049
        %2051 = vadd.xlane.f32.xlu0 %v2050
        %v2052 = vpop.xlane.xlu0 %2051
        %v2053 = vrot.slane %v2052, 4
        %v2054 = vadd.f32 %v2052, %v2053
        %v2055 = vrot.slane %v2054, 2
        %v2056 = vadd.f32 %v2054, %v2055
        %v2057 = vrot.slane %v2056, 1
        %v2058 = vadd.f32 %v2056, %v2057
        %s2059 = vtos %v2058
        %v2060 = vrcp.pop 4096.0
        %s2061 = vtos %v2060
        %s2062 = smul.f32 %s2059, %s2061
        %s2063 = smul.f32 %s2047, %s2047
        %s2064 = ssub.f32 %s2062, %s2063
        %s2065 = sadd.f32 %s2064, 1e-08
        %v2066 = vstv %s2065
        %v2067 = vrsqrt.pop %v2066
        %s2068 = vtos %v2067
        %v2069 = vstv %s2068
        %v2070 = vmul.f32 %v2069, %v2012
        %v2071 = vmul.f32 %v2069, %v2013
        %2073 = vset.pattern.permute.xlu0 0
        %2074 = vperm.xlu0 %2073, %v2070
        %v2075 = vpop.permute.xlu0 %2074
        %2078 = vset.pattern.permute.xlu0 0
        %2079 = vperm.xlu0 %2078, %v2071
        %v2080 = vpop.permute.xlu0 %2079
        %v2082 = vmul.f32 %v2007, %v2075
        %v2083 = vmul.f32 %v2008, %v2075
        %v2084 = vmul.f32 %v2009, %v2080
        %v2085 = vmul.f32 %v2010, %v2080
        %v2086 = vstv %s2047
        %v2087 = vmul.f32 %v2086, %v2070
        %v2088 = vmul.f32 %v2086, %v2071
        %v2089 = vsub.f32 %v2015, %v2087
        %v2090 = vsub.f32 %v2016, %v2088
        %2092 = vset.pattern.permute.xlu0 0
        %2093 = vperm.xlu0 %2092, %v2089
        %v2094 = vpop.permute.xlu0 %2093
        %2097 = vset.pattern.permute.xlu0 0
        %2098 = vperm.xlu0 %2097, %v2090
        %v2099 = vpop.permute.xlu0 %2098
        %v2101 = vadd.f32 %v2082, %v2094
        %v2102 = vadd.f32 %v2083, %v2094
        %v2103 = vadd.f32 %v2084, %v2099
        %v2104 = vadd.f32 %v2085, %v2099
        %2105 = vrot.lane.b32.xlu0 %v2101, 1
        %v2106 = vpop.permute.xlu0 %2105
        %2107 = vrot.lane.b32.xlu0 %v2103, 1
        %v2108 = vpop.permute.xlu0 %2107
        %2109 = vrot.lane.b32.xlu0 %v2102, 1
        %v2110 = vpop.permute.xlu0 %2109
        %2111 = vrot.lane.b32.xlu0 %v2104, 1
        %v2112 = vpop.permute.xlu0 %2111
        %v2113 = vsel %vm922, %v2106, %v2110
        %v2114 = vsel %vm922, %v2108, %v2112
        %v2115 = vsel %vm922, %v2110, %v2106
        %v2116 = vsel %vm922, %v2112, %v2108
        %v2117 = vsel %vm594, %v2115, 0.0
        %v2118 = vsel %vm595, %v2113, 0.0
        %v2119 = vsel %vm594, %v2116, 0.0
        %v2120 = vsel %vm595, %v2114, 0.0
        %2121 = vrot.lane.b32.xlu0 %v2101, 127
        %v2122 = vpop.permute.xlu0 %2121
        %2123 = vrot.lane.b32.xlu0 %v2103, 127
        %v2124 = vpop.permute.xlu0 %2123
        %2125 = vrot.lane.b32.xlu0 %v2102, 127
        %v2126 = vpop.permute.xlu0 %2125
        %2127 = vrot.lane.b32.xlu0 %v2104, 127
        %v2128 = vpop.permute.xlu0 %2127
        %v2129 = vsel %vm939, %v2122, %v2126
        %v2130 = vsel %vm939, %v2124, %v2128
        %v2131 = vsel %vm939, %v2126, %v2122
        %v2132 = vsel %vm939, %v2128, %v2124
        %v2133 = vsel %vm596, %v2129, 0.0
        %v2134 = vsel %vm597, %v2131, 0.0
        %v2135 = vsel %vm596, %v2130, 0.0
        %v2136 = vsel %vm597, %v2132, 0.0
        %s2137 = scalar_lea.vmem %s10, 32
        %v2138 = vld [vmem:[%s2137] sm:$0xff]
        %v2139 = vld [vmem:[%s2137 + $0x8] sm:$0xff]
        %2141 = vset.pattern.permute.xlu0 0
        %2142 = vperm.xlu0 %2141, %v2138
        %v2143 = vpop.permute.xlu0 %2142
        %2146 = vset.pattern.permute.xlu0 0
        %2147 = vperm.xlu0 %2146, %v2139
        %v2148 = vpop.permute.xlu0 %2147
        %v2150 = vmul.f32 %v2143, %v2117
        %v2151 = vmul.f32 %v2143, %v2118
        %v2152 = vmul.f32 %v2148, %v2119
        %v2153 = vmul.f32 %v2148, %v2120
        %2154 = vset.pattern.permute.xlu0 1
        %2155 = vperm.xlu0 %2154, %v2138
        %v2156 = vpop.permute.xlu0 %2155
        %2158 = vset.pattern.permute.xlu0 1
        %2159 = vperm.xlu0 %2158, %v2139
        %v2160 = vpop.permute.xlu0 %2159
        %v2162 = vmul.f32 %v2156, %v2101
        %v2163 = vmul.f32 %v2156, %v2102
        %v2164 = vmul.f32 %v2160, %v2103
        %v2165 = vmul.f32 %v2160, %v2104
        %v2166 = vadd.f32 %v2150, %v2162
        %v2167 = vadd.f32 %v2151, %v2163
        %v2168 = vadd.f32 %v2152, %v2164
        %v2169 = vadd.f32 %v2153, %v2165
        %2170 = vset.pattern.permute.xlu0 2
        %2171 = vperm.xlu0 %2170, %v2138
        %v2172 = vpop.permute.xlu0 %2171
        %2174 = vset.pattern.permute.xlu0 2
        %2175 = vperm.xlu0 %2174, %v2139
        %v2176 = vpop.permute.xlu0 %2175
        %v2178 = vmul.f32 %v2172, %v2133
        %v2179 = vmul.f32 %v2172, %v2134
        %v2180 = vmul.f32 %v2176, %v2135
        %v2181 = vmul.f32 %v2176, %v2136
        %v2182 = vadd.f32 %v2166, %v2178
        %v2183 = vadd.f32 %v2167, %v2179
        %v2184 = vadd.f32 %v2168, %v2180
        %v2185 = vadd.f32 %v2169, %v2181
        %2186 = vset.pattern.permute.xlu0 3
        %2187 = vperm.xlu0 %2186, %v2138
        %v2188 = vpop.permute.xlu0 %2187
        %2190 = vset.pattern.permute.xlu0 3
        %2191 = vperm.xlu0 %2190, %v2139
        %v2192 = vpop.permute.xlu0 %2191
        %v2194 = vmul.f32 %v2188, %v2117
        %v2195 = vmul.f32 %v2188, %v2118
        %v2196 = vmul.f32 %v2192, %v2119
        %v2197 = vmul.f32 %v2192, %v2120
        %2198 = vset.pattern.permute.xlu0 4
        %2199 = vperm.xlu0 %2198, %v2138
        %v2200 = vpop.permute.xlu0 %2199
        %2202 = vset.pattern.permute.xlu0 4
        %2203 = vperm.xlu0 %2202, %v2139
        %v2204 = vpop.permute.xlu0 %2203
        %v2206 = vmul.f32 %v2200, %v2101
        %v2207 = vmul.f32 %v2200, %v2102
        %v2208 = vmul.f32 %v2204, %v2103
        %v2209 = vmul.f32 %v2204, %v2104
        %v2210 = vadd.f32 %v2194, %v2206
        %v2211 = vadd.f32 %v2195, %v2207
        %v2212 = vadd.f32 %v2196, %v2208
        %v2213 = vadd.f32 %v2197, %v2209
        %2214 = vset.pattern.permute.xlu0 5
        %2215 = vperm.xlu0 %2214, %v2138
        %v2216 = vpop.permute.xlu0 %2215
        %2218 = vset.pattern.permute.xlu0 5
        %2219 = vperm.xlu0 %2218, %v2139
        %v2220 = vpop.permute.xlu0 %2219
        %v2222 = vmul.f32 %v2216, %v2133
        %v2223 = vmul.f32 %v2216, %v2134
        %v2224 = vmul.f32 %v2220, %v2135
        %v2225 = vmul.f32 %v2220, %v2136
        %v2226 = vadd.f32 %v2210, %v2222
        %v2227 = vadd.f32 %v2211, %v2223
        %v2228 = vadd.f32 %v2212, %v2224
        %v2229 = vadd.f32 %v2213, %v2225
        %s2230 = scalar_lea.vmem %s11, 64
        %v2231 = vld [vmem:[%s2230] sm:$0xff]
        %v2232 = vld [vmem:[%s2230 + $0x8] sm:$0xff]
        %v2233 = vld [vmem:[%s2230 + $0x10] sm:$0xff]
        %v2234 = vld [vmem:[%s2230 + $0x18] sm:$0xff]
        %2236 = vset.pattern.permute.xlu0 0
        %2237 = vperm.xlu0 %2236, %v2231
        %v2238 = vpop.permute.xlu0 %2237
        %2241 = vset.pattern.permute.xlu0 0
        %2242 = vperm.xlu0 %2241, %v2232
        %v2243 = vpop.permute.xlu0 %2242
        %2246 = vset.pattern.permute.xlu0 0
        %2247 = vperm.xlu0 %2246, %v2233
        %v2248 = vpop.permute.xlu0 %2247
        %2251 = vset.pattern.permute.xlu0 0
        %2252 = vperm.xlu0 %2251, %v2234
        %v2253 = vpop.permute.xlu0 %2252
        %v2255 = vadd.f32 %v2182, %v2238
        %v2256 = vadd.f32 %v2183, %v2238
        %v2257 = vadd.f32 %v2184, %v2243
        %v2258 = vadd.f32 %v2185, %v2243
        %v2259 = vadd.f32 %v2226, %v2248
        %v2260 = vadd.f32 %v2227, %v2248
        %v2261 = vadd.f32 %v2228, %v2253
        %v2262 = vadd.f32 %v2229, %v2253
        %vm2263 = vcmp.ge.f32.partialorder %v2255, 0.0
        %vm2264 = vcmp.ge.f32.partialorder %v2256, 0.0
        %vm2265 = vcmp.ge.f32.partialorder %v2257, 0.0
        %vm2266 = vcmp.ge.f32.partialorder %v2258, 0.0
        %vm2267 = vcmp.ge.f32.partialorder %v2259, 0.0
        %vm2268 = vcmp.ge.f32.partialorder %v2260, 0.0
        %vm2269 = vcmp.ge.f32.partialorder %v2261, 0.0
        %vm2270 = vcmp.ge.f32.partialorder %v2262, 0.0
        %v2271 = vstv %s1928
        %v2272 = vmul.f32 %v2271, %v2255
        %v2273 = vmul.f32 %v2271, %v2256
        %v2274 = vmul.f32 %v2271, %v2257
        %v2275 = vmul.f32 %v2271, %v2258
        %v2276 = vmul.f32 %v2271, %v2259
        %v2277 = vmul.f32 %v2271, %v2260
        %v2278 = vmul.f32 %v2271, %v2261
        %v2279 = vmul.f32 %v2271, %v2262
        %v2280 = vsel %vm2263, %v2255, %v2272
        %v2281 = vsel %vm2264, %v2256, %v2273
        %v2282 = vsel %vm2265, %v2257, %v2274
        %v2283 = vsel %vm2266, %v2258, %v2275
        %v2284 = vsel %vm2267, %v2259, %v2276
        %v2285 = vsel %vm2268, %v2260, %v2277
        %v2286 = vsel %vm2269, %v2261, %v2278
        %v2287 = vsel %vm2270, %v2262, %v2279
        %s2288 = scalar_lea.vmem %s12, 64
        %v2289 = vld [vmem:[%s2288] sm:$0xff]
        %v2290 = vld [vmem:[%s2288 + $0x8] sm:$0xff]
        %v2291 = vld [vmem:[%s2288 + $0x10] sm:$0xff]
        %v2292 = vld [vmem:[%s2288 + $0x18] sm:$0xff]
        %s2293 = scalar_lea.vmem %s13, 64
        %v2294 = vld [vmem:[%s2293] sm:$0xff]
        %v2295 = vld [vmem:[%s2293 + $0x8] sm:$0xff]
        %v2296 = vld [vmem:[%s2293 + $0x10] sm:$0xff]
        %v2297 = vld [vmem:[%s2293 + $0x18] sm:$0xff]
        %v2298 = vadd.f32 %v2280, %v2281
        %2299 = vadd.xlane.f32.xlu0 %v2298
        %v2300 = vpop.xlane.xlu0 %2299
        %v2301 = vadd.f32 %v2282, %v2283
        %2302 = vadd.xlane.f32.xlu0 %v2301
        %v2303 = vpop.xlane.xlu0 %2302
        %v2304 = vadd.f32 %v2284, %v2285
        %2305 = vadd.xlane.f32.xlu0 %v2304
        %v2306 = vpop.xlane.xlu0 %2305
        %v2307 = vadd.f32 %v2286, %v2287
        %2308 = vadd.xlane.f32.xlu0 %v2307
        %v2309 = vpop.xlane.xlu0 %2308
        %v2310 = vmul.f32 %v2280, %v2280
        %v2311 = vmul.f32 %v2281, %v2281
        %v2312 = vmul.f32 %v2282, %v2282
        %v2313 = vmul.f32 %v2283, %v2283
        %v2314 = vmul.f32 %v2284, %v2284
        %v2315 = vmul.f32 %v2285, %v2285
        %v2316 = vmul.f32 %v2286, %v2286
        %v2317 = vmul.f32 %v2287, %v2287
        %v2318 = vadd.f32 %v2310, %v2311
        %2319 = vadd.xlane.f32.xlu0 %v2318
        %v2320 = vpop.xlane.xlu0 %2319
        %v2321 = vadd.f32 %v2312, %v2313
        %2322 = vadd.xlane.f32.xlu0 %v2321
        %v2323 = vpop.xlane.xlu0 %2322
        %v2324 = vadd.f32 %v2314, %v2315
        %2325 = vadd.xlane.f32.xlu0 %v2324
        %v2326 = vpop.xlane.xlu0 %2325
        %v2327 = vadd.f32 %v2316, %v2317
        %2328 = vadd.xlane.f32.xlu0 %v2327
        %v2329 = vpop.xlane.xlu0 %2328
        %v2330 = vsel %vm612, %v2300, 0.0
        %v2331 = vsel %vm612, %v2303, 0.0
        %v2332 = vadd.f32 %v2330, %v2331
        %v2333 = vsel %vm612, %v2306, 0.0
        %v2334 = vadd.f32 %v2332, %v2333
        %v2335 = vsel %vm612, %v2309, 0.0
        %v2336 = vadd.f32 %v2334, %v2335
        %2337 = vadd.xlane.f32.xlu0 %v2336
        %v2338 = vpop.xlane.xlu0 %2337
        %v2339 = vrot.slane %v2338, 4
        %v2340 = vadd.f32 %v2338, %v2339
        %v2341 = vrot.slane %v2340, 2
        %v2342 = vadd.f32 %v2340, %v2341
        %v2343 = vrot.slane %v2342, 1
        %v2344 = vadd.f32 %v2342, %v2343
        %s2345 = vtos %v2344
        %v2346 = vrcp.pop 8192.0
        %s2347 = vtos %v2346
        %s2348 = smul.f32 %s2345, %s2347
        %v2349 = vsel %vm612, %v2320, 0.0
        %v2350 = vsel %vm612, %v2323, 0.0
        %v2351 = vadd.f32 %v2349, %v2350
        %v2352 = vsel %vm612, %v2326, 0.0
        %v2353 = vadd.f32 %v2351, %v2352
        %v2354 = vsel %vm612, %v2329, 0.0
        %v2355 = vadd.f32 %v2353, %v2354
        %2356 = vadd.xlane.f32.xlu0 %v2355
        %v2357 = vpop.xlane.xlu0 %2356
        %v2358 = vrot.slane %v2357, 4
        %v2359 = vadd.f32 %v2357, %v2358
        %v2360 = vrot.slane %v2359, 2
        %v2361 = vadd.f32 %v2359, %v2360
        %v2362 = vrot.slane %v2361, 1
        %v2363 = vadd.f32 %v2361, %v2362
        %s2364 = vtos %v2363
        %v2365 = vrcp.pop 8192.0
        %s2366 = vtos %v2365
        %s2367 = smul.f32 %s2364, %s2366
        %s2368 = smul.f32 %s2348, %s2348
        %s2369 = ssub.f32 %s2367, %s2368
        %s2370 = sadd.f32 %s2369, 1e-08
        %v2371 = vstv %s2370
        %v2372 = vrsqrt.pop %v2371
        %s2373 = vtos %v2372
        %v2374 = vstv %s2373
        %v2375 = vmul.f32 %v2374, %v2289
        %v2376 = vmul.f32 %v2374, %v2290
        %v2377 = vmul.f32 %v2374, %v2291
        %v2378 = vmul.f32 %v2374, %v2292
        %2380 = vset.pattern.permute.xlu0 0
        %2381 = vperm.xlu0 %2380, %v2375
        %v2382 = vpop.permute.xlu0 %2381
        %2385 = vset.pattern.permute.xlu0 0
        %2386 = vperm.xlu0 %2385, %v2376
        %v2387 = vpop.permute.xlu0 %2386
        %2390 = vset.pattern.permute.xlu0 0
        %2391 = vperm.xlu0 %2390, %v2377
        %v2392 = vpop.permute.xlu0 %2391
        %2395 = vset.pattern.permute.xlu0 0
        %2396 = vperm.xlu0 %2395, %v2378
        %v2397 = vpop.permute.xlu0 %2396
        %v2399 = vmul.f32 %v2280, %v2382
        %v2400 = vmul.f32 %v2281, %v2382
        %v2401 = vmul.f32 %v2282, %v2387
        %v2402 = vmul.f32 %v2283, %v2387
        %v2403 = vmul.f32 %v2284, %v2392
        %v2404 = vmul.f32 %v2285, %v2392
        %v2405 = vmul.f32 %v2286, %v2397
        %v2406 = vmul.f32 %v2287, %v2397
        %v2407 = vstv %s2348
        %v2408 = vmul.f32 %v2407, %v2375
        %v2409 = vmul.f32 %v2407, %v2376
        %v2410 = vmul.f32 %v2407, %v2377
        %v2411 = vmul.f32 %v2407, %v2378
        %v2412 = vsub.f32 %v2294, %v2408
        %v2413 = vsub.f32 %v2295, %v2409
        %v2414 = vsub.f32 %v2296, %v2410
        %v2415 = vsub.f32 %v2297, %v2411
        %2417 = vset.pattern.permute.xlu0 0
        %2418 = vperm.xlu0 %2417, %v2412
        %v2419 = vpop.permute.xlu0 %2418
        %2422 = vset.pattern.permute.xlu0 0
        %2423 = vperm.xlu0 %2422, %v2413
        %v2424 = vpop.permute.xlu0 %2423
        %2427 = vset.pattern.permute.xlu0 0
        %2428 = vperm.xlu0 %2427, %v2414
        %v2429 = vpop.permute.xlu0 %2428
        %2432 = vset.pattern.permute.xlu0 0
        %2433 = vperm.xlu0 %2432, %v2415
        %v2434 = vpop.permute.xlu0 %2433
        %v2436 = vadd.f32 %v2399, %v2419
        %v2437 = vadd.f32 %v2400, %v2419
        %v2438 = vadd.f32 %v2401, %v2424
        %v2439 = vadd.f32 %v2402, %v2424
        %v2440 = vadd.f32 %v2403, %v2429
        %v2441 = vadd.f32 %v2404, %v2429
        %v2442 = vadd.f32 %v2405, %v2434
        %v2443 = vadd.f32 %v2406, %v2434
        %s2444 = scalar_lea.vmem %s15, 32
        %v2445 = vld [vmem:[%s2444] sm:$0xff]
        %v2446 = vld [vmem:[%s2444 + $0x8] sm:$0xff]
        %2448 = vset.pattern.permute.xlu0 0
        %2449 = vperm.xlu0 %2448, %v2445
        %v2450 = vpop.permute.xlu0 %2449
        %2453 = vset.pattern.permute.xlu0 0
        %2454 = vperm.xlu0 %2453, %v2446
        %v2455 = vpop.permute.xlu0 %2454
        %v2457 = vadd.f32 %v1923, %v2450
        %v2458 = vadd.f32 %v1924, %v2450
        %v2459 = vadd.f32 %v1925, %v2455
        %v2460 = vadd.f32 %v1926, %v2455
        %s2461 = scalar_lea.vmem %s14, 16
        %v2462 = vld [vmem:[%s2461] sm:$0xf]
        %v2463 = vld [vmem:[%s2461 + $0x4] sm:$0xf]
        %v2464 = vpack.c.bf16 %v2438, %v2436
        %v2465 = vpack.c.bf16 %v2439, %v2437
        %v2466 = vpack.c.bf16 %v2442, %v2440
        %v2467 = vpack.c.bf16 %v2443, %v2441
        %v2470 = vunpack.c.l.b16 %v2462
        %v2471 = vunpack.c.l.b16 %v2463
        %v2472 = vpack.c.b16 %v2471, %v2470
        %v2474 = vsel %vm1278, %v2472, 0
        %2476 = vmatprep.subr.bf16.mxu0 %v2465
        %2477 = vmatpush1.bf16.msra.mxu0 %v2464
        %2478 = vmatprep.subr.bf16.mxu0 %v2467
        %2479 = vmatpush1.bf16.msra.mxu0 %v2466
        %2480 = vmatprep.subr.bf16.mxu0 0
        %2481 = vmatpush1.bf16.msra.mxu0 0
        %2482 = vmatprep.subr.bf16.mxu0 0
        %2483 = vmatpush1.bf16.msra.mxu0 0
        %2484 = vmatprep.subr.bf16.mxu0 0
        %2485 = vmatpush1.bf16.msra.mxu0 0
        %2486 = vmatprep.subr.bf16.mxu0 0
        %2487 = vmatpush1.bf16.msra.mxu0 0
        %2488 = vmatprep.subr.bf16.mxu0 0
        %2489 = vmatpush1.bf16.msra.mxu0 0
        %2490 = vmatprep.subr.bf16.mxu0 0
        %2491 = vmatpush1.bf16.msra.mxu0 0
        %2492 = vmatprep.subr.bf16.mxu0 0
        %2493 = vmatpush1.bf16.msra.mxu0 0
        %2494 = vmatprep.subr.bf16.mxu0 0
        %2495 = vmatpush1.bf16.msra.mxu0 0
        %2496 = vmatprep.subr.bf16.mxu0 0
        %2497 = vmatpush1.bf16.msra.mxu0 0
        %2498 = vmatprep.subr.bf16.mxu0 0
        %2499 = vmatpush1.bf16.msra.mxu0 0
        %2500 = vmatprep.subr.bf16.mxu0 0
        %2501 = vmatpush1.bf16.msra.mxu0 0
        %2502 = vmatprep.subr.bf16.mxu0 0
        %2503 = vmatpush1.bf16.msra.mxu0 0
        %2504 = vmatprep.subr.bf16.mxu0 0
        %2505 = vmatpush1.bf16.msra.mxu0 0
        %2506 = vmatprep.subr.bf16.mxu0 0
        %2507 = vmatpush1.bf16.msra.mxu0 0
        %2508 = vmatprep.mubr.bf16.mxu0 0
        %2509 = vmatmul.mubr.bf16.gmra.mrb[0].mxu0 %v2474
        %v2510 = vpop.f32.mrb[0].mxu0
        %v2511 = vadd.f32 0.0, %v2510
        %v2512 = vpop.f32.mrb[0].mxu0
        %v2513 = vadd.f32 0.0, %v2512
        %v2514 = vpop.f32.mrb[0].mxu0
        %v2515 = vadd.f32 0.0, %v2514
        %v2516 = vpop.f32.mrb[0].mxu0
        %v2517 = vadd.f32 0.0, %v2516
        %2518 = vdwg.mxu0
        %v2519 = vadd.f32 %v2457, %v2511
        %v2520 = vadd.f32 %v2458, %v2513
        %v2521 = vadd.f32 %v2459, %v2515
        %v2522 = vadd.f32 %v2460, %v2517
        %s2523 = sld [smem:[#allocation2 + $0x6]]
        %s2524 = sld [smem:[#allocation2 + $0x7]]
        %s2525 = scalar_lea.vmem %s6, 24
        %v2526 = vld [vmem:[%s2525] sm:$0xf]
        %v2527 = vld [vmem:[%s2525 + $0x4] sm:$0xf]
        %v2528 = vpack.c.bf16 %v2521, %v2519
        %v2529 = vpack.c.bf16 %v2522, %v2520
        %s2530 = scalar_lea.vmem %s7, 48
        %v2531 = vld [vmem:[%s2530] sm:$0xff]
        %v2532 = vld [vmem:[%s2530 + $0x8] sm:$0xff]
        %2534 = vset.pattern.permute.xlu0 0
        %2535 = vperm.xlu0 %2534, %v2531
        %v2536 = vpop.permute.xlu0 %2535
        %2539 = vset.pattern.permute.xlu0 0
        %2540 = vperm.xlu0 %2539, %v2532
        %v2541 = vpop.permute.xlu0 %2540
        %v2545 = vunpack.c.l.b16 %v2526
        %v2546 = vunpack.c.l.b16 %v2527
        %v2547 = vpack.c.b16 %v2546, %v2545
        %v2549 = vsel %vm762, %v2547, 0
        %2551 = vmatprep.subr.bf16.mxu0 %v2529
        %2552 = vmatpush1.bf16.msra.mxu0 %v2528
        %2553 = vmatprep.subr.bf16.mxu0 0
        %2554 = vmatpush1.bf16.msra.mxu0 0
        %2555 = vmatprep.subr.bf16.mxu0 0
        %2556 = vmatpush1.bf16.msra.mxu0 0
        %2557 = vmatprep.subr.bf16.mxu0 0
        %2558 = vmatpush1.bf16.msra.mxu0 0
        %2559 = vmatprep.subr.bf16.mxu0 0
        %2560 = vmatpush1.bf16.msra.mxu0 0
        %2561 = vmatprep.subr.bf16.mxu0 0
        %2562 = vmatpush1.bf16.msra.mxu0 0
        %2563 = vmatprep.subr.bf16.mxu0 0
        %2564 = vmatpush1.bf16.msra.mxu0 0
        %2565 = vmatprep.subr.bf16.mxu0 0
        %2566 = vmatpush1.bf16.msra.mxu0 0
        %2567 = vmatprep.subr.bf16.mxu0 0
        %2568 = vmatpush1.bf16.msra.mxu0 0
        %2569 = vmatprep.subr.bf16.mxu0 0
        %2570 = vmatpush1.bf16.msra.mxu0 0
        %2571 = vmatprep.subr.bf16.mxu0 0
        %2572 = vmatpush1.bf16.msra.mxu0 0
        %2573 = vmatprep.subr.bf16.mxu0 0
        %2574 = vmatpush1.bf16.msra.mxu0 0
        %2575 = vmatprep.subr.bf16.mxu0 0
        %2576 = vmatpush1.bf16.msra.mxu0 0
        %2577 = vmatprep.subr.bf16.mxu0 0
        %2578 = vmatpush1.bf16.msra.mxu0 0
        %2579 = vmatprep.subr.bf16.mxu0 0
        %2580 = vmatpush1.bf16.msra.mxu0 0
        %2581 = vmatprep.subr.bf16.mxu0 0
        %2582 = vmatpush1.bf16.msra.mxu0 0
        %2583 = vmatprep.mubr.bf16.mxu0 0
        %2584 = vmatmul.mubr.bf16.gmra.mrb[0].mxu0 %v2549
        %v2585 = vpop.f32.mrb[0].mxu0
        %v2586 = vadd.f32 %v2536, %v2585
        %v2587 = vpop.f32.mrb[0].mxu0
        %v2588 = vadd.f32 %v2536, %v2587
        %v2589 = vpop.f32.mrb[0].mxu0
        %v2590 = vadd.f32 %v2541, %v2589
        %v2591 = vpop.f32.mrb[0].mxu0
        %v2592 = vadd.f32 %v2541, %v2591
        %2593 = vdwg.mxu0
        %vm2594 = vcmp.ge.f32.partialorder %v2586, 0.0
        %vm2595 = vcmp.ge.f32.partialorder %v2588, 0.0
        %vm2596 = vcmp.ge.f32.partialorder %v2590, 0.0
        %vm2597 = vcmp.ge.f32.partialorder %v2592, 0.0
        %v2598 = vstv %s2523
        %v2599 = vmul.f32 %v2598, %v2586
        %v2600 = vmul.f32 %v2598, %v2588
        %v2601 = vmul.f32 %v2598, %v2590
        %v2602 = vmul.f32 %v2598, %v2592
        %v2603 = vsel %vm2594, %v2586, %v2599
        %v2604 = vsel %vm2595, %v2588, %v2600
        %v2605 = vsel %vm2596, %v2590, %v2601
        %v2606 = vsel %vm2597, %v2592, %v2602
        %s2607 = scalar_lea.vmem %s8, 48
        %v2608 = vld [vmem:[%s2607] sm:$0xff]
        %v2609 = vld [vmem:[%s2607 + $0x8] sm:$0xff]
        %s2610 = scalar_lea.vmem %s9, 48
        %v2611 = vld [vmem:[%s2610] sm:$0xff]
        %v2612 = vld [vmem:[%s2610 + $0x8] sm:$0xff]
        %v2613 = vadd.f32 %v2603, %v2604
        %2614 = vadd.xlane.f32.xlu0 %v2613
        %v2615 = vpop.xlane.xlu0 %2614
        %v2616 = vadd.f32 %v2605, %v2606
        %2617 = vadd.xlane.f32.xlu0 %v2616
        %v2618 = vpop.xlane.xlu0 %2617
        %v2619 = vmul.f32 %v2603, %v2603
        %v2620 = vmul.f32 %v2604, %v2604
        %v2621 = vmul.f32 %v2605, %v2605
        %v2622 = vmul.f32 %v2606, %v2606
        %v2623 = vadd.f32 %v2619, %v2620
        %2624 = vadd.xlane.f32.xlu0 %v2623
        %v2625 = vpop.xlane.xlu0 %2624
        %v2626 = vadd.f32 %v2621, %v2622
        %2627 = vadd.xlane.f32.xlu0 %v2626
        %v2628 = vpop.xlane.xlu0 %2627
        %v2629 = vsel %vm612, %v2615, 0.0
        %v2630 = vsel %vm612, %v2618, 0.0
        %v2631 = vadd.f32 %v2629, %v2630
        %2632 = vadd.xlane.f32.xlu0 %v2631
        %v2633 = vpop.xlane.xlu0 %2632
        %v2634 = vrot.slane %v2633, 4
        %v2635 = vadd.f32 %v2633, %v2634
        %v2636 = vrot.slane %v2635, 2
        %v2637 = vadd.f32 %v2635, %v2636
        %v2638 = vrot.slane %v2637, 1
        %v2639 = vadd.f32 %v2637, %v2638
        %s2640 = vtos %v2639
        %v2641 = vrcp.pop 4096.0
        %s2642 = vtos %v2641
        %s2643 = smul.f32 %s2640, %s2642
        %v2644 = vsel %vm612, %v2625, 0.0
        %v2645 = vsel %vm612, %v2628, 0.0
        %v2646 = vadd.f32 %v2644, %v2645
        %2647 = vadd.xlane.f32.xlu0 %v2646
        %v2648 = vpop.xlane.xlu0 %2647
        %v2649 = vrot.slane %v2648, 4
        %v2650 = vadd.f32 %v2648, %v2649
        %v2651 = vrot.slane %v2650, 2
        %v2652 = vadd.f32 %v2650, %v2651
        %v2653 = vrot.slane %v2652, 1
        %v2654 = vadd.f32 %v2652, %v2653
        %s2655 = vtos %v2654
        %v2656 = vrcp.pop 4096.0
        %s2657 = vtos %v2656
        %s2658 = smul.f32 %s2655, %s2657
        %s2659 = smul.f32 %s2643, %s2643
        %s2660 = ssub.f32 %s2658, %s2659
        %s2661 = sadd.f32 %s2660, 1e-08
        %v2662 = vstv %s2661
        %v2663 = vrsqrt.pop %v2662
        %s2664 = vtos %v2663
        %v2665 = vstv %s2664
        %v2666 = vmul.f32 %v2665, %v2608
        %v2667 = vmul.f32 %v2665, %v2609
        %2669 = vset.pattern.permute.xlu0 0
        %2670 = vperm.xlu0 %2669, %v2666
        %v2671 = vpop.permute.xlu0 %2670
        %2674 = vset.pattern.permute.xlu0 0
        %2675 = vperm.xlu0 %2674, %v2667
        %v2676 = vpop.permute.xlu0 %2675
        %v2678 = vmul.f32 %v2603, %v2671
        %v2679 = vmul.f32 %v2604, %v2671
        %v2680 = vmul.f32 %v2605, %v2676
        %v2681 = vmul.f32 %v2606, %v2676
        %v2682 = vstv %s2643
        %v2683 = vmul.f32 %v2682, %v2666
        %v2684 = vmul.f32 %v2682, %v2667
        %v2685 = vsub.f32 %v2611, %v2683
        %v2686 = vsub.f32 %v2612, %v2684
        %2688 = vset.pattern.permute.xlu0 0
        %2689 = vperm.xlu0 %2688, %v2685
        %v2690 = vpop.permute.xlu0 %2689
        %2693 = vset.pattern.permute.xlu0 0
        %2694 = vperm.xlu0 %2693, %v2686
        %v2695 = vpop.permute.xlu0 %2694
        %v2697 = vadd.f32 %v2678, %v2690
        %v2698 = vadd.f32 %v2679, %v2690
        %v2699 = vadd.f32 %v2680, %v2695
        %v2700 = vadd.f32 %v2681, %v2695
        %2701 = vrot.lane.b32.xlu0 %v2697, 2
        %v2702 = vpop.permute.xlu0 %2701
        %2703 = vrot.lane.b32.xlu0 %v2699, 2
        %v2704 = vpop.permute.xlu0 %2703
        %2705 = vrot.lane.b32.xlu0 %v2698, 2
        %v2706 = vpop.permute.xlu0 %2705
        %2707 = vrot.lane.b32.xlu0 %v2700, 2
        %v2708 = vpop.permute.xlu0 %2707
        %v2709 = vsel %vm1515, %v2702, %v2706
        %v2710 = vsel %vm1515, %v2704, %v2708
        %v2711 = vsel %vm1515, %v2706, %v2702
        %v2712 = vsel %vm1515, %v2708, %v2704
        %v2713 = vsel %vm598, %v2711, 0.0
        %v2714 = vsel %vm599, %v2709, 0.0
        %v2715 = vsel %vm598, %v2712, 0.0
        %v2716 = vsel %vm599, %v2710, 0.0
        %2717 = vrot.lane.b32.xlu0 %v2697, 126
        %v2718 = vpop.permute.xlu0 %2717
        %2719 = vrot.lane.b32.xlu0 %v2699, 126
        %v2720 = vpop.permute.xlu0 %2719
        %2721 = vrot.lane.b32.xlu0 %v2698, 126
        %v2722 = vpop.permute.xlu0 %2721
        %2723 = vrot.lane.b32.xlu0 %v2700, 126
        %v2724 = vpop.permute.xlu0 %2723
        %v2725 = vsel %vm1532, %v2718, %v2722
        %v2726 = vsel %vm1532, %v2720, %v2724
        %v2727 = vsel %vm1532, %v2722, %v2718
        %v2728 = vsel %vm1532, %v2724, %v2720
        %v2729 = vsel %vm600, %v2725, 0.0
        %v2730 = vsel %vm601, %v2727, 0.0
        %v2731 = vsel %vm600, %v2726, 0.0
        %v2732 = vsel %vm601, %v2728, 0.0
        %s2733 = scalar_lea.vmem %s10, 48
        %v2734 = vld [vmem:[%s2733] sm:$0xff]
        %v2735 = vld [vmem:[%s2733 + $0x8] sm:$0xff]
        %2737 = vset.pattern.permute.xlu0 0
        %2738 = vperm.xlu0 %2737, %v2734
        %v2739 = vpop.permute.xlu0 %2738
        %2742 = vset.pattern.permute.xlu0 0
        %2743 = vperm.xlu0 %2742, %v2735
        %v2744 = vpop.permute.xlu0 %2743
        %v2746 = vmul.f32 %v2739, %v2713
        %v2747 = vmul.f32 %v2739, %v2714
        %v2748 = vmul.f32 %v2744, %v2715
        %v2749 = vmul.f32 %v2744, %v2716
        %2750 = vset.pattern.permute.xlu0 1
        %2751 = vperm.xlu0 %2750, %v2734
        %v2752 = vpop.permute.xlu0 %2751
        %2754 = vset.pattern.permute.xlu0 1
        %2755 = vperm.xlu0 %2754, %v2735
        %v2756 = vpop.permute.xlu0 %2755
        %v2758 = vmul.f32 %v2752, %v2697
        %v2759 = vmul.f32 %v2752, %v2698
        %v2760 = vmul.f32 %v2756, %v2699
        %v2761 = vmul.f32 %v2756, %v2700
        %v2762 = vadd.f32 %v2746, %v2758
        %v2763 = vadd.f32 %v2747, %v2759
        %v2764 = vadd.f32 %v2748, %v2760
        %v2765 = vadd.f32 %v2749, %v2761
        %2766 = vset.pattern.permute.xlu0 2
        %2767 = vperm.xlu0 %2766, %v2734
        %v2768 = vpop.permute.xlu0 %2767
        %2770 = vset.pattern.permute.xlu0 2
        %2771 = vperm.xlu0 %2770, %v2735
        %v2772 = vpop.permute.xlu0 %2771
        %v2774 = vmul.f32 %v2768, %v2729
        %v2775 = vmul.f32 %v2768, %v2730
        %v2776 = vmul.f32 %v2772, %v2731
        %v2777 = vmul.f32 %v2772, %v2732
        %v2778 = vadd.f32 %v2762, %v2774
        %v2779 = vadd.f32 %v2763, %v2775
        %v2780 = vadd.f32 %v2764, %v2776
        %v2781 = vadd.f32 %v2765, %v2777
        %2782 = vset.pattern.permute.xlu0 3
        %2783 = vperm.xlu0 %2782, %v2734
        %v2784 = vpop.permute.xlu0 %2783
        %2786 = vset.pattern.permute.xlu0 3
        %2787 = vperm.xlu0 %2786, %v2735
        %v2788 = vpop.permute.xlu0 %2787
        %v2790 = vmul.f32 %v2784, %v2713
        %v2791 = vmul.f32 %v2784, %v2714
        %v2792 = vmul.f32 %v2788, %v2715
        %v2793 = vmul.f32 %v2788, %v2716
        %2794 = vset.pattern.permute.xlu0 4
        %2795 = vperm.xlu0 %2794, %v2734
        %v2796 = vpop.permute.xlu0 %2795
        %2798 = vset.pattern.permute.xlu0 4
        %2799 = vperm.xlu0 %2798, %v2735
        %v2800 = vpop.permute.xlu0 %2799
        %v2802 = vmul.f32 %v2796, %v2697
        %v2803 = vmul.f32 %v2796, %v2698
        %v2804 = vmul.f32 %v2800, %v2699
        %v2805 = vmul.f32 %v2800, %v2700
        %v2806 = vadd.f32 %v2790, %v2802
        %v2807 = vadd.f32 %v2791, %v2803
        %v2808 = vadd.f32 %v2792, %v2804
        %v2809 = vadd.f32 %v2793, %v2805
        %2810 = vset.pattern.permute.xlu0 5
        %2811 = vperm.xlu0 %2810, %v2734
        %v2812 = vpop.permute.xlu0 %2811
        %2814 = vset.pattern.permute.xlu0 5
        %2815 = vperm.xlu0 %2814, %v2735
        %v2816 = vpop.permute.xlu0 %2815
        %v2818 = vmul.f32 %v2812, %v2729
        %v2819 = vmul.f32 %v2812, %v2730
        %v2820 = vmul.f32 %v2816, %v2731
        %v2821 = vmul.f32 %v2816, %v2732
        %v2822 = vadd.f32 %v2806, %v2818
        %v2823 = vadd.f32 %v2807, %v2819
        %v2824 = vadd.f32 %v2808, %v2820
        %v2825 = vadd.f32 %v2809, %v2821
        %s2826 = scalar_lea.vmem %s11, 96
        %v2827 = vld [vmem:[%s2826] sm:$0xff]
        %v2828 = vld [vmem:[%s2826 + $0x8] sm:$0xff]
        %v2829 = vld [vmem:[%s2826 + $0x10] sm:$0xff]
        %v2830 = vld [vmem:[%s2826 + $0x18] sm:$0xff]
        %2832 = vset.pattern.permute.xlu0 0
        %2833 = vperm.xlu0 %2832, %v2827
        %v2834 = vpop.permute.xlu0 %2833
        %2837 = vset.pattern.permute.xlu0 0
        %2838 = vperm.xlu0 %2837, %v2828
        %v2839 = vpop.permute.xlu0 %2838
        %2842 = vset.pattern.permute.xlu0 0
        %2843 = vperm.xlu0 %2842, %v2829
        %v2844 = vpop.permute.xlu0 %2843
        %2847 = vset.pattern.permute.xlu0 0
        %2848 = vperm.xlu0 %2847, %v2830
        %v2849 = vpop.permute.xlu0 %2848
        %v2851 = vadd.f32 %v2778, %v2834
        %v2852 = vadd.f32 %v2779, %v2834
        %v2853 = vadd.f32 %v2780, %v2839
        %v2854 = vadd.f32 %v2781, %v2839
        %v2855 = vadd.f32 %v2822, %v2844
        %v2856 = vadd.f32 %v2823, %v2844
        %v2857 = vadd.f32 %v2824, %v2849
        %v2858 = vadd.f32 %v2825, %v2849
        %vm2859 = vcmp.ge.f32.partialorder %v2851, 0.0
        %vm2860 = vcmp.ge.f32.partialorder %v2852, 0.0
        %vm2861 = vcmp.ge.f32.partialorder %v2853, 0.0
        %vm2862 = vcmp.ge.f32.partialorder %v2854, 0.0
        %vm2863 = vcmp.ge.f32.partialorder %v2855, 0.0
        %vm2864 = vcmp.ge.f32.partialorder %v2856, 0.0
        %vm2865 = vcmp.ge.f32.partialorder %v2857, 0.0
        %vm2866 = vcmp.ge.f32.partialorder %v2858, 0.0
        %v2867 = vstv %s2524
        %v2868 = vmul.f32 %v2867, %v2851
        %v2869 = vmul.f32 %v2867, %v2852
        %v2870 = vmul.f32 %v2867, %v2853
        %v2871 = vmul.f32 %v2867, %v2854
        %v2872 = vmul.f32 %v2867, %v2855
        %v2873 = vmul.f32 %v2867, %v2856
        %v2874 = vmul.f32 %v2867, %v2857
        %v2875 = vmul.f32 %v2867, %v2858
        %v2876 = vsel %vm2859, %v2851, %v2868
        %v2877 = vsel %vm2860, %v2852, %v2869
        %v2878 = vsel %vm2861, %v2853, %v2870
        %v2879 = vsel %vm2862, %v2854, %v2871
        %v2880 = vsel %vm2863, %v2855, %v2872
        %v2881 = vsel %vm2864, %v2856, %v2873
        %v2882 = vsel %vm2865, %v2857, %v2874
        %v2883 = vsel %vm2866, %v2858, %v2875
        %s2884 = scalar_lea.vmem %s12, 96
        %v2885 = vld [vmem:[%s2884] sm:$0xff]
        %v2886 = vld [vmem:[%s2884 + $0x8] sm:$0xff]
        %v2887 = vld [vmem:[%s2884 + $0x10] sm:$0xff]
        %v2888 = vld [vmem:[%s2884 + $0x18] sm:$0xff]
        %s2889 = scalar_lea.vmem %s13, 96
        %v2890 = vld [vmem:[%s2889] sm:$0xff]
        %v2891 = vld [vmem:[%s2889 + $0x8] sm:$0xff]
        %v2892 = vld [vmem:[%s2889 + $0x10] sm:$0xff]
        %v2893 = vld [vmem:[%s2889 + $0x18] sm:$0xff]
        %v2894 = vadd.f32 %v2876, %v2877
        %2895 = vadd.xlane.f32.xlu0 %v2894
        %v2896 = vpop.xlane.xlu0 %2895
        %v2897 = vadd.f32 %v2878, %v2879
        %2898 = vadd.xlane.f32.xlu0 %v2897
        %v2899 = vpop.xlane.xlu0 %2898
        %v2900 = vadd.f32 %v2880, %v2881
        %2901 = vadd.xlane.f32.xlu0 %v2900
        %v2902 = vpop.xlane.xlu0 %2901
        %v2903 = vadd.f32 %v2882, %v2883
        %2904 = vadd.xlane.f32.xlu0 %v2903
        %v2905 = vpop.xlane.xlu0 %2904
        %v2906 = vmul.f32 %v2876, %v2876
        %v2907 = vmul.f32 %v2877, %v2877
        %v2908 = vmul.f32 %v2878, %v2878
        %v2909 = vmul.f32 %v2879, %v2879
        %v2910 = vmul.f32 %v2880, %v2880
        %v2911 = vmul.f32 %v2881, %v2881
        %v2912 = vmul.f32 %v2882, %v2882
        %v2913 = vmul.f32 %v2883, %v2883
        %v2914 = vadd.f32 %v2906, %v2907
        %2915 = vadd.xlane.f32.xlu0 %v2914
        %v2916 = vpop.xlane.xlu0 %2915
        %v2917 = vadd.f32 %v2908, %v2909
        %2918 = vadd.xlane.f32.xlu0 %v2917
        %v2919 = vpop.xlane.xlu0 %2918
        %v2920 = vadd.f32 %v2910, %v2911
        %2921 = vadd.xlane.f32.xlu0 %v2920
        %v2922 = vpop.xlane.xlu0 %2921
        %v2923 = vadd.f32 %v2912, %v2913
        %2924 = vadd.xlane.f32.xlu0 %v2923
        %v2925 = vpop.xlane.xlu0 %2924
        %v2926 = vsel %vm612, %v2896, 0.0
        %v2927 = vsel %vm612, %v2899, 0.0
        %v2928 = vadd.f32 %v2926, %v2927
        %v2929 = vsel %vm612, %v2902, 0.0
        %v2930 = vadd.f32 %v2928, %v2929
        %v2931 = vsel %vm612, %v2905, 0.0
        %v2932 = vadd.f32 %v2930, %v2931
        %2933 = vadd.xlane.f32.xlu0 %v2932
        %v2934 = vpop.xlane.xlu0 %2933
        %v2935 = vrot.slane %v2934, 4
        %v2936 = vadd.f32 %v2934, %v2935
        %v2937 = vrot.slane %v2936, 2
        %v2938 = vadd.f32 %v2936, %v2937
        %v2939 = vrot.slane %v2938, 1
        %v2940 = vadd.f32 %v2938, %v2939
        %s2941 = vtos %v2940
        %v2942 = vrcp.pop 8192.0
        %s2943 = vtos %v2942
        %s2944 = smul.f32 %s2941, %s2943
        %v2945 = vsel %vm612, %v2916, 0.0
        %v2946 = vsel %vm612, %v2919, 0.0
        %v2947 = vadd.f32 %v2945, %v2946
        %v2948 = vsel %vm612, %v2922, 0.0
        %v2949 = vadd.f32 %v2947, %v2948
        %v2950 = vsel %vm612, %v2925, 0.0
        %v2951 = vadd.f32 %v2949, %v2950
        %2952 = vadd.xlane.f32.xlu0 %v2951
        %v2953 = vpop.xlane.xlu0 %2952
        %v2954 = vrot.slane %v2953, 4
        %v2955 = vadd.f32 %v2953, %v2954
        %v2956 = vrot.slane %v2955, 2
        %v2957 = vadd.f32 %v2955, %v2956
        %v2958 = vrot.slane %v2957, 1
        %v2959 = vadd.f32 %v2957, %v2958
        %s2960 = vtos %v2959
        %v2961 = vrcp.pop 8192.0
        %s2962 = vtos %v2961
        %s2963 = smul.f32 %s2960, %s2962
        %s2964 = smul.f32 %s2944, %s2944
        %s2965 = ssub.f32 %s2963, %s2964
        %s2966 = sadd.f32 %s2965, 1e-08
        %v2967 = vstv %s2966
        %v2968 = vrsqrt.pop %v2967
        %s2969 = vtos %v2968
        %v2970 = vstv %s2969
        %v2971 = vmul.f32 %v2970, %v2885
        %v2972 = vmul.f32 %v2970, %v2886
        %v2973 = vmul.f32 %v2970, %v2887
        %v2974 = vmul.f32 %v2970, %v2888
        %2976 = vset.pattern.permute.xlu0 0
        %2977 = vperm.xlu0 %2976, %v2971
        %v2978 = vpop.permute.xlu0 %2977
        %2981 = vset.pattern.permute.xlu0 0
        %2982 = vperm.xlu0 %2981, %v2972
        %v2983 = vpop.permute.xlu0 %2982
        %2986 = vset.pattern.permute.xlu0 0
        %2987 = vperm.xlu0 %2986, %v2973
        %v2988 = vpop.permute.xlu0 %2987
        %2991 = vset.pattern.permute.xlu0 0
        %2992 = vperm.xlu0 %2991, %v2974
        %v2993 = vpop.permute.xlu0 %2992
        %v2995 = vmul.f32 %v2876, %v2978
        %v2996 = vmul.f32 %v2877, %v2978
        %v2997 = vmul.f32 %v2878, %v2983
        %v2998 = vmul.f32 %v2879, %v2983
        %v2999 = vmul.f32 %v2880, %v2988
        %v3000 = vmul.f32 %v2881, %v2988
        %v3001 = vmul.f32 %v2882, %v2993
        %v3002 = vmul.f32 %v2883, %v2993
        %v3003 = vstv %s2944
        %v3004 = vmul.f32 %v3003, %v2971
        %v3005 = vmul.f32 %v3003, %v2972
        %v3006 = vmul.f32 %v3003, %v2973
        %v3007 = vmul.f32 %v3003, %v2974
        %v3008 = vsub.f32 %v2890, %v3004
        %v3009 = vsub.f32 %v2891, %v3005
        %v3010 = vsub.f32 %v2892, %v3006
        %v3011 = vsub.f32 %v2893, %v3007
        %3013 = vset.pattern.permute.xlu0 0
        %3014 = vperm.xlu0 %3013, %v3008
        %v3015 = vpop.permute.xlu0 %3014
        %3018 = vset.pattern.permute.xlu0 0
        %3019 = vperm.xlu0 %3018, %v3009
        %v3020 = vpop.permute.xlu0 %3019
        %3023 = vset.pattern.permute.xlu0 0
        %3024 = vperm.xlu0 %3023, %v3010
        %v3025 = vpop.permute.xlu0 %3024
        %3028 = vset.pattern.permute.xlu0 0
        %3029 = vperm.xlu0 %3028, %v3011
        %v3030 = vpop.permute.xlu0 %3029
        %v3032 = vadd.f32 %v2995, %v3015
        %v3033 = vadd.f32 %v2996, %v3015
        %v3034 = vadd.f32 %v2997, %v3020
        %v3035 = vadd.f32 %v2998, %v3020
        %v3036 = vadd.f32 %v2999, %v3025
        %v3037 = vadd.f32 %v3000, %v3025
        %v3038 = vadd.f32 %v3001, %v3030
        %v3039 = vadd.f32 %v3002, %v3030
        %s3040 = scalar_lea.vmem %s15, 48
        %v3041 = vld [vmem:[%s3040] sm:$0xff]
        %v3042 = vld [vmem:[%s3040 + $0x8] sm:$0xff]
        %3044 = vset.pattern.permute.xlu0 0
        %3045 = vperm.xlu0 %3044, %v3041
        %v3046 = vpop.permute.xlu0 %3045
        %3049 = vset.pattern.permute.xlu0 0
        %3050 = vperm.xlu0 %3049, %v3042
        %v3051 = vpop.permute.xlu0 %3050
        %v3053 = vadd.f32 %v2519, %v3046
        %v3054 = vadd.f32 %v2520, %v3046
        %v3055 = vadd.f32 %v2521, %v3051
        %v3056 = vadd.f32 %v2522, %v3051
        %s3057 = scalar_lea.vmem %s14, 24
        %v3058 = vld [vmem:[%s3057] sm:$0xf]
        %v3059 = vld [vmem:[%s3057 + $0x4] sm:$0xf]
        %v3060 = vpack.c.bf16 %v3034, %v3032
        %v3061 = vpack.c.bf16 %v3035, %v3033
        %v3062 = vpack.c.bf16 %v3038, %v3036
        %v3063 = vpack.c.bf16 %v3039, %v3037
        %v3066 = vunpack.c.l.b16 %v3058
        %v3067 = vunpack.c.l.b16 %v3059
        %v3068 = vpack.c.b16 %v3067, %v3066
        %v3070 = vsel %vm1278, %v3068, 0
        %3072 = vmatprep.subr.bf16.mxu0 %v3061
        %3073 = vmatpush1.bf16.msra.mxu0 %v3060
        %3074 = vmatprep.subr.bf16.mxu0 %v3063
        %3075 = vmatpush1.bf16.msra.mxu0 %v3062
        %3076 = vmatprep.subr.bf16.mxu0 0
        %3077 = vmatpush1.bf16.msra.mxu0 0
        %3078 = vmatprep.subr.bf16.mxu0 0
        %3079 = vmatpush1.bf16.msra.mxu0 0
        %3080 = vmatprep.subr.bf16.mxu0 0
        %3081 = vmatpush1.bf16.msra.mxu0 0
        %3082 = vmatprep.subr.bf16.mxu0 0
        %3083 = vmatpush1.bf16.msra.mxu0 0
        %3084 = vmatprep.subr.bf16.mxu0 0
        %3085 = vmatpush1.bf16.msra.mxu0 0
        %3086 = vmatprep.subr.bf16.mxu0 0
        %3087 = vmatpush1.bf16.msra.mxu0 0
        %3088 = vmatprep.subr.bf16.mxu0 0
        %3089 = vmatpush1.bf16.msra.mxu0 0
        %3090 = vmatprep.subr.bf16.mxu0 0
        %3091 = vmatpush1.bf16.msra.mxu0 0
        %3092 = vmatprep.subr.bf16.mxu0 0
        %3093 = vmatpush1.bf16.msra.mxu0 0
        %3094 = vmatprep.subr.bf16.mxu0 0
        %3095 = vmatpush1.bf16.msra.mxu0 0
        %3096 = vmatprep.subr.bf16.mxu0 0
        %3097 = vmatpush1.bf16.msra.mxu0 0
        %3098 = vmatprep.subr.bf16.mxu0 0
        %3099 = vmatpush1.bf16.msra.mxu0 0
        %3100 = vmatprep.subr.bf16.mxu0 0
        %3101 = vmatpush1.bf16.msra.mxu0 0
        %3102 = vmatprep.subr.bf16.mxu0 0
        %3103 = vmatpush1.bf16.msra.mxu0 0
        %3104 = vmatprep.mubr.bf16.mxu0 0
        %3105 = vmatmul.mubr.bf16.gmra.mrb[0].mxu0 %v3070
        %v3106 = vpop.f32.mrb[0].mxu0
        %v3107 = vadd.f32 0.0, %v3106
        %v3108 = vpop.f32.mrb[0].mxu0
        %v3109 = vadd.f32 0.0, %v3108
        %v3110 = vpop.f32.mrb[0].mxu0
        %v3111 = vadd.f32 0.0, %v3110
        %v3112 = vpop.f32.mrb[0].mxu0
        %v3113 = vadd.f32 0.0, %v3112
        %3114 = vdwg.mxu0
        %v3115 = vadd.f32 %v3053, %v3107
        %v3116 = vadd.f32 %v3054, %v3109
        %v3117 = vadd.f32 %v3055, %v3111
        %v3118 = vadd.f32 %v3056, %v3113
        %s3119 = sld [smem:[#allocation2 + $0x8]]
        %vm3120 = vcmp.ge.f32.partialorder %v3115, 0.0
        %vm3121 = vcmp.ge.f32.partialorder %v3116, 0.0
        %vm3122 = vcmp.ge.f32.partialorder %v3117, 0.0
        %vm3123 = vcmp.ge.f32.partialorder %v3118, 0.0
        %v3124 = vstv %s3119
        %v3125 = vmul.f32 %v3124, %v3115
        %v3126 = vmul.f32 %v3124, %v3116
        %v3127 = vmul.f32 %v3124, %v3117
        %v3128 = vmul.f32 %v3124, %v3118
        %v3129 = vsel %vm3120, %v3115, %v3125
        %v3130 = vsel %vm3121, %v3116, %v3126
        %v3131 = vsel %vm3122, %v3117, %v3127
        %v3132 = vsel %vm3123, %v3118, %v3128
        %v3133 = vld [vmem:[%s16] sm:$0xf]
        %v3134 = vpack.c.bf16 %v3131, %v3129
        %v3135 = vpack.c.bf16 %v3132, %v3130
        %v3136 = vld [vmem:[%s17] sm:$0xff]
        %3138 = vset.pattern.permute.xlu0 0
        %3139 = vperm.xlu0 %3138, %v3136
        %v3140 = vpop.permute.xlu0 %3139
        %v3143 = vsel %vm762, %v3133, 0
        %3145 = vmatprep.subr.bf16.mxu0 %v3135
        %3146 = vmatpush1.bf16.msra.mxu0 %v3134
        %3147 = vmatprep.subr.bf16.mxu0 0
        %3148 = vmatpush1.bf16.msra.mxu0 0
        %3149 = vmatprep.subr.bf16.mxu0 0
        %3150 = vmatpush1.bf16.msra.mxu0 0
        %3151 = vmatprep.subr.bf16.mxu0 0
        %3152 = vmatpush1.bf16.msra.mxu0 0
        %3153 = vmatprep.subr.bf16.mxu0 0
        %3154 = vmatpush1.bf16.msra.mxu0 0
        %3155 = vmatprep.subr.bf16.mxu0 0
        %3156 = vmatpush1.bf16.msra.mxu0 0
        %3157 = vmatprep.subr.bf16.mxu0 0
        %3158 = vmatpush1.bf16.msra.mxu0 0
        %3159 = vmatprep.subr.bf16.mxu0 0
        %3160 = vmatpush1.bf16.msra.mxu0 0
        %3161 = vmatprep.subr.bf16.mxu0 0
        %3162 = vmatpush1.bf16.msra.mxu0 0
        %3163 = vmatprep.subr.bf16.mxu0 0
        %3164 = vmatpush1.bf16.msra.mxu0 0
        %3165 = vmatprep.subr.bf16.mxu0 0
        %3166 = vmatpush1.bf16.msra.mxu0 0
        %3167 = vmatprep.subr.bf16.mxu0 0
        %3168 = vmatpush1.bf16.msra.mxu0 0
        %3169 = vmatprep.subr.bf16.mxu0 0
        %3170 = vmatpush1.bf16.msra.mxu0 0
        %3171 = vmatprep.subr.bf16.mxu0 0
        %3172 = vmatpush1.bf16.msra.mxu0 0
        %3173 = vmatprep.subr.bf16.mxu0 0
        %3174 = vmatpush1.bf16.msra.mxu0 0
        %3175 = vmatprep.subr.bf16.mxu0 0
        %3176 = vmatpush1.bf16.msra.mxu0 0
        %3177 = vmatprep.mubr.bf16.mxu0 0
        %3178 = vmatmul.mubr.bf16.gmra.mrb[0].mxu0 %v3143
        %v3179 = vpop.f32.mrb[0].mxu0
        %v3180 = vadd.f32 %v3140, %v3179
        %v3181 = vpop.f32.mrb[0].mxu0
        %v3182 = vadd.f32 %v3140, %v3181
        %v3183 = vpop.f32.mrb[0].mxu0
        %v3184 = vpop.f32.mrb[0].mxu0
        %3185 = vdwg.mxu0
        %3186 = vst [vmem:[%s582] sm:$0xff] %v3180
        %3187 = vst [vmem:[%s582 + $0x8] sm:$0xff] %v3182
        %s3188 = sand.u32 %s424, 1
        %s3189 = scalar_lea.sflag [#allocation3], %s3188
        %s3190 = sand.u32 %s424, 1
        %s3191 = smul.addr %s3190, 16
        %s3192 = scalar_lea.vmem [#allocation5], %s3191
        // Predicated region
        $region97: #{tcn_forward.1} parent=91 // pred_check
          %p3193 = pneg %p434
        $region98: #{tcn_forward.1} parent=91 // pred_check_branch
          %3195 = sbr.rel (%p3193) target = $region100
        $region99: #{tcn_forward.1} parent=91 // pred_region
          %s3197 = ssub.s32 256, 256
          %3198 = vsyncadd %s3189, %s3197
          %s3199 = smul.addr %s33, 2
          %s3200 = smul.addr %s3199, 128
          %s3201 = scalar_lea.hbm %s18, %s3200
          %s3203 = sshll.u32 %s3192, 4
          %s3204 = int_to_ptr.vmem [resolvable:$true] %s3203
          %3206 = dma.vmem_to_hbm [thread:$0]  %s3204, 256, %s3201, %s3189
        $region100: #{tcn_forward.1} parent=91 // pred_fallthru
          _
      $region92: #{tcn_forward.1} parent=5 // pred_fallthru
        _
      %p3207 = scmp.le.s32.totalorder 2, %s28
      // Predicated region
      $region101: #{tcn_forward.1} parent=5 // pred_check
        %p3208 = pneg %p3207
      $region102: #{tcn_forward.1} parent=5 // pred_check_branch
        %3210 = sbr.rel (%p3208) target = $region104
      $region103: #{tcn_forward.1} parent=5 // pred_region
        %s3211 = ssub.s32 %s28, 2
        // Predicated region
        $region105: #{tcn_forward.1} parent=103 // pred_check
          %p3212 = pneg %p440
        $region106: #{tcn_forward.1} parent=103 // pred_check_branch
          %3214 = sbr.rel (%p3212) target = $region108
        $region107: #{tcn_forward.1} parent=103 // pred_region
          %s3215 = sand.u32 %s425, 1
          %s3216 = scalar_lea.sflag [#allocation3], %s3215
          %s3217 = sand.u32 %s425, 1
          %s3218 = smul.addr %s3217, 16
          %s3219 = scalar_lea.vmem [#allocation5], %s3218
          %3220 = dma.done %s3216, 256
        $region108: #{tcn_forward.1} parent=103 // pred_fallthru
          _
      $region104: #{tcn_forward.1} parent=5 // pred_fallthru
        _
    $region6: #{tcn_forward.1} parent=1 // loop_footer
      %s32 = sadd.s32 1, %s28
    $region7: #{tcn_forward.1} parent=1 // loop_footer_branch
      %27 = sbr.rel target = $region3
    $region8: #{tcn_forward.1} parent=1 // loop_exit
      _
    %3221 = vsyncpa [#allocation3], 1
    %s3222 = scalar_lea.sflag [#allocation3], 1
    %3223 = vsyncpa %s3222, 1
    %3224 = vsyncpa [#allocation4], 1
    %s3225 = scalar_lea.sflag [#allocation4], 1
    %3226 = vsyncpa %s3225, 1

</llo_original>
